<compile_context>
chip_gen: v5e
topology: v5e:2x2
jax: 0.10.0
libtpu: 0.0.40
codegen_flags: <defaults>
</compile_context>

<pallas_src>
import numpy as np

import jax
import jax.numpy as jnp
from jax.experimental import pallas as pl
from jax.experimental.pallas import tpu as pltpu

_HID = 60          # hidden width of every Linear layer
_NUM_HIDDEN = 8    # number of 60->60 hidden layers per network
_PAD = 128         # lane-dense padded width
_OFF3 = 64         # lane offset of the fc3 block inside the merged fc2|fc3 slab


# -----------------------------------------------------------------------------
# Kernel
# -----------------------------------------------------------------------------
def _hydrunn_kernel(scal_ref, bout_ref,                      # SMEM: (4,), (3,)
                    x_ref,                                   # (TR, 2)            VMEM f32
                    w_in_ref, b_in_ref,                      # (2,2,128), (2,1,128) f32
                    w_hid_ref, b_hid_ref,                    # (2,8,128,128) bf16, (2,8,1,128) f32
                    w_out_ref,                               # (3,1,128) f32 (transposed out rows)
                    out_ref):                                # (TR, 128) f32 — lanes 0..3 = psi,psi_log,theta,K
    w_fix = scal_ref[0]
    w_learn = scal_ref[1]
    theta_s = scal_ref[2]
    k_s = scal_ref[3]

    def hidden_stack(h, n):
        # 8 padded / block-diagonal 128x128 tanh layers of stack `n`.
        # bf16 operands on the MXU, f32 accumulate + bias + tanh.
        for l in range(_NUM_HIDDEN):
            z = jnp.dot(h.astype(jnp.bfloat16), w_hid_ref[n, l],
                        preferred_element_type=jnp.float32)
            h = jnp.tanh(z + b_hid_ref[n, l])
        return h                                             # (TR, 128) f32

    def head(h, k):
        # Width-1 output layer: lane-reduce against a zero-padded weight row.
        return jnp.sum(h * w_out_ref[k], axis=1, keepdims=True) + bout_ref[k]

    x = x_ref[...]                                           # (TR, 2)

    # ---- fc1: psi_log --------------------------------------------------------
    win0 = w_in_ref[0]                                       # (2, 128)
    h1 = jnp.tanh(x[:, 0:1] * win0[0:1, :]
                  + x[:, 1:2] * win0[1:2, :]
                  + b_in_ref[0])
    h1 = hidden_stack(h1, 0)
    psi_log = head(h1, 0)                                    # (TR, 1)
    psi = -jnp.exp(psi_log)
    neg_psi_log = -psi_log

    # ---- merged fc2 | fc3 (block-diagonal), both fed -psi_log ----------------
    win1 = w_in_ref[1]                                       # (2, 128); row 1 is zero
    h2 = jnp.tanh(neg_psi_log * win1[0:1, :] + b_in_ref[1])  # (TR, 128)
    h2 = hidden_stack(h2, 1)
    k_pre = head(h2, 1)                                      # fc2 head (lanes 0-59)
    theta_pre = head(h2, 2)                                  # fc3 head (lanes 64-123)

    sig_fix = pl.reciprocal(1.0 + jnp.exp(-w_fix * k_pre), approx=True)
    sig_fix2 = sig_fix * sig_fix
    big_k = k_s * (sig_fix2 * sig_fix2)
    sig_learn = pl.reciprocal(1.0 + jnp.exp(-w_learn * theta_pre), approx=True)
    theta = theta_s * sig_learn

    # ---- lane-dense fused output: lanes 0..3 = psi, psi_log, theta, K --------
    lane = jax.lax.broadcasted_iota(jnp.int32, (x.shape[0], _PAD), 1)
    out = (psi * (lane == 0).astype(jnp.float32)
           + psi_log * (lane == 1).astype(jnp.float32)
           + theta * (lane == 2).astype(jnp.float32)
           + big_k * (lane == 3).astype(jnp.float32))
    out_ref[...] = out


# -----------------------------------------------------------------------------
# Wrapper
# -----------------------------------------------------------------------------
def _round_up(v, m):
    return ((v + m - 1) // m) * m


def hydrunn_forward(packed, x, *, tile_rows=512):
    """Fused hydruNN forward. x: (N, 2) float32 -> (psi, psi_log, theta, K), each (N, 1)."""
    x = x.astype(jnp.float32)
    n = x.shape[0]
    # Tile so the grid has >= 2 "parallel" steps whenever possible (v7x: 2 TCs),
    # but cap at tile_rows to keep plenty of grid steps for large batches.
    max_tr = _round_up(max(1, (n + 1) // 2), 8)
    tr = max(8, min(tile_rows, max_tr))
    n_pad = _round_up(n, tr)
    if n_pad != n:
        x = jnp.pad(x, ((0, n_pad - n), (0, 0)))
    grid = (n_pad // tr,)

    def full_spec(shape):
        return pl.BlockSpec(shape, lambda i, _s=shape: (0,) * len(_s))

    def row_spec(cols):
        return pl.BlockSpec((tr, cols), lambda i: (i, 0))

    # Cost estimate describes the *executed* (lane-padded) math.
    param_bytes = sum(int(v.size) * v.dtype.itemsize for v in packed.values())
    flops = n_pad * (2 * _NUM_HIDDEN * 2 * _PAD * _PAD   # 16 padded 128x128 matmuls
                     + 2 * 2 * _PAD                      # fc1 input layer (VPU)
                     + 2 * _PAD                          # merged fc2|fc3 input layer
                     + 3 * 2 * _PAD)                     # 3 output heads (lane-reduce)
    transcendentals = n_pad * (2 * (_NUM_HIDDEN + 1) * _PAD + 3)
    bytes_accessed = 4 * x.size + 4 * n_pad * _PAD + param_bytes

    out = pl.pallas_call(
        _hydrunn_kernel,
        grid=grid,
        in_specs=[
            pl.BlockSpec(memory_space=pltpu.SMEM),           # scal: [w_fix, w_learn, theta_s, K_s]
            pl.BlockSpec(memory_space=pltpu.SMEM),           # output-layer biases (3,)
            row_spec(2),                                      # x tile
            full_spec((2, 2, _PAD)),                          # input-layer weights
            full_spec((2, 1, _PAD)),                          # input-layer biases
            full_spec((2, _NUM_HIDDEN, _PAD, _PAD)),          # hidden weights (bf16, block-diag for net 1)
            full_spec((2, _NUM_HIDDEN, 1, _PAD)),             # hidden biases (f32)
            full_spec((3, 1, _PAD)),                          # output head weights (transposed)
        ],
        out_specs=pl.BlockSpec((tr, _PAD), lambda i: (i, 0)),
        out_shape=jax.ShapeDtypeStruct((n_pad, _PAD), jnp.float32),
        compiler_params=pltpu.CompilerParams(
            dimension_semantics=("parallel",),
            vmem_limit_bytes=32 * 1024 * 1024,
        ),
        cost_estimate=pl.CostEstimate(
            flops=int(flops),
            transcendentals=int(transcendentals),
            bytes_accessed=int(bytes_accessed),
        ),
    )(packed["scal"], packed["b_out"], x,
      packed["w_in"], packed["b_in"], packed["w_hid"], packed["b_hid"], packed["w_out"])

    psi = out[:n, 0:1]
    psi_log = out[:n, 1:2]
    theta = out[:n, 2:3]
    big_k = out[:n, 3:4]
    return psi, psi_log, theta, big_k


# -----------------------------------------------------------------------------
# Parameter construction (deterministic) and packing into padded slabs
# -----------------------------------------------------------------------------
def init_raw_params(key):
    def linear(k, fan_in, fan_out):
        kw, kb = jax.random.split(k)
        bound = 1.0 / float(np.sqrt(fan_in))
        w = jax.random.uniform(kw, (fan_in, fan_out), jnp.float32, -bound, bound)
        b = jax.random.uniform(kb, (fan_out,), jnp.float32, -bound, bound)
        return w, b

    def mlp(k, in_dim):
        ks = jax.random.split(k, _NUM_HIDDEN + 2)
        layers = [linear(ks[0], in_dim, _HID)]
        layers += [linear(ks[1 + l], _HID, _HID) for l in range(_NUM_HIDDEN)]
        layers.append(linear(ks[-1], _HID, 1))
        return layers

    k1, k2, k3 = jax.random.split(key, 3)
    return {
        "fc1": mlp(k1, 2),
        "fc2": mlp(k2, 1),
        "fc3": mlp(k3, 1),
        "w_fixed": 0.7,    # FixedSigmoid.weight    (reset_parameters -> 0.7)
        "w_learn": 0.7,    # LearnableSigmoid.weight(reset_parameters -> 0.7)
        "theta_s": 0.5,
        "K_s": 10.8,
    }


def pack_params(raw):
    """Pack fc1 into slab 0 and fc2|fc3 block-diagonally into slab 1 (128 lanes)."""
    fc1, fc2, fc3 = raw["fc1"], raw["fc2"], raw["fc3"]

    w_in = np.zeros((2, 2, _PAD), np.float32)
    b_in = np.zeros((2, 1, _PAD), np.float32)
    w_hid = np.zeros((2, _NUM_HIDDEN, _PAD, _PAD), np.float32)
    b_hid = np.zeros((2, _NUM_HIDDEN, 1, _PAD), np.float32)
    w_out = np.zeros((3, 1, _PAD), np.float32)
    b_out = np.zeros((3,), np.float32)

    # --- slab 0: fc1 ----------------------------------------------------------
    w0, b0 = fc1[0]
    w_in[0, :2, :_HID] = np.asarray(w0)
    b_in[0, 0, :_HID] = np.asarray(b0)
    for l in range(_NUM_HIDDEN):
        w, b = fc1[1 + l]
        w_hid[0, l, :_HID, :_HID] = np.asarray(w)
        b_hid[0, l, 0, :_HID] = np.asarray(b)
    wl, bl = fc1[-1]
    w_out[0, 0, :_HID] = np.asarray(wl)[:, 0]
    b_out[0] = float(np.asarray(bl)[0])

    # --- slab 1: fc2 (lanes 0-59) | fc3 (lanes 64-123), block-diagonal ---------
    for head_idx, (layers, off) in enumerate(((fc2, 0), (fc3, _OFF3)), start=1):
        w0, b0 = layers[0]                                   # (1,60), (60,)
        w_in[1, 0, off:off + _HID] = np.asarray(w0)[0]
        b_in[1, 0, off:off + _HID] = np.asarray(b0)
        for l in range(_NUM_HIDDEN):
            w, b = layers[1 + l]
            w_hid[1, l, off:off + _HID, off:off + _HID] = np.asarray(w)
            b_hid[1, l, 0, off:off + _HID] = np.asarray(b)
        wl, bl = layers[-1]
        w_out[head_idx, 0, off:off + _HID] = np.asarray(wl)[:, 0]
        b_out[head_idx] = float(np.asarray(bl)[0])

    scal = np.array([raw["w_fixed"], raw["w_learn"], raw["theta_s"], raw["K_s"]],
                    np.float32)
    return dict(scal=jnp.asarray(scal),
                b_out=jnp.asarray(b_out),
                w_in=jnp.asarray(w_in),
                b_in=jnp.asarray(b_in),
                w_hid=jnp.asarray(w_hid).astype(jnp.bfloat16),   # native MXU dtype
                b_hid=jnp.asarray(b_hid),
                w_out=jnp.asarray(w_out))


# -----------------------------------------------------------------------------
# Plain-JAX reference
# -----------------------------------------------------------------------------
def hydrunn_reference(raw, x):
    def mlp(layers, h):
        for w, b in layers[:-1]:
            h = jnp.tanh(h @ w + b)
        w, b = layers[-1]
        return h @ w + b

    psi_log = mlp(raw["fc1"], x)
    psi = -jnp.exp(psi_log)
    k_pre = mlp(raw["fc2"], -psi_log)
    sig_fix = 1.0 / (1.0 + jnp.exp(-raw["w_fixed"] * k_pre))
    big_k = raw["K_s"] * sig_fix ** 4
    theta_pre = mlp(raw["fc3"], -psi_log)
    theta = raw["theta_s"] * (1.0 / (1.0 + jnp.exp(-raw["w_learn"] * theta_pre)))
    return psi, psi_log, theta, big_k


if __name__ == "__main__":
    key = jax.random.PRNGKey(0)
    k_x, k_p = jax.random.split(key)

    # Small batch of (psi-node, time)-style collocation points: (N, 2).
    N = 512
    x = jax.random.normal(k_x, (N, 2), dtype=jnp.float32)

    raw = init_raw_params(k_p)
    packed = pack_params(raw)

    outs = hydrunn_forward(packed, x)
    outs = jax.block_until_ready(outs)

    # Reference in plain JAX (high-precision dots to isolate kernel error).
    with jax.default_matmul_precision("highest"):
        refs = jax.block_until_ready(hydrunn_reference(raw, x))

    names = ("psi", "psi_log", "theta", "K")
    for name, got, want in zip(names, outs, refs):
        assert got.shape == (N, 1), (name, got.shape)
        assert jnp.allclose(got, want, atol=2e-2, rtol=2e-2), name

    print("KERNEL_OK")
</pallas_src>

<mosaic_0001>
module attributes {stable_mosaic.version = 11 : i64} {
  func.func @_hydrunn_kernel(%arg0: i32, %arg1: memref<4xf32, #tpu.memory_space<smem>>, %arg2: memref<3xf32, #tpu.memory_space<smem>>, %arg3: memref<256x2xf32, #tpu.memory_space<vmem>>, %arg4: memref<2x2x128xf32, #tpu.memory_space<vmem>>, %arg5: memref<2x1x128xf32, #tpu.memory_space<vmem>>, %arg6: memref<2x8x128x128xbf16, #tpu.memory_space<vmem>>, %arg7: memref<2x8x1x128xf32, #tpu.memory_space<vmem>>, %arg8: memref<3x1x128xf32, #tpu.memory_space<vmem>>, %arg9: memref<256x128xf32, #tpu.memory_space<vmem>>) attributes {dimension_semantics = [#tpu.dimension_semantics<parallel>], iteration_bounds = array<i64: 2>, scalar_prefetch = 0 : i64, scratch_operands = 0 : i64, tpu.core_type = #tpu.core_type<tc>, window_params = [{transform_indices = @transform_0, window_bounds = array<i64: 4>}, {transform_indices = @transform_1, window_bounds = array<i64: 3>}, {transform_indices = @transform_2, window_bounds = array<i64: 256, 2>}, {pipeline_mode = #tpu.pipeline_mode<synchronous>, transform_indices = @transform_3, window_bounds = array<i64: 2, 2, 128>}, {pipeline_mode = #tpu.pipeline_mode<synchronous>, transform_indices = @transform_4, window_bounds = array<i64: 2, 1, 128>}, {pipeline_mode = #tpu.pipeline_mode<synchronous>, transform_indices = @transform_5, window_bounds = array<i64: 2, 8, 128, 128>}, {pipeline_mode = #tpu.pipeline_mode<synchronous>, transform_indices = @transform_6, window_bounds = array<i64: 2, 8, 1, 128>}, {pipeline_mode = #tpu.pipeline_mode<synchronous>, transform_indices = @transform_7, window_bounds = array<i64: 3, 1, 128>}, {transform_indices = @transform_8, window_bounds = array<i64: 256, 128>}]} {
    %c0 = arith.constant 0 : index
    %0 = memref.load %arg1[%c0] : memref<4xf32, #tpu.memory_space<smem>>
    %c1 = arith.constant 1 : index
    %1 = memref.load %arg1[%c1] : memref<4xf32, #tpu.memory_space<smem>>
    %c2 = arith.constant 2 : index
    %2 = memref.load %arg1[%c2] : memref<4xf32, #tpu.memory_space<smem>>
    %c3 = arith.constant 3 : index
    %3 = memref.load %arg1[%c3] : memref<4xf32, #tpu.memory_space<smem>>
    %c0_0 = arith.constant 0 : index
    %c0_1 = arith.constant 0 : index
    %4 = vector.load %arg3[%c0_0, %c0_1] : memref<256x2xf32, #tpu.memory_space<vmem>>, vector<256x2xf32>
    %c0_2 = arith.constant 0 : index
    %c0_3 = arith.constant 0 : index
    %c0_4 = arith.constant 0 : index
    %5 = vector.load %arg4[%c0_2, %c0_3, %c0_4] : memref<2x2x128xf32, #tpu.memory_space<vmem>>, vector<1x2x128xf32>
    %6 = vector.shape_cast %5 : vector<1x2x128xf32> to vector<2x128xf32>
    %7 = vector.extract_strided_slice %4 {offsets = [0, 0], sizes = [256, 1], strides = [1, 1]} : vector<256x2xf32> to vector<256x1xf32>
    %8 = vector.extract_strided_slice %6 {offsets = [0, 0], sizes = [1, 128], strides = [1, 1]} : vector<2x128xf32> to vector<1x128xf32>
    %9 = vector.broadcast %7 : vector<256x1xf32> to vector<256x128xf32>
    %10 = vector.broadcast %8 : vector<1x128xf32> to vector<256x128xf32>
    %11 = arith.mulf %9, %10 : vector<256x128xf32>
    %12 = vector.extract_strided_slice %4 {offsets = [0, 1], sizes = [256, 1], strides = [1, 1]} : vector<256x2xf32> to vector<256x1xf32>
    %13 = vector.extract_strided_slice %6 {offsets = [1, 0], sizes = [1, 128], strides = [1, 1]} : vector<2x128xf32> to vector<1x128xf32>
    %14 = vector.broadcast %12 : vector<256x1xf32> to vector<256x128xf32>
    %15 = vector.broadcast %13 : vector<1x128xf32> to vector<256x128xf32>
    %16 = arith.mulf %14, %15 : vector<256x128xf32>
    %17 = arith.addf %11, %16 : vector<256x128xf32>
    %c0_5 = arith.constant 0 : index
    %c0_6 = arith.constant 0 : index
    %c0_7 = arith.constant 0 : index
    %18 = vector.load %arg5[%c0_5, %c0_6, %c0_7] : memref<2x1x128xf32, #tpu.memory_space<vmem>>, vector<1x1x128xf32>
    %19 = vector.shape_cast %18 : vector<1x1x128xf32> to vector<1x128xf32>
    %20 = vector.broadcast %19 : vector<1x128xf32> to vector<256x128xf32>
    %21 = arith.addf %17, %20 : vector<256x128xf32>
    %22 = math.tanh %21 : vector<256x128xf32>
    %23 = arith.truncf %22 : vector<256x128xf32> to vector<256x128xbf16>
    %c0_8 = arith.constant 0 : index
    %c0_9 = arith.constant 0 : index
    %c0_10 = arith.constant 0 : index
    %c0_11 = arith.constant 0 : index
    %24 = vector.load %arg6[%c0_8, %c0_9, %c0_10, %c0_11] : memref<2x8x128x128xbf16, #tpu.memory_space<vmem>>, vector<1x1x128x128xbf16>
    %25 = vector.shape_cast %24 : vector<1x1x128x128xbf16> to vector<128x128xbf16>
    %cst = arith.constant dense<0.000000e+00> : vector<256x128xf32>
    %26 = tpu.matmul %23, %25, %cst {dimension_numbers = #tpu.dot_dimension_numbers<[1], [0], [0], [1], [0, 0, 1, 1], [], []>} : vector<256x128xbf16>, vector<128x128xbf16>, vector<256x128xf32> -> vector<256x128xf32>
    %c0_12 = arith.constant 0 : index
    %c0_13 = arith.constant 0 : index
    %c0_14 = arith.constant 0 : index
    %c0_15 = arith.constant 0 : index
    %27 = vector.load %arg7[%c0_12, %c0_13, %c0_14, %c0_15] : memref<2x8x1x128xf32, #tpu.memory_space<vmem>>, vector<1x1x1x128xf32>
    %28 = vector.shape_cast %27 : vector<1x1x1x128xf32> to vector<1x128xf32>
    %29 = vector.broadcast %28 : vector<1x128xf32> to vector<256x128xf32>
    %30 = arith.addf %26, %29 : vector<256x128xf32>
    %31 = math.tanh %30 : vector<256x128xf32>
    %32 = arith.truncf %31 : vector<256x128xf32> to vector<256x128xbf16>
    %c0_16 = arith.constant 0 : index
    %c1_17 = arith.constant 1 : index
    %c0_18 = arith.constant 0 : index
    %c0_19 = arith.constant 0 : index
    %33 = vector.load %arg6[%c0_16, %c1_17, %c0_18, %c0_19] : memref<2x8x128x128xbf16, #tpu.memory_space<vmem>>, vector<1x1x128x128xbf16>
    %34 = vector.shape_cast %33 : vector<1x1x128x128xbf16> to vector<128x128xbf16>
    %cst_20 = arith.constant dense<0.000000e+00> : vector<256x128xf32>
    %35 = tpu.matmul %32, %34, %cst_20 {dimension_numbers = #tpu.dot_dimension_numbers<[1], [0], [0], [1], [0, 0, 1, 1], [], []>} : vector<256x128xbf16>, vector<128x128xbf16>, vector<256x128xf32> -> vector<256x128xf32>
    %c0_21 = arith.constant 0 : index
    %c1_22 = arith.constant 1 : index
    %c0_23 = arith.constant 0 : index
    %c0_24 = arith.constant 0 : index
    %36 = vector.load %arg7[%c0_21, %c1_22, %c0_23, %c0_24] : memref<2x8x1x128xf32, #tpu.memory_space<vmem>>, vector<1x1x1x128xf32>
    %37 = vector.shape_cast %36 : vector<1x1x1x128xf32> to vector<1x128xf32>
    %38 = vector.broadcast %37 : vector<1x128xf32> to vector<256x128xf32>
    %39 = arith.addf %35, %38 : vector<256x128xf32>
    %40 = math.tanh %39 : vector<256x128xf32>
    %41 = arith.truncf %40 : vector<256x128xf32> to vector<256x128xbf16>
    %c0_25 = arith.constant 0 : index
    %c2_26 = arith.constant 2 : index
    %c0_27 = arith.constant 0 : index
    %c0_28 = arith.constant 0 : index
    %42 = vector.load %arg6[%c0_25, %c2_26, %c0_27, %c0_28] : memref<2x8x128x128xbf16, #tpu.memory_space<vmem>>, vector<1x1x128x128xbf16>
    %43 = vector.shape_cast %42 : vector<1x1x128x128xbf16> to vector<128x128xbf16>
    %cst_29 = arith.constant dense<0.000000e+00> : vector<256x128xf32>
    %44 = tpu.matmul %41, %43, %cst_29 {dimension_numbers = #tpu.dot_dimension_numbers<[1], [0], [0], [1], [0, 0, 1, 1], [], []>} : vector<256x128xbf16>, vector<128x128xbf16>, vector<256x128xf32> -> vector<256x128xf32>
    %c0_30 = arith.constant 0 : index
    %c2_31 = arith.constant 2 : index
    %c0_32 = arith.constant 0 : index
    %c0_33 = arith.constant 0 : index
    %45 = vector.load %arg7[%c0_30, %c2_31, %c0_32, %c0_33] : memref<2x8x1x128xf32, #tpu.memory_space<vmem>>, vector<1x1x1x128xf32>
    %46 = vector.shape_cast %45 : vector<1x1x1x128xf32> to vector<1x128xf32>
    %47 = vector.broadcast %46 : vector<1x128xf32> to vector<256x128xf32>
    %48 = arith.addf %44, %47 : vector<256x128xf32>
    %49 = math.tanh %48 : vector<256x128xf32>
    %50 = arith.truncf %49 : vector<256x128xf32> to vector<256x128xbf16>
    %c0_34 = arith.constant 0 : index
    %c3_35 = arith.constant 3 : index
    %c0_36 = arith.constant 0 : index
    %c0_37 = arith.constant 0 : index
    %51 = vector.load %arg6[%c0_34, %c3_35, %c0_36, %c0_37] : memref<2x8x128x128xbf16, #tpu.memory_space<vmem>>, vector<1x1x128x128xbf16>
    %52 = vector.shape_cast %51 : vector<1x1x128x128xbf16> to vector<128x128xbf16>
    %cst_38 = arith.constant dense<0.000000e+00> : vector<256x128xf32>
    %53 = tpu.matmul %50, %52, %cst_38 {dimension_numbers = #tpu.dot_dimension_numbers<[1], [0], [0], [1], [0, 0, 1, 1], [], []>} : vector<256x128xbf16>, vector<128x128xbf16>, vector<256x128xf32> -> vector<256x128xf32>
    %c0_39 = arith.constant 0 : index
    %c3_40 = arith.constant 3 : index
    %c0_41 = arith.constant 0 : index
    %c0_42 = arith.constant 0 : index
    %54 = vector.load %arg7[%c0_39, %c3_40, %c0_41, %c0_42] : memref<2x8x1x128xf32, #tpu.memory_space<vmem>>, vector<1x1x1x128xf32>
    %55 = vector.shape_cast %54 : vector<1x1x1x128xf32> to vector<1x128xf32>
    %56 = vector.broadcast %55 : vector<1x128xf32> to vector<256x128xf32>
    %57 = arith.addf %53, %56 : vector<256x128xf32>
    %58 = math.tanh %57 : vector<256x128xf32>
    %59 = arith.truncf %58 : vector<256x128xf32> to vector<256x128xbf16>
    %c0_43 = arith.constant 0 : index
    %c4 = arith.constant 4 : index
    %c0_44 = arith.constant 0 : index
    %c0_45 = arith.constant 0 : index
    %60 = vector.load %arg6[%c0_43, %c4, %c0_44, %c0_45] : memref<2x8x128x128xbf16, #tpu.memory_space<vmem>>, vector<1x1x128x128xbf16>
    %61 = vector.shape_cast %60 : vector<1x1x128x128xbf16> to vector<128x128xbf16>
    %cst_46 = arith.constant dense<0.000000e+00> : vector<256x128xf32>
    %62 = tpu.matmul %59, %61, %cst_46 {dimension_numbers = #tpu.dot_dimension_numbers<[1], [0], [0], [1], [0, 0, 1, 1], [], []>} : vector<256x128xbf16>, vector<128x128xbf16>, vector<256x128xf32> -> vector<256x128xf32>
    %c0_47 = arith.constant 0 : index
    %c4_48 = arith.constant 4 : index
    %c0_49 = arith.constant 0 : index
    %c0_50 = arith.constant 0 : index
    %63 = vector.load %arg7[%c0_47, %c4_48, %c0_49, %c0_50] : memref<2x8x1x128xf32, #tpu.memory_space<vmem>>, vector<1x1x1x128xf32>
    %64 = vector.shape_cast %63 : vector<1x1x1x128xf32> to vector<1x128xf32>
    %65 = vector.broadcast %64 : vector<1x128xf32> to vector<256x128xf32>
    %66 = arith.addf %62, %65 : vector<256x128xf32>
    %67 = math.tanh %66 : vector<256x128xf32>
    %68 = arith.truncf %67 : vector<256x128xf32> to vector<256x128xbf16>
    %c0_51 = arith.constant 0 : index
    %c5 = arith.constant 5 : index
    %c0_52 = arith.constant 0 : index
    %c0_53 = arith.constant 0 : index
    %69 = vector.load %arg6[%c0_51, %c5, %c0_52, %c0_53] : memref<2x8x128x128xbf16, #tpu.memory_space<vmem>>, vector<1x1x128x128xbf16>
    %70 = vector.shape_cast %69 : vector<1x1x128x128xbf16> to vector<128x128xbf16>
    %cst_54 = arith.constant dense<0.000000e+00> : vector<256x128xf32>
    %71 = tpu.matmul %68, %70, %cst_54 {dimension_numbers = #tpu.dot_dimension_numbers<[1], [0], [0], [1], [0, 0, 1, 1], [], []>} : vector<256x128xbf16>, vector<128x128xbf16>, vector<256x128xf32> -> vector<256x128xf32>
    %c0_55 = arith.constant 0 : index
    %c5_56 = arith.constant 5 : index
    %c0_57 = arith.constant 0 : index
    %c0_58 = arith.constant 0 : index
    %72 = vector.load %arg7[%c0_55, %c5_56, %c0_57, %c0_58] : memref<2x8x1x128xf32, #tpu.memory_space<vmem>>, vector<1x1x1x128xf32>
    %73 = vector.shape_cast %72 : vector<1x1x1x128xf32> to vector<1x128xf32>
    %74 = vector.broadcast %73 : vector<1x128xf32> to vector<256x128xf32>
    %75 = arith.addf %71, %74 : vector<256x128xf32>
    %76 = math.tanh %75 : vector<256x128xf32>
    %77 = arith.truncf %76 : vector<256x128xf32> to vector<256x128xbf16>
    %c0_59 = arith.constant 0 : index
    %c6 = arith.constant 6 : index
    %c0_60 = arith.constant 0 : index
    %c0_61 = arith.constant 0 : index
    %78 = vector.load %arg6[%c0_59, %c6, %c0_60, %c0_61] : memref<2x8x128x128xbf16, #tpu.memory_space<vmem>>, vector<1x1x128x128xbf16>
    %79 = vector.shape_cast %78 : vector<1x1x128x128xbf16> to vector<128x128xbf16>
    %cst_62 = arith.constant dense<0.000000e+00> : vector<256x128xf32>
    %80 = tpu.matmul %77, %79, %cst_62 {dimension_numbers = #tpu.dot_dimension_numbers<[1], [0], [0], [1], [0, 0, 1, 1], [], []>} : vector<256x128xbf16>, vector<128x128xbf16>, vector<256x128xf32> -> vector<256x128xf32>
    %c0_63 = arith.constant 0 : index
    %c6_64 = arith.constant 6 : index
    %c0_65 = arith.constant 0 : index
    %c0_66 = arith.constant 0 : index
    %81 = vector.load %arg7[%c0_63, %c6_64, %c0_65, %c0_66] : memref<2x8x1x128xf32, #tpu.memory_space<vmem>>, vector<1x1x1x128xf32>
    %82 = vector.shape_cast %81 : vector<1x1x1x128xf32> to vector<1x128xf32>
    %83 = vector.broadcast %82 : vector<1x128xf32> to vector<256x128xf32>
    %84 = arith.addf %80, %83 : vector<256x128xf32>
    %85 = math.tanh %84 : vector<256x128xf32>
    %86 = arith.truncf %85 : vector<256x128xf32> to vector<256x128xbf16>
    %c0_67 = arith.constant 0 : index
    %c7 = arith.constant 7 : index
    %c0_68 = arith.constant 0 : index
    %c0_69 = arith.constant 0 : index
    %87 = vector.load %arg6[%c0_67, %c7, %c0_68, %c0_69] : memref<2x8x128x128xbf16, #tpu.memory_space<vmem>>, vector<1x1x128x128xbf16>
    %88 = vector.shape_cast %87 : vector<1x1x128x128xbf16> to vector<128x128xbf16>
    %cst_70 = arith.constant dense<0.000000e+00> : vector<256x128xf32>
    %89 = tpu.matmul %86, %88, %cst_70 {dimension_numbers = #tpu.dot_dimension_numbers<[1], [0], [0], [1], [0, 0, 1, 1], [], []>} : vector<256x128xbf16>, vector<128x128xbf16>, vector<256x128xf32> -> vector<256x128xf32>
    %c0_71 = arith.constant 0 : index
    %c7_72 = arith.constant 7 : index
    %c0_73 = arith.constant 0 : index
    %c0_74 = arith.constant 0 : index
    %90 = vector.load %arg7[%c0_71, %c7_72, %c0_73, %c0_74] : memref<2x8x1x128xf32, #tpu.memory_space<vmem>>, vector<1x1x1x128xf32>
    %91 = vector.shape_cast %90 : vector<1x1x1x128xf32> to vector<1x128xf32>
    %92 = vector.broadcast %91 : vector<1x128xf32> to vector<256x128xf32>
    %93 = arith.addf %89, %92 : vector<256x128xf32>
    %94 = math.tanh %93 : vector<256x128xf32>
    %c0_75 = arith.constant 0 : index
    %c0_76 = arith.constant 0 : index
    %c0_77 = arith.constant 0 : index
    %95 = vector.load %arg8[%c0_75, %c0_76, %c0_77] : memref<3x1x128xf32, #tpu.memory_space<vmem>>, vector<1x1x128xf32>
    %96 = vector.shape_cast %95 : vector<1x1x128xf32> to vector<1x128xf32>
    %97 = vector.broadcast %96 : vector<1x128xf32> to vector<256x128xf32>
    %98 = arith.mulf %94, %97 : vector<256x128xf32>
    %cst_78 = arith.constant dense<0.000000e+00> : vector<256xf32>
    %99 = vector.multi_reduction <add>, %98, %cst_78 [1] : vector<256x128xf32> to vector<256xf32>
    %100 = vector.shape_cast %99 : vector<256xf32> to vector<256x1xf32>
    %c0_79 = arith.constant 0 : index
    %101 = memref.load %arg2[%c0_79] : memref<3xf32, #tpu.memory_space<smem>>
    %102 = vector.broadcast %101 : f32 to vector<256x1xf32>
    %103 = arith.addf %100, %102 : vector<256x1xf32>
    %104 = math.exp %103 : vector<256x1xf32>
    %cst_80 = arith.constant 0.000000e+00 : f32
    %105 = vector.broadcast %cst_80 : f32 to vector<256x1xf32>
    %106 = arith.subf %105, %104 : vector<256x1xf32>
    %cst_81 = arith.constant 0.000000e+00 : f32
    %107 = vector.broadcast %cst_81 : f32 to vector<256x1xf32>
    %108 = arith.subf %107, %103 : vector<256x1xf32>
    %c1_82 = arith.constant 1 : index
    %c0_83 = arith.constant 0 : index
    %c0_84 = arith.constant 0 : index
    %109 = vector.load %arg4[%c1_82, %c0_83, %c0_84] : memref<2x2x128xf32, #tpu.memory_space<vmem>>, vector<1x2x128xf32>
    %110 = vector.shape_cast %109 : vector<1x2x128xf32> to vector<2x128xf32>
    %111 = vector.extract_strided_slice %110 {offsets = [0, 0], sizes = [1, 128], strides = [1, 1]} : vector<2x128xf32> to vector<1x128xf32>
    %112 = vector.broadcast %108 : vector<256x1xf32> to vector<256x128xf32>
    %113 = vector.broadcast %111 : vector<1x128xf32> to vector<256x128xf32>
    %114 = arith.mulf %112, %113 : vector<256x128xf32>
    %c1_85 = arith.constant 1 : index
    %c0_86 = arith.constant 0 : index
    %c0_87 = arith.constant 0 : index
    %115 = vector.load %arg5[%c1_85, %c0_86, %c0_87] : memref<2x1x128xf32, #tpu.memory_space<vmem>>, vector<1x1x128xf32>
    %116 = vector.shape_cast %115 : vector<1x1x128xf32> to vector<1x128xf32>
    %117 = vector.broadcast %116 : vector<1x128xf32> to vector<256x128xf32>
    %118 = arith.addf %114, %117 : vector<256x128xf32>
    %119 = math.tanh %118 : vector<256x128xf32>
    %120 = arith.truncf %119 : vector<256x128xf32> to vector<256x128xbf16>
    %c1_88 = arith.constant 1 : index
    %c0_89 = arith.constant 0 : index
    %c0_90 = arith.constant 0 : index
    %c0_91 = arith.constant 0 : index
    %121 = vector.load %arg6[%c1_88, %c0_89, %c0_90, %c0_91] : memref<2x8x128x128xbf16, #tpu.memory_space<vmem>>, vector<1x1x128x128xbf16>
    %122 = vector.shape_cast %121 : vector<1x1x128x128xbf16> to vector<128x128xbf16>
    %cst_92 = arith.constant dense<0.000000e+00> : vector<256x128xf32>
    %123 = tpu.matmul %120, %122, %cst_92 {dimension_numbers = #tpu.dot_dimension_numbers<[1], [0], [0], [1], [0, 0, 1, 1], [], []>} : vector<256x128xbf16>, vector<128x128xbf16>, vector<256x128xf32> -> vector<256x128xf32>
    %c1_93 = arith.constant 1 : index
    %c0_94 = arith.constant 0 : index
    %c0_95 = arith.constant 0 : index
    %c0_96 = arith.constant 0 : index
    %124 = vector.load %arg7[%c1_93, %c0_94, %c0_95, %c0_96] : memref<2x8x1x128xf32, #tpu.memory_space<vmem>>, vector<1x1x1x128xf32>
    %125 = vector.shape_cast %124 : vector<1x1x1x128xf32> to vector<1x128xf32>
    %126 = vector.broadcast %125 : vector<1x128xf32> to vector<256x128xf32>
    %127 = arith.addf %123, %126 : vector<256x128xf32>
    %128 = math.tanh %127 : vector<256x128xf32>
    %129 = arith.truncf %128 : vector<256x128xf32> to vector<256x128xbf16>
    %c1_97 = arith.constant 1 : index
    %c1_98 = arith.constant 1 : index
    %c0_99 = arith.constant 0 : index
    %c0_100 = arith.constant 0 : index
    %130 = vector.load %arg6[%c1_97, %c1_98, %c0_99, %c0_100] : memref<2x8x128x128xbf16, #tpu.memory_space<vmem>>, vector<1x1x128x128xbf16>
    %131 = vector.shape_cast %130 : vector<1x1x128x128xbf16> to vector<128x128xbf16>
    %cst_101 = arith.constant dense<0.000000e+00> : vector<256x128xf32>
    %132 = tpu.matmul %129, %131, %cst_101 {dimension_numbers = #tpu.dot_dimension_numbers<[1], [0], [0], [1], [0, 0, 1, 1], [], []>} : vector<256x128xbf16>, vector<128x128xbf16>, vector<256x128xf32> -> vector<256x128xf32>
    %c1_102 = arith.constant 1 : index
    %c1_103 = arith.constant 1 : index
    %c0_104 = arith.constant 0 : index
    %c0_105 = arith.constant 0 : index
    %133 = vector.load %arg7[%c1_102, %c1_103, %c0_104, %c0_105] : memref<2x8x1x128xf32, #tpu.memory_space<vmem>>, vector<1x1x1x128xf32>
    %134 = vector.shape_cast %133 : vector<1x1x1x128xf32> to vector<1x128xf32>
    %135 = vector.broadcast %134 : vector<1x128xf32> to vector<256x128xf32>
    %136 = arith.addf %132, %135 : vector<256x128xf32>
    %137 = math.tanh %136 : vector<256x128xf32>
    %138 = arith.truncf %137 : vector<256x128xf32> to vector<256x128xbf16>
    %c1_106 = arith.constant 1 : index
    %c2_107 = arith.constant 2 : index
    %c0_108 = arith.constant 0 : index
    %c0_109 = arith.constant 0 : index
    %139 = vector.load %arg6[%c1_106, %c2_107, %c0_108, %c0_109] : memref<2x8x128x128xbf16, #tpu.memory_space<vmem>>, vector<1x1x128x128xbf16>
    %140 = vector.shape_cast %139 : vector<1x1x128x128xbf16> to vector<128x128xbf16>
    %cst_110 = arith.constant dense<0.000000e+00> : vector<256x128xf32>
    %141 = tpu.matmul %138, %140, %cst_110 {dimension_numbers = #tpu.dot_dimension_numbers<[1], [0], [0], [1], [0, 0, 1, 1], [], []>} : vector<256x128xbf16>, vector<128x128xbf16>, vector<256x128xf32> -> vector<256x128xf32>
    %c1_111 = arith.constant 1 : index
    %c2_112 = arith.constant 2 : index
    %c0_113 = arith.constant 0 : index
    %c0_114 = arith.constant 0 : index
    %142 = vector.load %arg7[%c1_111, %c2_112, %c0_113, %c0_114] : memref<2x8x1x128xf32, #tpu.memory_space<vmem>>, vector<1x1x1x128xf32>
    %143 = vector.shape_cast %142 : vector<1x1x1x128xf32> to vector<1x128xf32>
    %144 = vector.broadcast %143 : vector<1x128xf32> to vector<256x128xf32>
    %145 = arith.addf %141, %144 : vector<256x128xf32>
    %146 = math.tanh %145 : vector<256x128xf32>
    %147 = arith.truncf %146 : vector<256x128xf32> to vector<256x128xbf16>
    %c1_115 = arith.constant 1 : index
    %c3_116 = arith.constant 3 : index
    %c0_117 = arith.constant 0 : index
    %c0_118 = arith.constant 0 : index
    %148 = vector.load %arg6[%c1_115, %c3_116, %c0_117, %c0_118] : memref<2x8x128x128xbf16, #tpu.memory_space<vmem>>, vector<1x1x128x128xbf16>
    %149 = vector.shape_cast %148 : vector<1x1x128x128xbf16> to vector<128x128xbf16>
    %cst_119 = arith.constant dense<0.000000e+00> : vector<256x128xf32>
    %150 = tpu.matmul %147, %149, %cst_119 {dimension_numbers = #tpu.dot_dimension_numbers<[1], [0], [0], [1], [0, 0, 1, 1], [], []>} : vector<256x128xbf16>, vector<128x128xbf16>, vector<256x128xf32> -> vector<256x128xf32>
    %c1_120 = arith.constant 1 : index
    %c3_121 = arith.constant 3 : index
    %c0_122 = arith.constant 0 : index
    %c0_123 = arith.constant 0 : index
    %151 = vector.load %arg7[%c1_120, %c3_121, %c0_122, %c0_123] : memref<2x8x1x128xf32, #tpu.memory_space<vmem>>, vector<1x1x1x128xf32>
    %152 = vector.shape_cast %151 : vector<1x1x1x128xf32> to vector<1x128xf32>
    %153 = vector.broadcast %152 : vector<1x128xf32> to vector<256x128xf32>
    %154 = arith.addf %150, %153 : vector<256x128xf32>
    %155 = math.tanh %154 : vector<256x128xf32>
    %156 = arith.truncf %155 : vector<256x128xf32> to vector<256x128xbf16>
    %c1_124 = arith.constant 1 : index
    %c4_125 = arith.constant 4 : index
    %c0_126 = arith.constant 0 : index
    %c0_127 = arith.constant 0 : index
    %157 = vector.load %arg6[%c1_124, %c4_125, %c0_126, %c0_127] : memref<2x8x128x128xbf16, #tpu.memory_space<vmem>>, vector<1x1x128x128xbf16>
    %158 = vector.shape_cast %157 : vector<1x1x128x128xbf16> to vector<128x128xbf16>
    %cst_128 = arith.constant dense<0.000000e+00> : vector<256x128xf32>
    %159 = tpu.matmul %156, %158, %cst_128 {dimension_numbers = #tpu.dot_dimension_numbers<[1], [0], [0], [1], [0, 0, 1, 1], [], []>} : vector<256x128xbf16>, vector<128x128xbf16>, vector<256x128xf32> -> vector<256x128xf32>
    %c1_129 = arith.constant 1 : index
    %c4_130 = arith.constant 4 : index
    %c0_131 = arith.constant 0 : index
    %c0_132 = arith.constant 0 : index
    %160 = vector.load %arg7[%c1_129, %c4_130, %c0_131, %c0_132] : memref<2x8x1x128xf32, #tpu.memory_space<vmem>>, vector<1x1x1x128xf32>
    %161 = vector.shape_cast %160 : vector<1x1x1x128xf32> to vector<1x128xf32>
    %162 = vector.broadcast %161 : vector<1x128xf32> to vector<256x128xf32>
    %163 = arith.addf %159, %162 : vector<256x128xf32>
    %164 = math.tanh %163 : vector<256x128xf32>
    %165 = arith.truncf %164 : vector<256x128xf32> to vector<256x128xbf16>
    %c1_133 = arith.constant 1 : index
    %c5_134 = arith.constant 5 : index
    %c0_135 = arith.constant 0 : index
    %c0_136 = arith.constant 0 : index
    %166 = vector.load %arg6[%c1_133, %c5_134, %c0_135, %c0_136] : memref<2x8x128x128xbf16, #tpu.memory_space<vmem>>, vector<1x1x128x128xbf16>
    %167 = vector.shape_cast %166 : vector<1x1x128x128xbf16> to vector<128x128xbf16>
    %cst_137 = arith.constant dense<0.000000e+00> : vector<256x128xf32>
    %168 = tpu.matmul %165, %167, %cst_137 {dimension_numbers = #tpu.dot_dimension_numbers<[1], [0], [0], [1], [0, 0, 1, 1], [], []>} : vector<256x128xbf16>, vector<128x128xbf16>, vector<256x128xf32> -> vector<256x128xf32>
    %c1_138 = arith.constant 1 : index
    %c5_139 = arith.constant 5 : index
    %c0_140 = arith.constant 0 : index
    %c0_141 = arith.constant 0 : index
    %169 = vector.load %arg7[%c1_138, %c5_139, %c0_140, %c0_141] : memref<2x8x1x128xf32, #tpu.memory_space<vmem>>, vector<1x1x1x128xf32>
    %170 = vector.shape_cast %169 : vector<1x1x1x128xf32> to vector<1x128xf32>
    %171 = vector.broadcast %170 : vector<1x128xf32> to vector<256x128xf32>
    %172 = arith.addf %168, %171 : vector<256x128xf32>
    %173 = math.tanh %172 : vector<256x128xf32>
    %174 = arith.truncf %173 : vector<256x128xf32> to vector<256x128xbf16>
    %c1_142 = arith.constant 1 : index
    %c6_143 = arith.constant 6 : index
    %c0_144 = arith.constant 0 : index
    %c0_145 = arith.constant 0 : index
    %175 = vector.load %arg6[%c1_142, %c6_143, %c0_144, %c0_145] : memref<2x8x128x128xbf16, #tpu.memory_space<vmem>>, vector<1x1x128x128xbf16>
    %176 = vector.shape_cast %175 : vector<1x1x128x128xbf16> to vector<128x128xbf16>
    %cst_146 = arith.constant dense<0.000000e+00> : vector<256x128xf32>
    %177 = tpu.matmul %174, %176, %cst_146 {dimension_numbers = #tpu.dot_dimension_numbers<[1], [0], [0], [1], [0, 0, 1, 1], [], []>} : vector<256x128xbf16>, vector<128x128xbf16>, vector<256x128xf32> -> vector<256x128xf32>
    %c1_147 = arith.constant 1 : index
    %c6_148 = arith.constant 6 : index
    %c0_149 = arith.constant 0 : index
    %c0_150 = arith.constant 0 : index
    %178 = vector.load %arg7[%c1_147, %c6_148, %c0_149, %c0_150] : memref<2x8x1x128xf32, #tpu.memory_space<vmem>>, vector<1x1x1x128xf32>
    %179 = vector.shape_cast %178 : vector<1x1x1x128xf32> to vector<1x128xf32>
    %180 = vector.broadcast %179 : vector<1x128xf32> to vector<256x128xf32>
    %181 = arith.addf %177, %180 : vector<256x128xf32>
    %182 = math.tanh %181 : vector<256x128xf32>
    %183 = arith.truncf %182 : vector<256x128xf32> to vector<256x128xbf16>
    %c1_151 = arith.constant 1 : index
    %c7_152 = arith.constant 7 : index
    %c0_153 = arith.constant 0 : index
    %c0_154 = arith.constant 0 : index
    %184 = vector.load %arg6[%c1_151, %c7_152, %c0_153, %c0_154] : memref<2x8x128x128xbf16, #tpu.memory_space<vmem>>, vector<1x1x128x128xbf16>
    %185 = vector.shape_cast %184 : vector<1x1x128x128xbf16> to vector<128x128xbf16>
    %cst_155 = arith.constant dense<0.000000e+00> : vector<256x128xf32>
    %186 = tpu.matmul %183, %185, %cst_155 {dimension_numbers = #tpu.dot_dimension_numbers<[1], [0], [0], [1], [0, 0, 1, 1], [], []>} : vector<256x128xbf16>, vector<128x128xbf16>, vector<256x128xf32> -> vector<256x128xf32>
    %c1_156 = arith.constant 1 : index
    %c7_157 = arith.constant 7 : index
    %c0_158 = arith.constant 0 : index
    %c0_159 = arith.constant 0 : index
    %187 = vector.load %arg7[%c1_156, %c7_157, %c0_158, %c0_159] : memref<2x8x1x128xf32, #tpu.memory_space<vmem>>, vector<1x1x1x128xf32>
    %188 = vector.shape_cast %187 : vector<1x1x1x128xf32> to vector<1x128xf32>
    %189 = vector.broadcast %188 : vector<1x128xf32> to vector<256x128xf32>
    %190 = arith.addf %186, %189 : vector<256x128xf32>
    %191 = math.tanh %190 : vector<256x128xf32>
    %c1_160 = arith.constant 1 : index
    %c0_161 = arith.constant 0 : index
    %c0_162 = arith.constant 0 : index
    %192 = vector.load %arg8[%c1_160, %c0_161, %c0_162] : memref<3x1x128xf32, #tpu.memory_space<vmem>>, vector<1x1x128xf32>
    %193 = vector.shape_cast %192 : vector<1x1x128xf32> to vector<1x128xf32>
    %194 = vector.broadcast %193 : vector<1x128xf32> to vector<256x128xf32>
    %195 = arith.mulf %191, %194 : vector<256x128xf32>
    %cst_163 = arith.constant dense<0.000000e+00> : vector<256xf32>
    %196 = vector.multi_reduction <add>, %195, %cst_163 [1] : vector<256x128xf32> to vector<256xf32>
    %197 = vector.shape_cast %196 : vector<256xf32> to vector<256x1xf32>
    %c1_164 = arith.constant 1 : index
    %198 = memref.load %arg2[%c1_164] : memref<3xf32, #tpu.memory_space<smem>>
    %199 = vector.broadcast %198 : f32 to vector<256x1xf32>
    %200 = arith.addf %197, %199 : vector<256x1xf32>
    %c2_165 = arith.constant 2 : index
    %c0_166 = arith.constant 0 : index
    %c0_167 = arith.constant 0 : index
    %201 = vector.load %arg8[%c2_165, %c0_166, %c0_167] : memref<3x1x128xf32, #tpu.memory_space<vmem>>, vector<1x1x128xf32>
    %202 = vector.shape_cast %201 : vector<1x1x128xf32> to vector<1x128xf32>
    %203 = vector.broadcast %202 : vector<1x128xf32> to vector<256x128xf32>
    %204 = arith.mulf %191, %203 : vector<256x128xf32>
    %cst_168 = arith.constant dense<0.000000e+00> : vector<256xf32>
    %205 = vector.multi_reduction <add>, %204, %cst_168 [1] : vector<256x128xf32> to vector<256xf32>
    %206 = vector.shape_cast %205 : vector<256xf32> to vector<256x1xf32>
    %c2_169 = arith.constant 2 : index
    %207 = memref.load %arg2[%c2_169] : memref<3xf32, #tpu.memory_space<smem>>
    %208 = vector.broadcast %207 : f32 to vector<256x1xf32>
    %209 = arith.addf %206, %208 : vector<256x1xf32>
    %cst_170 = arith.constant 0.000000e+00 : f32
    %210 = arith.subf %cst_170, %0 : f32
    %211 = vector.broadcast %210 : f32 to vector<256x1xf32>
    %212 = arith.mulf %211, %200 : vector<256x1xf32>
    %213 = math.exp %212 : vector<256x1xf32>
    %cst_171 = arith.constant 1.000000e+00 : f32
    %214 = vector.broadcast %cst_171 : f32 to vector<256x1xf32>
    %215 = arith.addf %214, %213 : vector<256x1xf32>
    %216 = tpu.reciprocal %215 {approx = true} : vector<256x1xf32> -> vector<256x1xf32>
    %217 = arith.mulf %216, %216 : vector<256x1xf32>
    %218 = arith.mulf %217, %217 : vector<256x1xf32>
    %219 = vector.broadcast %3 : f32 to vector<256x1xf32>
    %220 = arith.mulf %219, %218 : vector<256x1xf32>
    %cst_172 = arith.constant 0.000000e+00 : f32
    %221 = arith.subf %cst_172, %1 : f32
    %222 = vector.broadcast %221 : f32 to vector<256x1xf32>
    %223 = arith.mulf %222, %209 : vector<256x1xf32>
    %224 = math.exp %223 : vector<256x1xf32>
    %cst_173 = arith.constant 1.000000e+00 : f32
    %225 = vector.broadcast %cst_173 : f32 to vector<256x1xf32>
    %226 = arith.addf %225, %224 : vector<256x1xf32>
    %227 = tpu.reciprocal %226 {approx = true} : vector<256x1xf32> -> vector<256x1xf32>
    %228 = vector.broadcast %2 : f32 to vector<256x1xf32>
    %229 = arith.mulf %228, %227 : vector<256x1xf32>
    %230 = tpu.iota {dimensions = array<i32: 1>} : vector<256x128xi32>
    %c0_i32 = arith.constant 0 : i32
    %231 = vector.broadcast %c0_i32 : i32 to vector<256x128xi32>
    %232 = arith.cmpi eq, %230, %231 : vector<256x128xi32>
    %233 = arith.extui %232 : vector<256x128xi1> to vector<256x128xi32>
    %234 = arith.sitofp %233 : vector<256x128xi32> to vector<256x128xf32>
    %235 = vector.broadcast %106 : vector<256x1xf32> to vector<256x128xf32>
    %236 = arith.mulf %235, %234 : vector<256x128xf32>
    %c1_i32 = arith.constant 1 : i32
    %237 = vector.broadcast %c1_i32 : i32 to vector<256x128xi32>
    %238 = arith.cmpi eq, %230, %237 : vector<256x128xi32>
    %239 = arith.extui %238 : vector<256x128xi1> to vector<256x128xi32>
    %240 = arith.sitofp %239 : vector<256x128xi32> to vector<256x128xf32>
    %241 = vector.broadcast %103 : vector<256x1xf32> to vector<256x128xf32>
    %242 = arith.mulf %241, %240 : vector<256x128xf32>
    %243 = arith.addf %236, %242 : vector<256x128xf32>
    %c2_i32 = arith.constant 2 : i32
    %244 = vector.broadcast %c2_i32 : i32 to vector<256x128xi32>
    %245 = arith.cmpi eq, %230, %244 : vector<256x128xi32>
    %246 = arith.extui %245 : vector<256x128xi1> to vector<256x128xi32>
    %247 = arith.sitofp %246 : vector<256x128xi32> to vector<256x128xf32>
    %248 = vector.broadcast %229 : vector<256x1xf32> to vector<256x128xf32>
    %249 = arith.mulf %248, %247 : vector<256x128xf32>
    %250 = arith.addf %243, %249 : vector<256x128xf32>
    %c3_i32 = arith.constant 3 : i32
    %251 = vector.broadcast %c3_i32 : i32 to vector<256x128xi32>
    %252 = arith.cmpi eq, %230, %251 : vector<256x128xi32>
    %253 = arith.extui %252 : vector<256x128xi1> to vector<256x128xi32>
    %254 = arith.sitofp %253 : vector<256x128xi32> to vector<256x128xf32>
    %255 = vector.broadcast %220 : vector<256x1xf32> to vector<256x128xf32>
    %256 = arith.mulf %255, %254 : vector<256x128xf32>
    %257 = arith.addf %250, %256 : vector<256x128xf32>
    %c0_174 = arith.constant 0 : index
    %c0_175 = arith.constant 0 : index
    %258 = vector.load %arg9[%c0_174, %c0_175] : memref<256x128xf32, #tpu.memory_space<vmem>>, vector<256x128xf32>
    tpu.vector_store %arg9[%c0_174, %c0_175], %257 {strides = array<i32>} : memref<256x128xf32, #tpu.memory_space<vmem>>, vector<256x128xf32>,
    return
  }
  func.func @transform_0(%arg0: i32) -> i32 {
    %c0_i32 = arith.constant 0 : i32
    %c0_i32_0 = arith.constant 0 : i32
    return %c0_i32 : i32
  }
  func.func @transform_1(%arg0: i32) -> i32 {
    %c0_i32 = arith.constant 0 : i32
    %c0_i32_0 = arith.constant 0 : i32
    return %c0_i32 : i32
  }
  func.func @transform_2(%arg0: i32) -> (i32, i32) {
    %c0_i32 = arith.constant 0 : i32
    %c0_i32_0 = arith.constant 0 : i32
    return %arg0, %c0_i32 : i32, i32
  }
  func.func @transform_3(%arg0: i32) -> (i32, i32, i32) {
    %c0_i32 = arith.constant 0 : i32
    %c0_i32_0 = arith.constant 0 : i32
    %c0_i32_1 = arith.constant 0 : i32
    %c0_i32_2 = arith.constant 0 : i32
    return %c0_i32, %c0_i32_0, %c0_i32_1 : i32, i32, i32
  }
  func.func @transform_4(%arg0: i32) -> (i32, i32, i32) {
    %c0_i32 = arith.constant 0 : i32
    %c0_i32_0 = arith.constant 0 : i32
    %c0_i32_1 = arith.constant 0 : i32
    %c0_i32_2 = arith.constant 0 : i32
    return %c0_i32, %c0_i32_0, %c0_i32_1 : i32, i32, i32
  }
  func.func @transform_5(%arg0: i32) -> (i32, i32, i32, i32) {
    %c0_i32 = arith.constant 0 : i32
    %c0_i32_0 = arith.constant 0 : i32
    %c0_i32_1 = arith.constant 0 : i32
    %c0_i32_2 = arith.constant 0 : i32
    %c0_i32_3 = arith.constant 0 : i32
    return %c0_i32, %c0_i32_0, %c0_i32_1, %c0_i32_2 : i32, i32, i32, i32
  }
  func.func @transform_6(%arg0: i32) -> (i32, i32, i32, i32) {
    %c0_i32 = arith.constant 0 : i32
    %c0_i32_0 = arith.constant 0 : i32
    %c0_i32_1 = arith.constant 0 : i32
    %c0_i32_2 = arith.constant 0 : i32
    %c0_i32_3 = arith.constant 0 : i32
    return %c0_i32, %c0_i32_0, %c0_i32_1, %c0_i32_2 : i32, i32, i32, i32
  }
  func.func @transform_7(%arg0: i32) -> (i32, i32, i32) {
    %c0_i32 = arith.constant 0 : i32
    %c0_i32_0 = arith.constant 0 : i32
    %c0_i32_1 = arith.constant 0 : i32
    %c0_i32_2 = arith.constant 0 : i32
    return %c0_i32, %c0_i32_0, %c0_i32_1 : i32, i32, i32
  }
  func.func @transform_8(%arg0: i32) -> (i32, i32) {
    %c0_i32 = arith.constant 0 : i32
    %c0_i32_0 = arith.constant 0 : i32
    return %arg0, %c0_i32 : i32, i32
  }
}

</mosaic_0001>

<llo_original>
// kernel: tpu_custom_call.1
$region0: #{tpu_custom_call.1}
  #allocation0 [shape = 'u32[]', space=smem, size = 0x4, offset = 0x4, fixed_abs, tag = 'smem constant byte address 0x4 - core index']
  #allocation1 [shape = 'u32[72,128]{1,0:T(1,128)}', space=vmem, size = 0x9000, scoped, tag = 'internal scratch']
  %s0 = inlined_call_operand.vmem [shape: f32[4], index: 0, kind: input, shape index: {}]
  %s1 = inlined_call_operand.vmem [shape: f32[3], index: 1, kind: input, shape index: {}]
  %s2 = inlined_call_operand.vmem [shape: f32[512,2], index: 2, kind: input, shape index: {}]
  %s3 = inlined_call_operand.vmem [shape: f32[2,2,128], index: 3, kind: input, shape index: {}]
  %s4 = inlined_call_operand.vmem [shape: f32[2,1,128], index: 4, kind: input, shape index: {}]
  %s5 = inlined_call_operand.hbm [shape: bf16[2,8,128,128], index: 5, kind: input, shape index: {}]
  %s6 = inlined_call_operand.vmem [shape: f32[2,8,1,128], index: 6, kind: input, shape index: {}]
  %s7 = inlined_call_operand.vmem [shape: f32[3,1,128], index: 7, kind: input, shape index: {}]
  %s8 = inlined_call_operand.hbm [shape: f32[512,128], index: 8, kind: output, shape index: {}]
  %s9 = sld [smem:[#allocation0]]
  $region77: #{tpu_custom_call.1} parent=0
    _
  %s11 = ssub.s32 1, %s9
  %s12 = scalar_select 0, %s11, %s9
  $region1: #{tpu_custom_call.1} parent=0
    #allocation2 [shape = 'u8[512]{0}', space=smem, size = 0x200, scoped, tag = 'input window, operand 0, single buffered']
    #allocation3 [shape = 's32[2]{0}', space=sflag, size = 0x8, scoped, tag = 'scoped memory for tpu_custom_call.1']
    #allocation4 [shape = 's32[2]{0}', space=sflag, size = 0x8, scoped, tag = 'scoped memory for tpu_custom_call.1']
    #allocation5 [shape = 's32[2]{0}', space=sflag, size = 0x8, scoped, tag = 'scoped memory for tpu_custom_call.1']
    #allocation6 [shape = 'u8[512]{0}', space=smem, size = 0x200, scoped, tag = 'input window, operand 1, single buffered']
    #allocation7 [shape = 's32[1]{0}', space=sflag, size = 0x4, scoped, tag = 'scoped memory for tpu_custom_call.1']
    #allocation8 [shape = 'u8[524288]{0}', space=vmem, size = 0x80000, scoped, tag = 'input window, operand 5, single buffered']
    #allocation9 [shape = 'u8[262144]{0}', space=vmem, size = 0x40000, scoped, tag = 'output window, operand 0']
    %13 = vsyncpa [#allocation5], 0
    %14 = vsyncpa [#allocation7], 0
    %15 = vsyncpa [#allocation3], 0
    %16 = vsyncpa [#allocation4], 0
    %s17 = scalar_lea.sflag [#allocation4], 1
    %18 = vsyncpa %s17, 0
    loop: start=0, step=1, limit=4
    $region2: #{tpu_custom_call.1} parent=1 // loop_pre_header
      _
    $region3: #{tpu_custom_call.1} parent=1 // loop_header
      %s20 = sphi 0, %s24
      %p21 = scmp.ge.s32.totalorder %s20, 4
      %s28 = sphi 0, %s28
      %s30 = sphi 0, %s28
      %s31 = sphi 0, %s30
      %s45 = sphi 0, %s31
      %s49 = sphi 0, %s49
      %s51 = sphi 0, %s49
      %s52 = sphi 0, %s51
      %s66 = sphi 0, %s52
      %s72 = sphi 0, %s74
      %s75 = sphi 0, %s72
      %s76 = sphi 0, %s75
      %s92 = sphi 0, %s76
      %s96 = sphi 0, %s96
      %s98 = sphi 0, %s96
      %s99 = sphi 0, %s98
      %s113 = sphi 0, %s99
      %s117 = sphi 0, %s117
      %s119 = sphi 0, %s117
      %s120 = sphi 0, %s119
      %s134 = sphi 0, %s120
      %s138 = sphi 0, %s138
      %s140 = sphi 0, %s138
      %s141 = sphi 0, %s140
      %s155 = sphi 0, %s141
      %s159 = sphi 0, %s159
      %s161 = sphi 0, %s159
      %s162 = sphi 0, %s161
      %s176 = sphi 0, %s162
      %s180 = sphi 0, %s180
      %s182 = sphi 0, %s180
      %s183 = sphi 0, %s182
      %s197 = sphi 0, %s183
      %s203 = sphi 0, %s205
      %s206 = sphi 0, %s203
      %s207 = sphi 0, %s206
      %s223 = sphi 0, %s207
    $region4: #{tpu_custom_call.1} parent=1 // loop_header_branch
      %23 = sbr.rel (%p21) target = $region8
    $region5: #{tpu_custom_call.1} parent=1 // loop_body
      %s25 = ssub.s32 %s20, 1
      %s26 = ssub.s32 %s20, 2
      %s27 = sadd.s32 %s20, 1
      %s29 = sadd.s32 %s28, 1
      %p32 = scmp.eq.s32.totalorder %s20, 1
      %p33 = scmp.ne.s32.totalorder %s28, %s30
      %p34 = scmp.eq.s32.totalorder %s20, 0
      %p35 = por %p33, %p34
      %p36 = scmp.ne.s32.totalorder %s28, %s30
      %p37 = scmp.eq.s32.totalorder %s25, 1
      %p38 = por %p36, %p37
      %p39 = scmp.ne.s32.totalorder %s30, %s31
      %p40 = scmp.eq.s32.totalorder %s25, 0
      %p41 = por %p39, %p40
      %p42 = scmp.ne.s32.totalorder %s30, %s31
      %p43 = scmp.eq.s32.totalorder %s26, 1
      %p44 = por %p42, %p43
      %p46 = scmp.ne.s32.totalorder %s31, %s45
      %p47 = scmp.eq.s32.totalorder %s26, 0
      %p48 = por %p46, %p47
      %s50 = sadd.s32 %s49, 1
      %p53 = scmp.eq.s32.totalorder %s20, 1
      %p54 = scmp.ne.s32.totalorder %s49, %s51
      %p55 = scmp.eq.s32.totalorder %s20, 0
      %p56 = por %p54, %p55
      %p57 = scmp.ne.s32.totalorder %s49, %s51
      %p58 = scmp.eq.s32.totalorder %s25, 1
      %p59 = por %p57, %p58
      %p60 = scmp.ne.s32.totalorder %s51, %s52
      %p61 = scmp.eq.s32.totalorder %s25, 0
      %p62 = por %p60, %p61
      %p63 = scmp.ne.s32.totalorder %s51, %s52
      %p64 = scmp.eq.s32.totalorder %s26, 1
      %p65 = por %p63, %p64
      %p67 = scmp.ne.s32.totalorder %s52, %s66
      %p68 = scmp.eq.s32.totalorder %s26, 0
      %p69 = por %p67, %p68
      %s70 = ssub.s32 %s20, %s27
      %p71 = scmp.eq.s32.totalorder %s70, 0
      %s73 = sadd.s32 %s72, 1
      %s74 = scalar_select %p71, %s72, %s73
      %p77 = pneg %p71
      %p78 = scmp.eq.s32.totalorder %s20, 1
      %p79 = por %p77, %p78
      %p80 = scmp.ne.s32.totalorder %s72, %s75
      %p81 = scmp.eq.s32.totalorder %s20, 0
      %p82 = por %p80, %p81
      %p83 = scmp.ne.s32.totalorder %s72, %s75
      %p84 = scmp.eq.s32.totalorder %s25, 1
      %p85 = por %p83, %p84
      %p86 = scmp.ne.s32.totalorder %s75, %s76
      %p87 = scmp.eq.s32.totalorder %s25, 0
      %p88 = por %p86, %p87
      %p89 = scmp.ne.s32.totalorder %s75, %s76
      %p90 = scmp.eq.s32.totalorder %s26, 1
      %p91 = por %p89, %p90
      %p93 = scmp.ne.s32.totalorder %s76, %s92
      %p94 = scmp.eq.s32.totalorder %s26, 0
      %p95 = por %p93, %p94
      %s97 = sadd.s32 %s96, 1
      %p100 = scmp.eq.s32.totalorder %s20, 1
      %p101 = scmp.ne.s32.totalorder %s96, %s98
      %p102 = scmp.eq.s32.totalorder %s20, 0
      %p103 = por %p101, %p102
      %p104 = scmp.ne.s32.totalorder %s96, %s98
      %p105 = scmp.eq.s32.totalorder %s25, 1
      %p106 = por %p104, %p105
      %p107 = scmp.ne.s32.totalorder %s98, %s99
      %p108 = scmp.eq.s32.totalorder %s25, 0
      %p109 = por %p107, %p108
      %p110 = scmp.ne.s32.totalorder %s98, %s99
      %p111 = scmp.eq.s32.totalorder %s26, 1
      %p112 = por %p110, %p111
      %p114 = scmp.ne.s32.totalorder %s99, %s113
      %p115 = scmp.eq.s32.totalorder %s26, 0
      %p116 = por %p114, %p115
      %s118 = sadd.s32 %s117, 1
      %p121 = scmp.eq.s32.totalorder %s20, 1
      %p122 = scmp.ne.s32.totalorder %s117, %s119
      %p123 = scmp.eq.s32.totalorder %s20, 0
      %p124 = por %p122, %p123
      %p125 = scmp.ne.s32.totalorder %s117, %s119
      %p126 = scmp.eq.s32.totalorder %s25, 1
      %p127 = por %p125, %p126
      %p128 = scmp.ne.s32.totalorder %s119, %s120
      %p129 = scmp.eq.s32.totalorder %s25, 0
      %p130 = por %p128, %p129
      %p131 = scmp.ne.s32.totalorder %s119, %s120
      %p132 = scmp.eq.s32.totalorder %s26, 1
      %p133 = por %p131, %p132
      %p135 = scmp.ne.s32.totalorder %s120, %s134
      %p136 = scmp.eq.s32.totalorder %s26, 0
      %p137 = por %p135, %p136
      %s139 = sadd.s32 %s138, 1
      %p142 = scmp.eq.s32.totalorder %s20, 1
      %p143 = scmp.ne.s32.totalorder %s138, %s140
      %p144 = scmp.eq.s32.totalorder %s20, 0
      %p145 = por %p143, %p144
      %p146 = scmp.ne.s32.totalorder %s138, %s140
      %p147 = scmp.eq.s32.totalorder %s25, 1
      %p148 = por %p146, %p147
      %p149 = scmp.ne.s32.totalorder %s140, %s141
      %p150 = scmp.eq.s32.totalorder %s25, 0
      %p151 = por %p149, %p150
      %p152 = scmp.ne.s32.totalorder %s140, %s141
      %p153 = scmp.eq.s32.totalorder %s26, 1
      %p154 = por %p152, %p153
      %p156 = scmp.ne.s32.totalorder %s141, %s155
      %p157 = scmp.eq.s32.totalorder %s26, 0
      %p158 = por %p156, %p157
      %s160 = sadd.s32 %s159, 1
      %p163 = scmp.eq.s32.totalorder %s20, 1
      %p164 = scmp.ne.s32.totalorder %s159, %s161
      %p165 = scmp.eq.s32.totalorder %s20, 0
      %p166 = por %p164, %p165
      %p167 = scmp.ne.s32.totalorder %s159, %s161
      %p168 = scmp.eq.s32.totalorder %s25, 1
      %p169 = por %p167, %p168
      %p170 = scmp.ne.s32.totalorder %s161, %s162
      %p171 = scmp.eq.s32.totalorder %s25, 0
      %p172 = por %p170, %p171
      %p173 = scmp.ne.s32.totalorder %s161, %s162
      %p174 = scmp.eq.s32.totalorder %s26, 1
      %p175 = por %p173, %p174
      %p177 = scmp.ne.s32.totalorder %s162, %s176
      %p178 = scmp.eq.s32.totalorder %s26, 0
      %p179 = por %p177, %p178
      %s181 = sadd.s32 %s180, 1
      %p184 = scmp.eq.s32.totalorder %s20, 1
      %p185 = scmp.ne.s32.totalorder %s180, %s182
      %p186 = scmp.eq.s32.totalorder %s20, 0
      %p187 = por %p185, %p186
      %p188 = scmp.ne.s32.totalorder %s180, %s182
      %p189 = scmp.eq.s32.totalorder %s25, 1
      %p190 = por %p188, %p189
      %p191 = scmp.ne.s32.totalorder %s182, %s183
      %p192 = scmp.eq.s32.totalorder %s25, 0
      %p193 = por %p191, %p192
      %p194 = scmp.ne.s32.totalorder %s182, %s183
      %p195 = scmp.eq.s32.totalorder %s26, 1
      %p196 = por %p194, %p195
      %p198 = scmp.ne.s32.totalorder %s183, %s197
      %p199 = scmp.eq.s32.totalorder %s26, 0
      %p200 = por %p198, %p199
      %s201 = ssub.s32 %s20, %s27
      %p202 = scmp.eq.s32.totalorder %s201, 0
      %s204 = sadd.s32 %s203, 1
      %s205 = scalar_select %p202, %s203, %s204
      %p208 = pneg %p202
      %p209 = scmp.eq.s32.totalorder %s20, 1
      %p210 = por %p208, %p209
      %p211 = scmp.ne.s32.totalorder %s203, %s206
      %p212 = scmp.eq.s32.totalorder %s20, 0
      %p213 = por %p211, %p212
      %p214 = scmp.ne.s32.totalorder %s203, %s206
      %p215 = scmp.eq.s32.totalorder %s25, 1
      %p216 = por %p214, %p215
      %p217 = scmp.ne.s32.totalorder %s206, %s207
      %p218 = scmp.eq.s32.totalorder %s25, 0
      %p219 = por %p217, %p218
      %p220 = scmp.ne.s32.totalorder %s206, %s207
      %p221 = scmp.eq.s32.totalorder %s26, 1
      %p222 = por %p220, %p221
      %p224 = scmp.ne.s32.totalorder %s207, %s223
      %p225 = scmp.eq.s32.totalorder %s26, 0
      %p226 = por %p224, %p225
      %p227 = scmp.le.s32.totalorder 1, %s20
      %p228 = scmp.lt.s32.totalorder %s20, 3
      %p229 = pnand %p227, %p228
      %p230 = pneg %p229
      // Predicated region
      $region9: #{tpu_custom_call.1} parent=5 // pred_check
        _
      $region10: #{tpu_custom_call.1} parent=5 // pred_check_branch
        %232 = sbr.rel (%p229) target = $region12
      $region11: #{tpu_custom_call.1} parent=5 // pred_region
        %s233 = ssub.s32 %s20, 1
        // Predicated region
        $region13: #{tpu_custom_call.1} parent=11 // pred_check
          %p234 = pneg %p41
        $region14: #{tpu_custom_call.1} parent=11 // pred_check_branch
          %236 = sbr.rel (%p234) target = $region16
        $region15: #{tpu_custom_call.1} parent=11 // pred_region
          %238 = vsyncadd [#allocation5], 0
          %s240 = sshll.u32 %s0, 4
          %s241 = int_to_ptr.vmem [resolvable:$true] %s240
          %243 = dma.vmem_to_smem %s241, 16, [#allocation2], [#allocation5]
        $region16: #{tpu_custom_call.1} parent=11 // pred_fallthru
          _
        // Predicated region
        $region17: #{tpu_custom_call.1} parent=11 // pred_check
          %p244 = pneg %p62
        $region18: #{tpu_custom_call.1} parent=11 // pred_check_branch
          %246 = sbr.rel (%p244) target = $region20
        $region19: #{tpu_custom_call.1} parent=11 // pred_region
          %248 = vsyncadd [#allocation7], 0
          %s250 = sshll.u32 %s1, 4
          %s251 = int_to_ptr.vmem [resolvable:$true] %s250
          %253 = dma.vmem_to_smem %s251, 16, [#allocation6], [#allocation7]
        $region20: #{tpu_custom_call.1} parent=11 // pred_fallthru
          _
        // Predicated region
        $region21: #{tpu_custom_call.1} parent=11 // pred_check
          %p254 = pneg %p109
        $region22: #{tpu_custom_call.1} parent=11 // pred_check_branch
          %256 = sbr.rel (%p254) target = $region24
        $region23: #{tpu_custom_call.1} parent=11 // pred_region
          _
        $region24: #{tpu_custom_call.1} parent=11 // pred_fallthru
          _
        // Predicated region
        $region25: #{tpu_custom_call.1} parent=11 // pred_check
          %p257 = pneg %p130
        $region26: #{tpu_custom_call.1} parent=11 // pred_check_branch
          %259 = sbr.rel (%p257) target = $region28
        $region27: #{tpu_custom_call.1} parent=11 // pred_region
          _
        $region28: #{tpu_custom_call.1} parent=11 // pred_fallthru
          _
        // Predicated region
        $region29: #{tpu_custom_call.1} parent=11 // pred_check
          %p260 = pneg %p151
        $region30: #{tpu_custom_call.1} parent=11 // pred_check_branch
          %262 = sbr.rel (%p260) target = $region32
        $region31: #{tpu_custom_call.1} parent=11 // pred_region
          %264 = vsyncadd [#allocation3], 0
          %s265 = sshll.u32 %s5, 4
          %s266 = int_to_ptr.hbm [resolvable:$true] %s265
          %s267 = sshll.u32 [#allocation8], 4
          %s268 = int_to_ptr.vmem [resolvable:$true] %s267
          %273 = dma.hbm_to_vmem [thread:$0]  %s266, 16384, %s268, [#allocation3], 64, 64, 4
        $region32: #{tpu_custom_call.1} parent=11 // pred_fallthru
          _
        // Predicated region
        $region33: #{tpu_custom_call.1} parent=11 // pred_check
          %p274 = pneg %p172
        $region34: #{tpu_custom_call.1} parent=11 // pred_check_branch
          %276 = sbr.rel (%p274) target = $region36
        $region35: #{tpu_custom_call.1} parent=11 // pred_region
          _
        $region36: #{tpu_custom_call.1} parent=11 // pred_fallthru
          _
        // Predicated region
        $region37: #{tpu_custom_call.1} parent=11 // pred_check
          %p277 = pneg %p193
        $region38: #{tpu_custom_call.1} parent=11 // pred_check_branch
          %279 = sbr.rel (%p277) target = $region40
        $region39: #{tpu_custom_call.1} parent=11 // pred_region
          _
        $region40: #{tpu_custom_call.1} parent=11 // pred_fallthru
          _
      $region12: #{tpu_custom_call.1} parent=5 // pred_fallthru
        _
      %p280 = scmp.lt.s32.totalorder %s20, 2
      // Predicated region
      $region41: #{tpu_custom_call.1} parent=5 // pred_check
        %p281 = pneg %p280
      $region42: #{tpu_custom_call.1} parent=5 // pred_check_branch
        %283 = sbr.rel (%p281) target = $region44
      $region43: #{tpu_custom_call.1} parent=5 // pred_region
        // Predicated region
        $region45: #{tpu_custom_call.1} parent=43 // pred_check
          %p284 = pneg %p82
        $region46: #{tpu_custom_call.1} parent=43 // pred_check_branch
          %286 = sbr.rel (%p284) target = $region48
        $region47: #{tpu_custom_call.1} parent=43 // pred_region
          %s287 = smul.u32 32, %s20
          %p288 = scmp.lt.s32.totalorder %s287, 63
          %s289 = scalar_select %p288, %s287, 63
          %s290 = smul.addr %s289, 8
          %s291 = scalar_lea.vmem %s2, %s290
          %s292 = smul.u32 32, %s20
        $region48: #{tpu_custom_call.1} parent=43 // pred_fallthru
          _
      $region44: #{tpu_custom_call.1} parent=5 // pred_fallthru
        _
      %p293 = scmp.le.s32.totalorder 1, %s20
      %p294 = scmp.lt.s32.totalorder %s20, 3
      %p295 = pnand %p293, %p294
      %p296 = pneg %p295
      // Predicated region
      $region49: #{tpu_custom_call.1} parent=5 // pred_check
        _
      $region50: #{tpu_custom_call.1} parent=5 // pred_check_branch
        %298 = sbr.rel (%p295) target = $region52
      $region51: #{tpu_custom_call.1} parent=5 // pred_region
        %s299 = ssub.s32 %s20, 1
        // Predicated region
        $region53: #{tpu_custom_call.1} parent=51 // pred_check
          %p300 = pneg %p41
        $region54: #{tpu_custom_call.1} parent=51 // pred_check_branch
          %302 = sbr.rel (%p300) target = $region56
        $region55: #{tpu_custom_call.1} parent=51 // pred_region
          %304 = dma.done [#allocation5], 16
        $region56: #{tpu_custom_call.1} parent=51 // pred_fallthru
          _
        // Predicated region
        $region57: #{tpu_custom_call.1} parent=51 // pred_check
          %p305 = pneg %p62
        $region58: #{tpu_custom_call.1} parent=51 // pred_check_branch
          %307 = sbr.rel (%p305) target = $region60
        $region59: #{tpu_custom_call.1} parent=51 // pred_region
          %309 = dma.done [#allocation7], 16
        $region60: #{tpu_custom_call.1} parent=51 // pred_fallthru
          _
        // Predicated region
        $region61: #{tpu_custom_call.1} parent=51 // pred_check
          %p310 = pneg %p151
        $region62: #{tpu_custom_call.1} parent=51 // pred_check_branch
          %312 = sbr.rel (%p310) target = $region64
        $region63: #{tpu_custom_call.1} parent=51 // pred_region
          %314 = dma.done [#allocation3], 16384
        $region64: #{tpu_custom_call.1} parent=51 // pred_fallthru
          _
        %315 = sfence
        %p316 = pneg %p41
        %p317 = pneg %p38
        %p318 = pneg %p62
        %p319 = pneg %p59
        %s320 = smul.u32 32, %s25
        %p321 = scmp.lt.s32.totalorder %s320, 63
        %s322 = scalar_select %p321, %s320, 63
        %s323 = smul.addr %s322, 8
        %s324 = scalar_lea.vmem %s2, %s323
        %p325 = pneg %p88
        %p326 = pneg %p85
        %p327 = pneg %p109
        %p328 = pneg %p106
        %p329 = pneg %p130
        %p330 = pneg %p127
        %p331 = pneg %p151
        %p332 = pneg %p148
        %p333 = pneg %p172
        %p334 = pneg %p169
        %p335 = pneg %p193
        %p336 = pneg %p190
        %p337 = pneg %p219
        %p338 = pneg %p216
        %s339 = sand.u32 %s206, 1
        %s340 = scalar_lea.sflag [#allocation4], %s339
        %s341 = sand.u32 %s206, 1
        %s342 = smul.addr %s341, 256
        %s343 = scalar_lea.vmem [#allocation9], %s342
        %s344 = smul.u32 32, %s25
        %p345 = scmp.lt.s32.totalorder %s344, 63
        %s346 = scalar_select %p345, %s344, 63
        %s347 = smul.addr %s346, 8
        %s348 = scalar_lea.vmem %s2, %s347
        %s349 = smul.u32 32, %s25
        %s350 = smul.u32 32, %s25
        %s351 = sld [smem:[#allocation2]]
        %s352 = sld [smem:[#allocation2 + $0x1]]
        %s353 = sld [smem:[#allocation2 + $0x2]]
        %s354 = sld [smem:[#allocation2 + $0x3]]
        %v355 = vld [vmem:[%s348] sm:$0xff]
        %v356 = vld [vmem:[%s348 + $0x8] sm:$0xff]
        %v357 = vld [vmem:[%s348 + $0x10] sm:$0xff]
        %v358 = vld [vmem:[%s348 + $0x18] sm:$0xff]
        %v359 = vld [vmem:[%s348 + $0x20] sm:$0xff]
        %v360 = vld [vmem:[%s348 + $0x28] sm:$0xff]
        %v361 = vld [vmem:[%s348 + $0x30] sm:$0xff]
        %v362 = vld [vmem:[%s348 + $0x38] sm:$0xff]
        %v363 = vld [vmem:[%s348 + $0x40] sm:$0xff]
        %v364 = vld [vmem:[%s348 + $0x48] sm:$0xff]
        %v365 = vld [vmem:[%s348 + $0x50] sm:$0xff]
        %v366 = vld [vmem:[%s348 + $0x58] sm:$0xff]
        %v367 = vld [vmem:[%s348 + $0x60] sm:$0xff]
        %v368 = vld [vmem:[%s348 + $0x68] sm:$0xff]
        %v369 = vld [vmem:[%s348 + $0x70] sm:$0xff]
        %v370 = vld [vmem:[%s348 + $0x78] sm:$0xff]
        %v371 = vld [vmem:[%s348 + $0x80] sm:$0xff]
        %v372 = vld [vmem:[%s348 + $0x88] sm:$0xff]
        %v373 = vld [vmem:[%s348 + $0x90] sm:$0xff]
        %v374 = vld [vmem:[%s348 + $0x98] sm:$0xff]
        %v375 = vld [vmem:[%s348 + $0xa0] sm:$0xff]
        %v376 = vld [vmem:[%s348 + $0xa8] sm:$0xff]
        %v377 = vld [vmem:[%s348 + $0xb0] sm:$0xff]
        %v378 = vld [vmem:[%s348 + $0xb8] sm:$0xff]
        %v379 = vld [vmem:[%s348 + $0xc0] sm:$0xff]
        %v380 = vld [vmem:[%s348 + $0xc8] sm:$0xff]
        %v381 = vld [vmem:[%s348 + $0xd0] sm:$0xff]
        %v382 = vld [vmem:[%s348 + $0xd8] sm:$0xff]
        %v383 = vld [vmem:[%s348 + $0xe0] sm:$0xff]
        %v384 = vld [vmem:[%s348 + $0xe8] sm:$0xff]
        %v385 = vld [vmem:[%s348 + $0xf0] sm:$0xff]
        %v386 = vld [vmem:[%s348 + $0xf8] sm:$0xff]
        %v387 = vld [vmem:[%s3] sm:$0x3]
        %389 = vset.pattern.permute.xlu0 0
        %390 = vperm.xlu0 %389, %v355
        %v391 = vpop.permute.xlu0 %390
        %394 = vset.pattern.permute.xlu0 0
        %395 = vperm.xlu0 %394, %v356
        %v396 = vpop.permute.xlu0 %395
        %399 = vset.pattern.permute.xlu0 0
        %400 = vperm.xlu0 %399, %v357
        %v401 = vpop.permute.xlu0 %400
        %404 = vset.pattern.permute.xlu0 0
        %405 = vperm.xlu0 %404, %v358
        %v406 = vpop.permute.xlu0 %405
        %409 = vset.pattern.permute.xlu0 0
        %410 = vperm.xlu0 %409, %v359
        %v411 = vpop.permute.xlu0 %410
        %414 = vset.pattern.permute.xlu0 0
        %415 = vperm.xlu0 %414, %v360
        %v416 = vpop.permute.xlu0 %415
        %419 = vset.pattern.permute.xlu0 0
        %420 = vperm.xlu0 %419, %v361
        %v421 = vpop.permute.xlu0 %420
        %424 = vset.pattern.permute.xlu0 0
        %425 = vperm.xlu0 %424, %v362
        %v426 = vpop.permute.xlu0 %425
        %429 = vset.pattern.permute.xlu0 0
        %430 = vperm.xlu0 %429, %v363
        %v431 = vpop.permute.xlu0 %430
        %434 = vset.pattern.permute.xlu0 0
        %435 = vperm.xlu0 %434, %v364
        %v436 = vpop.permute.xlu0 %435
        %439 = vset.pattern.permute.xlu0 0
        %440 = vperm.xlu0 %439, %v365
        %v441 = vpop.permute.xlu0 %440
        %444 = vset.pattern.permute.xlu0 0
        %445 = vperm.xlu0 %444, %v366
        %v446 = vpop.permute.xlu0 %445
        %449 = vset.pattern.permute.xlu0 0
        %450 = vperm.xlu0 %449, %v367
        %v451 = vpop.permute.xlu0 %450
        %454 = vset.pattern.permute.xlu0 0
        %455 = vperm.xlu0 %454, %v368
        %v456 = vpop.permute.xlu0 %455
        %459 = vset.pattern.permute.xlu0 0
        %460 = vperm.xlu0 %459, %v369
        %v461 = vpop.permute.xlu0 %460
        %464 = vset.pattern.permute.xlu0 0
        %465 = vperm.xlu0 %464, %v370
        %v466 = vpop.permute.xlu0 %465
        %469 = vset.pattern.permute.xlu0 0
        %470 = vperm.xlu0 %469, %v371
        %v471 = vpop.permute.xlu0 %470
        %474 = vset.pattern.permute.xlu0 0
        %475 = vperm.xlu0 %474, %v372
        %v476 = vpop.permute.xlu0 %475
        %479 = vset.pattern.permute.xlu0 0
        %480 = vperm.xlu0 %479, %v373
        %v481 = vpop.permute.xlu0 %480
        %484 = vset.pattern.permute.xlu0 0
        %485 = vperm.xlu0 %484, %v374
        %v486 = vpop.permute.xlu0 %485
        %489 = vset.pattern.permute.xlu0 0
        %490 = vperm.xlu0 %489, %v375
        %v491 = vpop.permute.xlu0 %490
        %494 = vset.pattern.permute.xlu0 0
        %495 = vperm.xlu0 %494, %v376
        %v496 = vpop.permute.xlu0 %495
        %499 = vset.pattern.permute.xlu0 0
        %500 = vperm.xlu0 %499, %v377
        %v501 = vpop.permute.xlu0 %500
        %504 = vset.pattern.permute.xlu0 0
        %505 = vperm.xlu0 %504, %v378
        %v506 = vpop.permute.xlu0 %505
        %509 = vset.pattern.permute.xlu0 0
        %510 = vperm.xlu0 %509, %v379
        %v511 = vpop.permute.xlu0 %510
        %514 = vset.pattern.permute.xlu0 0
        %515 = vperm.xlu0 %514, %v380
        %v516 = vpop.permute.xlu0 %515
        %519 = vset.pattern.permute.xlu0 0
        %520 = vperm.xlu0 %519, %v381
        %v521 = vpop.permute.xlu0 %520
        %524 = vset.pattern.permute.xlu0 0
        %525 = vperm.xlu0 %524, %v382
        %v526 = vpop.permute.xlu0 %525
        %529 = vset.pattern.permute.xlu0 0
        %530 = vperm.xlu0 %529, %v383
        %v531 = vpop.permute.xlu0 %530
        %534 = vset.pattern.permute.xlu0 0
        %535 = vperm.xlu0 %534, %v384
        %v536 = vpop.permute.xlu0 %535
        %539 = vset.pattern.permute.xlu0 0
        %540 = vperm.xlu0 %539, %v385
        %v541 = vpop.permute.xlu0 %540
        %544 = vset.pattern.permute.xlu0 0
        %545 = vperm.xlu0 %544, %v386
        %v546 = vpop.permute.xlu0 %545
        %v548 = vperm.slane %v387, 0
        %v549 = vmul.f32 %v391, %v548
        %v550 = vmul.f32 %v396, %v548
        %v551 = vmul.f32 %v401, %v548
        %v552 = vmul.f32 %v406, %v548
        %v553 = vmul.f32 %v411, %v548
        %v554 = vmul.f32 %v416, %v548
        %v555 = vmul.f32 %v421, %v548
        %v556 = vmul.f32 %v426, %v548
        %v557 = vmul.f32 %v431, %v548
        %v558 = vmul.f32 %v436, %v548
        %v559 = vmul.f32 %v441, %v548
        %v560 = vmul.f32 %v446, %v548
        %v561 = vmul.f32 %v451, %v548
        %v562 = vmul.f32 %v456, %v548
        %v563 = vmul.f32 %v461, %v548
        %v564 = vmul.f32 %v466, %v548
        %v565 = vmul.f32 %v471, %v548
        %v566 = vmul.f32 %v476, %v548
        %v567 = vmul.f32 %v481, %v548
        %v568 = vmul.f32 %v486, %v548
        %v569 = vmul.f32 %v491, %v548
        %v570 = vmul.f32 %v496, %v548
        %v571 = vmul.f32 %v501, %v548
        %v572 = vmul.f32 %v506, %v548
        %v573 = vmul.f32 %v511, %v548
        %v574 = vmul.f32 %v516, %v548
        %v575 = vmul.f32 %v521, %v548
        %v576 = vmul.f32 %v526, %v548
        %v577 = vmul.f32 %v531, %v548
        %v578 = vmul.f32 %v536, %v548
        %v579 = vmul.f32 %v541, %v548
        %v580 = vmul.f32 %v546, %v548
        %581 = vset.pattern.permute.xlu0 1
        %582 = vperm.xlu0 %581, %v355
        %v583 = vpop.permute.xlu0 %582
        %585 = vset.pattern.permute.xlu0 1
        %586 = vperm.xlu0 %585, %v356
        %v587 = vpop.permute.xlu0 %586
        %589 = vset.pattern.permute.xlu0 1
        %590 = vperm.xlu0 %589, %v357
        %v591 = vpop.permute.xlu0 %590
        %593 = vset.pattern.permute.xlu0 1
        %594 = vperm.xlu0 %593, %v358
        %v595 = vpop.permute.xlu0 %594
        %597 = vset.pattern.permute.xlu0 1
        %598 = vperm.xlu0 %597, %v359
        %v599 = vpop.permute.xlu0 %598
        %601 = vset.pattern.permute.xlu0 1
        %602 = vperm.xlu0 %601, %v360
        %v603 = vpop.permute.xlu0 %602
        %605 = vset.pattern.permute.xlu0 1
        %606 = vperm.xlu0 %605, %v361
        %v607 = vpop.permute.xlu0 %606
        %609 = vset.pattern.permute.xlu0 1
        %610 = vperm.xlu0 %609, %v362
        %v611 = vpop.permute.xlu0 %610
        %613 = vset.pattern.permute.xlu0 1
        %614 = vperm.xlu0 %613, %v363
        %v615 = vpop.permute.xlu0 %614
        %617 = vset.pattern.permute.xlu0 1
        %618 = vperm.xlu0 %617, %v364
        %v619 = vpop.permute.xlu0 %618
        %621 = vset.pattern.permute.xlu0 1
        %622 = vperm.xlu0 %621, %v365
        %v623 = vpop.permute.xlu0 %622
        %625 = vset.pattern.permute.xlu0 1
        %626 = vperm.xlu0 %625, %v366
        %v627 = vpop.permute.xlu0 %626
        %629 = vset.pattern.permute.xlu0 1
        %630 = vperm.xlu0 %629, %v367
        %v631 = vpop.permute.xlu0 %630
        %633 = vset.pattern.permute.xlu0 1
        %634 = vperm.xlu0 %633, %v368
        %v635 = vpop.permute.xlu0 %634
        %637 = vset.pattern.permute.xlu0 1
        %638 = vperm.xlu0 %637, %v369
        %v639 = vpop.permute.xlu0 %638
        %641 = vset.pattern.permute.xlu0 1
        %642 = vperm.xlu0 %641, %v370
        %v643 = vpop.permute.xlu0 %642
        %645 = vset.pattern.permute.xlu0 1
        %646 = vperm.xlu0 %645, %v371
        %v647 = vpop.permute.xlu0 %646
        %649 = vset.pattern.permute.xlu0 1
        %650 = vperm.xlu0 %649, %v372
        %v651 = vpop.permute.xlu0 %650
        %653 = vset.pattern.permute.xlu0 1
        %654 = vperm.xlu0 %653, %v373
        %v655 = vpop.permute.xlu0 %654
        %657 = vset.pattern.permute.xlu0 1
        %658 = vperm.xlu0 %657, %v374
        %v659 = vpop.permute.xlu0 %658
        %661 = vset.pattern.permute.xlu0 1
        %662 = vperm.xlu0 %661, %v375
        %v663 = vpop.permute.xlu0 %662
        %665 = vset.pattern.permute.xlu0 1
        %666 = vperm.xlu0 %665, %v376
        %v667 = vpop.permute.xlu0 %666
        %669 = vset.pattern.permute.xlu0 1
        %670 = vperm.xlu0 %669, %v377
        %v671 = vpop.permute.xlu0 %670
        %673 = vset.pattern.permute.xlu0 1
        %674 = vperm.xlu0 %673, %v378
        %v675 = vpop.permute.xlu0 %674
        %677 = vset.pattern.permute.xlu0 1
        %678 = vperm.xlu0 %677, %v379
        %v679 = vpop.permute.xlu0 %678
        %681 = vset.pattern.permute.xlu0 1
        %682 = vperm.xlu0 %681, %v380
        %v683 = vpop.permute.xlu0 %682
        %685 = vset.pattern.permute.xlu0 1
        %686 = vperm.xlu0 %685, %v381
        %v687 = vpop.permute.xlu0 %686
        %689 = vset.pattern.permute.xlu0 1
        %690 = vperm.xlu0 %689, %v382
        %v691 = vpop.permute.xlu0 %690
        %693 = vset.pattern.permute.xlu0 1
        %694 = vperm.xlu0 %693, %v383
        %v695 = vpop.permute.xlu0 %694
        %697 = vset.pattern.permute.xlu0 1
        %698 = vperm.xlu0 %697, %v384
        %v699 = vpop.permute.xlu0 %698
        %701 = vset.pattern.permute.xlu0 1
        %702 = vperm.xlu0 %701, %v385
        %v703 = vpop.permute.xlu0 %702
        %705 = vset.pattern.permute.xlu0 1
        %706 = vperm.xlu0 %705, %v386
        %v707 = vpop.permute.xlu0 %706
        %v709 = vperm.slane %v387, 1
        %v710 = vmul.f32 %v583, %v709
        %v711 = vmul.f32 %v587, %v709
        %v712 = vmul.f32 %v591, %v709
        %v713 = vmul.f32 %v595, %v709
        %v714 = vmul.f32 %v599, %v709
        %v715 = vmul.f32 %v603, %v709
        %v716 = vmul.f32 %v607, %v709
        %v717 = vmul.f32 %v611, %v709
        %v718 = vmul.f32 %v615, %v709
        %v719 = vmul.f32 %v619, %v709
        %v720 = vmul.f32 %v623, %v709
        %v721 = vmul.f32 %v627, %v709
        %v722 = vmul.f32 %v631, %v709
        %v723 = vmul.f32 %v635, %v709
        %v724 = vmul.f32 %v639, %v709
        %v725 = vmul.f32 %v643, %v709
        %v726 = vmul.f32 %v647, %v709
        %v727 = vmul.f32 %v651, %v709
        %v728 = vmul.f32 %v655, %v709
        %v729 = vmul.f32 %v659, %v709
        %v730 = vmul.f32 %v663, %v709
        %v731 = vmul.f32 %v667, %v709
        %v732 = vmul.f32 %v671, %v709
        %v733 = vmul.f32 %v675, %v709
        %v734 = vmul.f32 %v679, %v709
        %v735 = vmul.f32 %v683, %v709
        %v736 = vmul.f32 %v687, %v709
        %v737 = vmul.f32 %v691, %v709
        %v738 = vmul.f32 %v695, %v709
        %v739 = vmul.f32 %v699, %v709
        %v740 = vmul.f32 %v703, %v709
        %v741 = vmul.f32 %v707, %v709
        %v742 = vadd.f32 %v549, %v710
        %v743 = vadd.f32 %v550, %v711
        %v744 = vadd.f32 %v551, %v712
        %v745 = vadd.f32 %v552, %v713
        %v746 = vadd.f32 %v553, %v714
        %v747 = vadd.f32 %v554, %v715
        %v748 = vadd.f32 %v555, %v716
        %v749 = vadd.f32 %v556, %v717
        %v750 = vadd.f32 %v557, %v718
        %v751 = vadd.f32 %v558, %v719
        %v752 = vadd.f32 %v559, %v720
        %v753 = vadd.f32 %v560, %v721
        %v754 = vadd.f32 %v561, %v722
        %v755 = vadd.f32 %v562, %v723
        %v756 = vadd.f32 %v563, %v724
        %v757 = vadd.f32 %v564, %v725
        %v758 = vadd.f32 %v565, %v726
        %v759 = vadd.f32 %v566, %v727
        %v760 = vadd.f32 %v567, %v728
        %v761 = vadd.f32 %v568, %v729
        %v762 = vadd.f32 %v569, %v730
        %v763 = vadd.f32 %v570, %v731
        %v764 = vadd.f32 %v571, %v732
        %v765 = vadd.f32 %v572, %v733
        %v766 = vadd.f32 %v573, %v734
        %v767 = vadd.f32 %v574, %v735
        %v768 = vadd.f32 %v575, %v736
        %v769 = vadd.f32 %v576, %v737
        %v770 = vadd.f32 %v577, %v738
        %v771 = vadd.f32 %v578, %v739
        %v772 = vadd.f32 %v579, %v740
        %v773 = vadd.f32 %v580, %v741
        %v774 = vld [vmem:[%s4] sm:$0x1]
        %v776 = vperm.slane %v774, 0
        %v778 = vadd.f32 %v742, %v776
        %v779 = vadd.f32 %v743, %v776
        %v780 = vadd.f32 %v744, %v776
        %v781 = vadd.f32 %v745, %v776
        %v782 = vadd.f32 %v746, %v776
        %v783 = vadd.f32 %v747, %v776
        %v784 = vadd.f32 %v748, %v776
        %v785 = vadd.f32 %v749, %v776
        %v786 = vadd.f32 %v750, %v776
        %v787 = vadd.f32 %v751, %v776
        %v788 = vadd.f32 %v752, %v776
        %v789 = vadd.f32 %v753, %v776
        %v790 = vadd.f32 %v754, %v776
        %v791 = vadd.f32 %v755, %v776
        %v792 = vadd.f32 %v756, %v776
        %v793 = vadd.f32 %v757, %v776
        %v794 = vadd.f32 %v758, %v776
        %v795 = vadd.f32 %v759, %v776
        %v796 = vadd.f32 %v760, %v776
        %v797 = vadd.f32 %v761, %v776
        %v798 = vadd.f32 %v762, %v776
        %v799 = vadd.f32 %v763, %v776
        %v800 = vadd.f32 %v764, %v776
        %v801 = vadd.f32 %v765, %v776
        %v802 = vadd.f32 %v766, %v776
        %v803 = vadd.f32 %v767, %v776
        %v804 = vadd.f32 %v768, %v776
        %v805 = vadd.f32 %v769, %v776
        %v806 = vadd.f32 %v770, %v776
        %v807 = vadd.f32 %v771, %v776
        %v808 = vadd.f32 %v772, %v776
        %v809 = vadd.f32 %v773, %v776
        %v810 = vtanh.pop %v778
        %v811 = vtanh.pop %v779
        %v812 = vtanh.pop %v780
        %v813 = vtanh.pop %v781
        %v814 = vtanh.pop %v782
        %v815 = vtanh.pop %v783
        %v816 = vtanh.pop %v784
        %v817 = vtanh.pop %v785
        %v818 = vtanh.pop %v786
        %v819 = vtanh.pop %v787
        %v820 = vtanh.pop %v788
        %v821 = vtanh.pop %v789
        %v822 = vtanh.pop %v790
        %v823 = vtanh.pop %v791
        %v824 = vtanh.pop %v792
        %v825 = vtanh.pop %v793
        %v826 = vtanh.pop %v794
        %v827 = vtanh.pop %v795
        %v828 = vtanh.pop %v796
        %v829 = vtanh.pop %v797
        %v830 = vtanh.pop %v798
        %v831 = vtanh.pop %v799
        %v832 = vtanh.pop %v800
        %v833 = vtanh.pop %v801
        %v834 = vtanh.pop %v802
        %v835 = vtanh.pop %v803
        %v836 = vtanh.pop %v804
        %v837 = vtanh.pop %v805
        %v838 = vtanh.pop %v806
        %v839 = vtanh.pop %v807
        %v840 = vtanh.pop %v808
        %v841 = vtanh.pop %v809
        %v842 = vpack.c.bf16 %v811, %v810
        %v843 = vpack.c.bf16 %v813, %v812
        %v844 = vpack.c.bf16 %v815, %v814
        %v845 = vpack.c.bf16 %v817, %v816
        %v846 = vpack.c.bf16 %v819, %v818
        %v847 = vpack.c.bf16 %v821, %v820
        %v848 = vpack.c.bf16 %v823, %v822
        %v849 = vpack.c.bf16 %v825, %v824
        %v850 = vpack.c.bf16 %v827, %v826
        %v851 = vpack.c.bf16 %v829, %v828
        %v852 = vpack.c.bf16 %v831, %v830
        %v853 = vpack.c.bf16 %v833, %v832
        %v854 = vpack.c.bf16 %v835, %v834
        %v855 = vpack.c.bf16 %v837, %v836
        %v856 = vpack.c.bf16 %v839, %v838
        %v857 = vpack.c.bf16 %v841, %v840
        %v858 = vld [vmem:[#allocation8] sm:$0xf]
        %v859 = vld [vmem:[#allocation8 + $0x4] sm:$0xf]
        %v860 = vld [vmem:[#allocation8 + $0x8] sm:$0xf]
        %v861 = vld [vmem:[#allocation8 + $0xc] sm:$0xf]
        %v862 = vld [vmem:[#allocation8 + $0x10] sm:$0xf]
        %v863 = vld [vmem:[#allocation8 + $0x14] sm:$0xf]
        %v864 = vld [vmem:[#allocation8 + $0x18] sm:$0xf]
        %v865 = vld [vmem:[#allocation8 + $0x1c] sm:$0xf]
        %v866 = vld [vmem:[#allocation8 + $0x20] sm:$0xf]
        %v867 = vld [vmem:[#allocation8 + $0x24] sm:$0xf]
        %v868 = vld [vmem:[#allocation8 + $0x28] sm:$0xf]
        %v869 = vld [vmem:[#allocation8 + $0x2c] sm:$0xf]
        %v870 = vld [vmem:[#allocation8 + $0x30] sm:$0xf]
        %v871 = vld [vmem:[#allocation8 + $0x34] sm:$0xf]
        %v872 = vld [vmem:[#allocation8 + $0x38] sm:$0xf]
        %v873 = vld [vmem:[#allocation8 + $0x3c] sm:$0xf]
        %v874 = vld [vmem:[%s6] sm:$0x1]
        %v876 = vperm.slane %v874, 0
        %v894 = vunpack.c.l.b16 %v858
        %v895 = vunpack.c.l.b16 %v859
        %v896 = vunpack.c.l.b16 %v860
        %v897 = vunpack.c.l.b16 %v861
        %v898 = vunpack.c.l.b16 %v862
        %v899 = vunpack.c.l.b16 %v863
        %v900 = vunpack.c.l.b16 %v864
        %v901 = vunpack.c.l.b16 %v865
        %v902 = vunpack.c.l.b16 %v866
        %v903 = vunpack.c.l.b16 %v867
        %v904 = vunpack.c.l.b16 %v868
        %v905 = vunpack.c.l.b16 %v869
        %v906 = vunpack.c.l.b16 %v870
        %v907 = vunpack.c.l.b16 %v871
        %v908 = vunpack.c.l.b16 %v872
        %v909 = vunpack.c.l.b16 %v873
        %v910 = vpack.c.b16 %v895, %v894
        %v911 = vpack.c.b16 %v897, %v896
        %v912 = vpack.c.b16 %v899, %v898
        %v913 = vpack.c.b16 %v901, %v900
        %v914 = vpack.c.b16 %v903, %v902
        %v915 = vpack.c.b16 %v905, %v904
        %v916 = vpack.c.b16 %v907, %v906
        %v917 = vpack.c.b16 %v909, %v908
        %926 = vmatpush.bf16.msra.mxu0 %v917
        %927 = vmatpush.bf16.msra.mxu0 %v916
        %928 = vmatpush.bf16.msra.mxu0 %v915
        %929 = vmatpush.bf16.msra.mxu0 %v914
        %930 = vmatpush.bf16.msra.mxu0 %v913
        %931 = vmatpush.bf16.msra.mxu0 %v912
        %932 = vmatpush.bf16.msra.mxu0 %v911
        %933 = vmatpush.bf16.msra.mxu0 %v910
        %934 = vmatmul.bf16.gmra.mxu0 %v842
        %v935 = vpop.f32.mrf.mxu0
        %v936 = vadd.f32 %v876, %v935
        %v937 = vpop.f32.mrf.mxu0
        %v938 = vadd.f32 %v876, %v937
        %939 = vmatmul.bf16.gmra.mxu0 %v843
        %v940 = vpop.f32.mrf.mxu0
        %v941 = vadd.f32 %v876, %v940
        %v942 = vpop.f32.mrf.mxu0
        %v943 = vadd.f32 %v876, %v942
        %944 = vmatmul.bf16.gmra.mxu0 %v844
        %v945 = vpop.f32.mrf.mxu0
        %v946 = vadd.f32 %v876, %v945
        %v947 = vpop.f32.mrf.mxu0
        %v948 = vadd.f32 %v876, %v947
        %949 = vmatmul.bf16.gmra.mxu0 %v845
        %v950 = vpop.f32.mrf.mxu0
        %v951 = vadd.f32 %v876, %v950
        %v952 = vpop.f32.mrf.mxu0
        %v953 = vadd.f32 %v876, %v952
        %954 = vmatmul.bf16.gmra.mxu0 %v846
        %v955 = vpop.f32.mrf.mxu0
        %v956 = vadd.f32 %v876, %v955
        %v957 = vpop.f32.mrf.mxu0
        %v958 = vadd.f32 %v876, %v957
        %959 = vmatmul.bf16.gmra.mxu0 %v847
        %v960 = vpop.f32.mrf.mxu0
        %v961 = vadd.f32 %v876, %v960
        %v962 = vpop.f32.mrf.mxu0
        %v963 = vadd.f32 %v876, %v962
        %964 = vmatmul.bf16.gmra.mxu0 %v848
        %v965 = vpop.f32.mrf.mxu0
        %v966 = vadd.f32 %v876, %v965
        %v967 = vpop.f32.mrf.mxu0
        %v968 = vadd.f32 %v876, %v967
        %969 = vmatmul.bf16.gmra.mxu0 %v849
        %v970 = vpop.f32.mrf.mxu0
        %v971 = vadd.f32 %v876, %v970
        %v972 = vpop.f32.mrf.mxu0
        %v973 = vadd.f32 %v876, %v972
        %974 = vmatmul.bf16.gmra.mxu0 %v850
        %v975 = vpop.f32.mrf.mxu0
        %v976 = vadd.f32 %v876, %v975
        %v977 = vpop.f32.mrf.mxu0
        %v978 = vadd.f32 %v876, %v977
        %979 = vmatmul.bf16.gmra.mxu0 %v851
        %v980 = vpop.f32.mrf.mxu0
        %v981 = vadd.f32 %v876, %v980
        %v982 = vpop.f32.mrf.mxu0
        %v983 = vadd.f32 %v876, %v982
        %984 = vmatmul.bf16.gmra.mxu0 %v852
        %v985 = vpop.f32.mrf.mxu0
        %v986 = vadd.f32 %v876, %v985
        %v987 = vpop.f32.mrf.mxu0
        %v988 = vadd.f32 %v876, %v987
        %989 = vmatmul.bf16.gmra.mxu0 %v853
        %v990 = vpop.f32.mrf.mxu0
        %v991 = vadd.f32 %v876, %v990
        %v992 = vpop.f32.mrf.mxu0
        %v993 = vadd.f32 %v876, %v992
        %994 = vmatmul.bf16.gmra.mxu0 %v854
        %v995 = vpop.f32.mrf.mxu0
        %v996 = vadd.f32 %v876, %v995
        %v997 = vpop.f32.mrf.mxu0
        %v998 = vadd.f32 %v876, %v997
        %999 = vmatmul.bf16.gmra.mxu0 %v855
        %v1000 = vpop.f32.mrf.mxu0
        %v1001 = vadd.f32 %v876, %v1000
        %v1002 = vpop.f32.mrf.mxu0
        %v1003 = vadd.f32 %v876, %v1002
        %1004 = vmatmul.bf16.gmra.mxu0 %v856
        %v1005 = vpop.f32.mrf.mxu0
        %v1006 = vadd.f32 %v876, %v1005
        %v1007 = vpop.f32.mrf.mxu0
        %v1008 = vadd.f32 %v876, %v1007
        %1009 = vmatmul.bf16.gmra.mxu0 %v857
        %v1010 = vpop.f32.mrf.mxu0
        %v1011 = vadd.f32 %v876, %v1010
        %v1012 = vpop.f32.mrf.mxu0
        %v1013 = vadd.f32 %v876, %v1012
        %1014 = vdwg.mxu0
        %v1015 = vtanh.pop %v936
        %v1016 = vtanh.pop %v938
        %v1017 = vtanh.pop %v941
        %v1018 = vtanh.pop %v943
        %v1019 = vtanh.pop %v946
        %v1020 = vtanh.pop %v948
        %v1021 = vtanh.pop %v951
        %v1022 = vtanh.pop %v953
        %v1023 = vtanh.pop %v956
        %v1024 = vtanh.pop %v958
        %v1025 = vtanh.pop %v961
        %v1026 = vtanh.pop %v963
        %v1027 = vtanh.pop %v966
        %v1028 = vtanh.pop %v968
        %v1029 = vtanh.pop %v971
        %v1030 = vtanh.pop %v973
        %v1031 = vtanh.pop %v976
        %v1032 = vtanh.pop %v978
        %v1033 = vtanh.pop %v981
        %v1034 = vtanh.pop %v983
        %v1035 = vtanh.pop %v986
        %v1036 = vtanh.pop %v988
        %v1037 = vtanh.pop %v991
        %v1038 = vtanh.pop %v993
        %v1039 = vtanh.pop %v996
        %v1040 = vtanh.pop %v998
        %v1041 = vtanh.pop %v1001
        %v1042 = vtanh.pop %v1003
        %v1043 = vtanh.pop %v1006
        %v1044 = vtanh.pop %v1008
        %v1045 = vtanh.pop %v1011
        %v1046 = vtanh.pop %v1013
        %v1047 = vpack.c.bf16 %v1016, %v1015
        %v1048 = vpack.c.bf16 %v1018, %v1017
        %v1049 = vpack.c.bf16 %v1020, %v1019
        %v1050 = vpack.c.bf16 %v1022, %v1021
        %v1051 = vpack.c.bf16 %v1024, %v1023
        %v1052 = vpack.c.bf16 %v1026, %v1025
        %v1053 = vpack.c.bf16 %v1028, %v1027
        %v1054 = vpack.c.bf16 %v1030, %v1029
        %v1055 = vpack.c.bf16 %v1032, %v1031
        %v1056 = vpack.c.bf16 %v1034, %v1033
        %v1057 = vpack.c.bf16 %v1036, %v1035
        %v1058 = vpack.c.bf16 %v1038, %v1037
        %v1059 = vpack.c.bf16 %v1040, %v1039
        %v1060 = vpack.c.bf16 %v1042, %v1041
        %v1061 = vpack.c.bf16 %v1044, %v1043
        %v1062 = vpack.c.bf16 %v1046, %v1045
        %s1063 = scalar_lea.vmem [#allocation8], 64
        %v1064 = vld [vmem:[%s1063] sm:$0xf]
        %v1065 = vld [vmem:[%s1063 + $0x4] sm:$0xf]
        %v1066 = vld [vmem:[%s1063 + $0x8] sm:$0xf]
        %v1067 = vld [vmem:[%s1063 + $0xc] sm:$0xf]
        %v1068 = vld [vmem:[%s1063 + $0x10] sm:$0xf]
        %v1069 = vld [vmem:[%s1063 + $0x14] sm:$0xf]
        %v1070 = vld [vmem:[%s1063 + $0x18] sm:$0xf]
        %v1071 = vld [vmem:[%s1063 + $0x1c] sm:$0xf]
        %v1072 = vld [vmem:[%s1063 + $0x20] sm:$0xf]
        %v1073 = vld [vmem:[%s1063 + $0x24] sm:$0xf]
        %v1074 = vld [vmem:[%s1063 + $0x28] sm:$0xf]
        %v1075 = vld [vmem:[%s1063 + $0x2c] sm:$0xf]
        %v1076 = vld [vmem:[%s1063 + $0x30] sm:$0xf]
        %v1077 = vld [vmem:[%s1063 + $0x34] sm:$0xf]
        %v1078 = vld [vmem:[%s1063 + $0x38] sm:$0xf]
        %v1079 = vld [vmem:[%s1063 + $0x3c] sm:$0xf]
        %s1080 = scalar_lea.vmem %s6, 1
        %v1081 = vld [vmem:[%s1080] sm:$0x1]
        %v1083 = vperm.slane %v1081, 0
        %v1101 = vunpack.c.l.b16 %v1064
        %v1102 = vunpack.c.l.b16 %v1065
        %v1103 = vunpack.c.l.b16 %v1066
        %v1104 = vunpack.c.l.b16 %v1067
        %v1105 = vunpack.c.l.b16 %v1068
        %v1106 = vunpack.c.l.b16 %v1069
        %v1107 = vunpack.c.l.b16 %v1070
        %v1108 = vunpack.c.l.b16 %v1071
        %v1109 = vunpack.c.l.b16 %v1072
        %v1110 = vunpack.c.l.b16 %v1073
        %v1111 = vunpack.c.l.b16 %v1074
        %v1112 = vunpack.c.l.b16 %v1075
        %v1113 = vunpack.c.l.b16 %v1076
        %v1114 = vunpack.c.l.b16 %v1077
        %v1115 = vunpack.c.l.b16 %v1078
        %v1116 = vunpack.c.l.b16 %v1079
        %v1117 = vpack.c.b16 %v1102, %v1101
        %v1118 = vpack.c.b16 %v1104, %v1103
        %v1119 = vpack.c.b16 %v1106, %v1105
        %v1120 = vpack.c.b16 %v1108, %v1107
        %v1121 = vpack.c.b16 %v1110, %v1109
        %v1122 = vpack.c.b16 %v1112, %v1111
        %v1123 = vpack.c.b16 %v1114, %v1113
        %v1124 = vpack.c.b16 %v1116, %v1115
        %1133 = vmatpush.bf16.msra.mxu0 %v1124
        %1134 = vmatpush.bf16.msra.mxu0 %v1123
        %1135 = vmatpush.bf16.msra.mxu0 %v1122
        %1136 = vmatpush.bf16.msra.mxu0 %v1121
        %1137 = vmatpush.bf16.msra.mxu0 %v1120
        %1138 = vmatpush.bf16.msra.mxu0 %v1119
        %1139 = vmatpush.bf16.msra.mxu0 %v1118
        %1140 = vmatpush.bf16.msra.mxu0 %v1117
        %1141 = vmatmul.bf16.gmra.mxu0 %v1047
        %v1142 = vpop.f32.mrf.mxu0
        %v1143 = vadd.f32 %v1083, %v1142
        %v1144 = vpop.f32.mrf.mxu0
        %v1145 = vadd.f32 %v1083, %v1144
        %1146 = vmatmul.bf16.gmra.mxu0 %v1048
        %v1147 = vpop.f32.mrf.mxu0
        %v1148 = vadd.f32 %v1083, %v1147
        %v1149 = vpop.f32.mrf.mxu0
        %v1150 = vadd.f32 %v1083, %v1149
        %1151 = vmatmul.bf16.gmra.mxu0 %v1049
        %v1152 = vpop.f32.mrf.mxu0
        %v1153 = vadd.f32 %v1083, %v1152
        %v1154 = vpop.f32.mrf.mxu0
        %v1155 = vadd.f32 %v1083, %v1154
        %1156 = vmatmul.bf16.gmra.mxu0 %v1050
        %v1157 = vpop.f32.mrf.mxu0
        %v1158 = vadd.f32 %v1083, %v1157
        %v1159 = vpop.f32.mrf.mxu0
        %v1160 = vadd.f32 %v1083, %v1159
        %1161 = vmatmul.bf16.gmra.mxu0 %v1051
        %v1162 = vpop.f32.mrf.mxu0
        %v1163 = vadd.f32 %v1083, %v1162
        %v1164 = vpop.f32.mrf.mxu0
        %v1165 = vadd.f32 %v1083, %v1164
        %1166 = vmatmul.bf16.gmra.mxu0 %v1052
        %v1167 = vpop.f32.mrf.mxu0
        %v1168 = vadd.f32 %v1083, %v1167
        %v1169 = vpop.f32.mrf.mxu0
        %v1170 = vadd.f32 %v1083, %v1169
        %1171 = vmatmul.bf16.gmra.mxu0 %v1053
        %v1172 = vpop.f32.mrf.mxu0
        %v1173 = vadd.f32 %v1083, %v1172
        %v1174 = vpop.f32.mrf.mxu0
        %v1175 = vadd.f32 %v1083, %v1174
        %1176 = vmatmul.bf16.gmra.mxu0 %v1054
        %v1177 = vpop.f32.mrf.mxu0
        %v1178 = vadd.f32 %v1083, %v1177
        %v1179 = vpop.f32.mrf.mxu0
        %v1180 = vadd.f32 %v1083, %v1179
        %1181 = vmatmul.bf16.gmra.mxu0 %v1055
        %v1182 = vpop.f32.mrf.mxu0
        %v1183 = vadd.f32 %v1083, %v1182
        %v1184 = vpop.f32.mrf.mxu0
        %v1185 = vadd.f32 %v1083, %v1184
        %1186 = vmatmul.bf16.gmra.mxu0 %v1056
        %v1187 = vpop.f32.mrf.mxu0
        %v1188 = vadd.f32 %v1083, %v1187
        %v1189 = vpop.f32.mrf.mxu0
        %v1190 = vadd.f32 %v1083, %v1189
        %1191 = vmatmul.bf16.gmra.mxu0 %v1057
        %v1192 = vpop.f32.mrf.mxu0
        %v1193 = vadd.f32 %v1083, %v1192
        %v1194 = vpop.f32.mrf.mxu0
        %v1195 = vadd.f32 %v1083, %v1194
        %1196 = vmatmul.bf16.gmra.mxu0 %v1058
        %v1197 = vpop.f32.mrf.mxu0
        %v1198 = vadd.f32 %v1083, %v1197
        %v1199 = vpop.f32.mrf.mxu0
        %v1200 = vadd.f32 %v1083, %v1199
        %1201 = vmatmul.bf16.gmra.mxu0 %v1059
        %v1202 = vpop.f32.mrf.mxu0
        %v1203 = vadd.f32 %v1083, %v1202
        %v1204 = vpop.f32.mrf.mxu0
        %v1205 = vadd.f32 %v1083, %v1204
        %1206 = vmatmul.bf16.gmra.mxu0 %v1060
        %v1207 = vpop.f32.mrf.mxu0
        %v1208 = vadd.f32 %v1083, %v1207
        %v1209 = vpop.f32.mrf.mxu0
        %v1210 = vadd.f32 %v1083, %v1209
        %1211 = vmatmul.bf16.gmra.mxu0 %v1061
        %v1212 = vpop.f32.mrf.mxu0
        %v1213 = vadd.f32 %v1083, %v1212
        %v1214 = vpop.f32.mrf.mxu0
        %v1215 = vadd.f32 %v1083, %v1214
        %1216 = vmatmul.bf16.gmra.mxu0 %v1062
        %v1217 = vpop.f32.mrf.mxu0
        %v1218 = vadd.f32 %v1083, %v1217
        %v1219 = vpop.f32.mrf.mxu0
        %v1220 = vadd.f32 %v1083, %v1219
        %1221 = vdwg.mxu0
        %v1222 = vtanh.pop %v1143
        %v1223 = vtanh.pop %v1145
        %v1224 = vtanh.pop %v1148
        %v1225 = vtanh.pop %v1150
        %v1226 = vtanh.pop %v1153
        %v1227 = vtanh.pop %v1155
        %v1228 = vtanh.pop %v1158
        %v1229 = vtanh.pop %v1160
        %v1230 = vtanh.pop %v1163
        %v1231 = vtanh.pop %v1165
        %v1232 = vtanh.pop %v1168
        %v1233 = vtanh.pop %v1170
        %v1234 = vtanh.pop %v1173
        %v1235 = vtanh.pop %v1175
        %v1236 = vtanh.pop %v1178
        %v1237 = vtanh.pop %v1180
        %v1238 = vtanh.pop %v1183
        %v1239 = vtanh.pop %v1185
        %v1240 = vtanh.pop %v1188
        %v1241 = vtanh.pop %v1190
        %v1242 = vtanh.pop %v1193
        %v1243 = vtanh.pop %v1195
        %v1244 = vtanh.pop %v1198
        %v1245 = vtanh.pop %v1200
        %v1246 = vtanh.pop %v1203
        %v1247 = vtanh.pop %v1205
        %v1248 = vtanh.pop %v1208
        %v1249 = vtanh.pop %v1210
        %v1250 = vtanh.pop %v1213
        %v1251 = vtanh.pop %v1215
        %v1252 = vtanh.pop %v1218
        %v1253 = vtanh.pop %v1220
        %v1254 = vpack.c.bf16 %v1223, %v1222
        %v1255 = vpack.c.bf16 %v1225, %v1224
        %v1256 = vpack.c.bf16 %v1227, %v1226
        %v1257 = vpack.c.bf16 %v1229, %v1228
        %v1258 = vpack.c.bf16 %v1231, %v1230
        %v1259 = vpack.c.bf16 %v1233, %v1232
        %v1260 = vpack.c.bf16 %v1235, %v1234
        %v1261 = vpack.c.bf16 %v1237, %v1236
        %v1262 = vpack.c.bf16 %v1239, %v1238
        %v1263 = vpack.c.bf16 %v1241, %v1240
        %v1264 = vpack.c.bf16 %v1243, %v1242
        %v1265 = vpack.c.bf16 %v1245, %v1244
        %v1266 = vpack.c.bf16 %v1247, %v1246
        %v1267 = vpack.c.bf16 %v1249, %v1248
        %v1268 = vpack.c.bf16 %v1251, %v1250
        %v1269 = vpack.c.bf16 %v1253, %v1252
        %s1270 = scalar_lea.vmem [#allocation8], 128
        %v1271 = vld [vmem:[%s1270] sm:$0xf]
        %v1272 = vld [vmem:[%s1270 + $0x4] sm:$0xf]
        %v1273 = vld [vmem:[%s1270 + $0x8] sm:$0xf]
        %v1274 = vld [vmem:[%s1270 + $0xc] sm:$0xf]
        %v1275 = vld [vmem:[%s1270 + $0x10] sm:$0xf]
        %v1276 = vld [vmem:[%s1270 + $0x14] sm:$0xf]
        %v1277 = vld [vmem:[%s1270 + $0x18] sm:$0xf]
        %v1278 = vld [vmem:[%s1270 + $0x1c] sm:$0xf]
        %v1279 = vld [vmem:[%s1270 + $0x20] sm:$0xf]
        %v1280 = vld [vmem:[%s1270 + $0x24] sm:$0xf]
        %v1281 = vld [vmem:[%s1270 + $0x28] sm:$0xf]
        %v1282 = vld [vmem:[%s1270 + $0x2c] sm:$0xf]
        %v1283 = vld [vmem:[%s1270 + $0x30] sm:$0xf]
        %v1284 = vld [vmem:[%s1270 + $0x34] sm:$0xf]
        %v1285 = vld [vmem:[%s1270 + $0x38] sm:$0xf]
        %v1286 = vld [vmem:[%s1270 + $0x3c] sm:$0xf]
        %s1287 = scalar_lea.vmem %s6, 2
        %v1288 = vld [vmem:[%s1287] sm:$0x1]
        %v1290 = vperm.slane %v1288, 0
        %v1308 = vunpack.c.l.b16 %v1271
        %v1309 = vunpack.c.l.b16 %v1272
        %v1310 = vunpack.c.l.b16 %v1273
        %v1311 = vunpack.c.l.b16 %v1274
        %v1312 = vunpack.c.l.b16 %v1275
        %v1313 = vunpack.c.l.b16 %v1276
        %v1314 = vunpack.c.l.b16 %v1277
        %v1315 = vunpack.c.l.b16 %v1278
        %v1316 = vunpack.c.l.b16 %v1279
        %v1317 = vunpack.c.l.b16 %v1280
        %v1318 = vunpack.c.l.b16 %v1281
        %v1319 = vunpack.c.l.b16 %v1282
        %v1320 = vunpack.c.l.b16 %v1283
        %v1321 = vunpack.c.l.b16 %v1284
        %v1322 = vunpack.c.l.b16 %v1285
        %v1323 = vunpack.c.l.b16 %v1286
        %v1324 = vpack.c.b16 %v1309, %v1308
        %v1325 = vpack.c.b16 %v1311, %v1310
        %v1326 = vpack.c.b16 %v1313, %v1312
        %v1327 = vpack.c.b16 %v1315, %v1314
        %v1328 = vpack.c.b16 %v1317, %v1316
        %v1329 = vpack.c.b16 %v1319, %v1318
        %v1330 = vpack.c.b16 %v1321, %v1320
        %v1331 = vpack.c.b16 %v1323, %v1322
        %1340 = vmatpush.bf16.msra.mxu0 %v1331
        %1341 = vmatpush.bf16.msra.mxu0 %v1330
        %1342 = vmatpush.bf16.msra.mxu0 %v1329
        %1343 = vmatpush.bf16.msra.mxu0 %v1328
        %1344 = vmatpush.bf16.msra.mxu0 %v1327
        %1345 = vmatpush.bf16.msra.mxu0 %v1326
        %1346 = vmatpush.bf16.msra.mxu0 %v1325
        %1347 = vmatpush.bf16.msra.mxu0 %v1324
        %1348 = vmatmul.bf16.gmra.mxu0 %v1254
        %v1349 = vpop.f32.mrf.mxu0
        %v1350 = vadd.f32 %v1290, %v1349
        %v1351 = vpop.f32.mrf.mxu0
        %v1352 = vadd.f32 %v1290, %v1351
        %1353 = vmatmul.bf16.gmra.mxu0 %v1255
        %v1354 = vpop.f32.mrf.mxu0
        %v1355 = vadd.f32 %v1290, %v1354
        %v1356 = vpop.f32.mrf.mxu0
        %v1357 = vadd.f32 %v1290, %v1356
        %1358 = vmatmul.bf16.gmra.mxu0 %v1256
        %v1359 = vpop.f32.mrf.mxu0
        %v1360 = vadd.f32 %v1290, %v1359
        %v1361 = vpop.f32.mrf.mxu0
        %v1362 = vadd.f32 %v1290, %v1361
        %1363 = vmatmul.bf16.gmra.mxu0 %v1257
        %v1364 = vpop.f32.mrf.mxu0
        %v1365 = vadd.f32 %v1290, %v1364
        %v1366 = vpop.f32.mrf.mxu0
        %v1367 = vadd.f32 %v1290, %v1366
        %1368 = vmatmul.bf16.gmra.mxu0 %v1258
        %v1369 = vpop.f32.mrf.mxu0
        %v1370 = vadd.f32 %v1290, %v1369
        %v1371 = vpop.f32.mrf.mxu0
        %v1372 = vadd.f32 %v1290, %v1371
        %1373 = vmatmul.bf16.gmra.mxu0 %v1259
        %v1374 = vpop.f32.mrf.mxu0
        %v1375 = vadd.f32 %v1290, %v1374
        %v1376 = vpop.f32.mrf.mxu0
        %v1377 = vadd.f32 %v1290, %v1376
        %1378 = vmatmul.bf16.gmra.mxu0 %v1260
        %v1379 = vpop.f32.mrf.mxu0
        %v1380 = vadd.f32 %v1290, %v1379
        %v1381 = vpop.f32.mrf.mxu0
        %v1382 = vadd.f32 %v1290, %v1381
        %1383 = vmatmul.bf16.gmra.mxu0 %v1261
        %v1384 = vpop.f32.mrf.mxu0
        %v1385 = vadd.f32 %v1290, %v1384
        %v1386 = vpop.f32.mrf.mxu0
        %v1387 = vadd.f32 %v1290, %v1386
        %1388 = vmatmul.bf16.gmra.mxu0 %v1262
        %v1389 = vpop.f32.mrf.mxu0
        %v1390 = vadd.f32 %v1290, %v1389
        %v1391 = vpop.f32.mrf.mxu0
        %v1392 = vadd.f32 %v1290, %v1391
        %1393 = vmatmul.bf16.gmra.mxu0 %v1263
        %v1394 = vpop.f32.mrf.mxu0
        %v1395 = vadd.f32 %v1290, %v1394
        %v1396 = vpop.f32.mrf.mxu0
        %v1397 = vadd.f32 %v1290, %v1396
        %1398 = vmatmul.bf16.gmra.mxu0 %v1264
        %v1399 = vpop.f32.mrf.mxu0
        %v1400 = vadd.f32 %v1290, %v1399
        %v1401 = vpop.f32.mrf.mxu0
        %v1402 = vadd.f32 %v1290, %v1401
        %1403 = vmatmul.bf16.gmra.mxu0 %v1265
        %v1404 = vpop.f32.mrf.mxu0
        %v1405 = vadd.f32 %v1290, %v1404
        %v1406 = vpop.f32.mrf.mxu0
        %v1407 = vadd.f32 %v1290, %v1406
        %1408 = vmatmul.bf16.gmra.mxu0 %v1266
        %v1409 = vpop.f32.mrf.mxu0
        %v1410 = vadd.f32 %v1290, %v1409
        %v1411 = vpop.f32.mrf.mxu0
        %v1412 = vadd.f32 %v1290, %v1411
        %1413 = vmatmul.bf16.gmra.mxu0 %v1267
        %v1414 = vpop.f32.mrf.mxu0
        %v1415 = vadd.f32 %v1290, %v1414
        %v1416 = vpop.f32.mrf.mxu0
        %v1417 = vadd.f32 %v1290, %v1416
        %1418 = vmatmul.bf16.gmra.mxu0 %v1268
        %v1419 = vpop.f32.mrf.mxu0
        %v1420 = vadd.f32 %v1290, %v1419
        %v1421 = vpop.f32.mrf.mxu0
        %v1422 = vadd.f32 %v1290, %v1421
        %1423 = vmatmul.bf16.gmra.mxu0 %v1269
        %v1424 = vpop.f32.mrf.mxu0
        %v1425 = vadd.f32 %v1290, %v1424
        %v1426 = vpop.f32.mrf.mxu0
        %v1427 = vadd.f32 %v1290, %v1426
        %1428 = vdwg.mxu0
        %v1429 = vtanh.pop %v1350
        %v1430 = vtanh.pop %v1352
        %v1431 = vtanh.pop %v1355
        %v1432 = vtanh.pop %v1357
        %v1433 = vtanh.pop %v1360
        %v1434 = vtanh.pop %v1362
        %v1435 = vtanh.pop %v1365
        %v1436 = vtanh.pop %v1367
        %v1437 = vtanh.pop %v1370
        %v1438 = vtanh.pop %v1372
        %v1439 = vtanh.pop %v1375
        %v1440 = vtanh.pop %v1377
        %v1441 = vtanh.pop %v1380
        %v1442 = vtanh.pop %v1382
        %v1443 = vtanh.pop %v1385
        %v1444 = vtanh.pop %v1387
        %v1445 = vtanh.pop %v1390
        %v1446 = vtanh.pop %v1392
        %v1447 = vtanh.pop %v1395
        %v1448 = vtanh.pop %v1397
        %v1449 = vtanh.pop %v1400
        %v1450 = vtanh.pop %v1402
        %v1451 = vtanh.pop %v1405
        %v1452 = vtanh.pop %v1407
        %v1453 = vtanh.pop %v1410
        %v1454 = vtanh.pop %v1412
        %v1455 = vtanh.pop %v1415
        %v1456 = vtanh.pop %v1417
        %v1457 = vtanh.pop %v1420
        %v1458 = vtanh.pop %v1422
        %v1459 = vtanh.pop %v1425
        %v1460 = vtanh.pop %v1427
        %v1461 = vpack.c.bf16 %v1430, %v1429
        %v1462 = vpack.c.bf16 %v1432, %v1431
        %v1463 = vpack.c.bf16 %v1434, %v1433
        %v1464 = vpack.c.bf16 %v1436, %v1435
        %v1465 = vpack.c.bf16 %v1438, %v1437
        %v1466 = vpack.c.bf16 %v1440, %v1439
        %v1467 = vpack.c.bf16 %v1442, %v1441
        %v1468 = vpack.c.bf16 %v1444, %v1443
        %v1469 = vpack.c.bf16 %v1446, %v1445
        %v1470 = vpack.c.bf16 %v1448, %v1447
        %v1471 = vpack.c.bf16 %v1450, %v1449
        %v1472 = vpack.c.bf16 %v1452, %v1451
        %v1473 = vpack.c.bf16 %v1454, %v1453
        %v1474 = vpack.c.bf16 %v1456, %v1455
        %v1475 = vpack.c.bf16 %v1458, %v1457
        %v1476 = vpack.c.bf16 %v1460, %v1459
        %s1477 = scalar_lea.vmem [#allocation8], 192
        %v1478 = vld [vmem:[%s1477] sm:$0xf]
        %v1479 = vld [vmem:[%s1477 + $0x4] sm:$0xf]
        %v1480 = vld [vmem:[%s1477 + $0x8] sm:$0xf]
        %v1481 = vld [vmem:[%s1477 + $0xc] sm:$0xf]
        %v1482 = vld [vmem:[%s1477 + $0x10] sm:$0xf]
        %v1483 = vld [vmem:[%s1477 + $0x14] sm:$0xf]
        %v1484 = vld [vmem:[%s1477 + $0x18] sm:$0xf]
        %v1485 = vld [vmem:[%s1477 + $0x1c] sm:$0xf]
        %v1486 = vld [vmem:[%s1477 + $0x20] sm:$0xf]
        %v1487 = vld [vmem:[%s1477 + $0x24] sm:$0xf]
        %v1488 = vld [vmem:[%s1477 + $0x28] sm:$0xf]
        %v1489 = vld [vmem:[%s1477 + $0x2c] sm:$0xf]
        %v1490 = vld [vmem:[%s1477 + $0x30] sm:$0xf]
        %v1491 = vld [vmem:[%s1477 + $0x34] sm:$0xf]
        %v1492 = vld [vmem:[%s1477 + $0x38] sm:$0xf]
        %v1493 = vld [vmem:[%s1477 + $0x3c] sm:$0xf]
        %s1494 = scalar_lea.vmem %s6, 3
        %v1495 = vld [vmem:[%s1494] sm:$0x1]
        %v1497 = vperm.slane %v1495, 0
        %v1515 = vunpack.c.l.b16 %v1478
        %v1516 = vunpack.c.l.b16 %v1479
        %v1517 = vunpack.c.l.b16 %v1480
        %v1518 = vunpack.c.l.b16 %v1481
        %v1519 = vunpack.c.l.b16 %v1482
        %v1520 = vunpack.c.l.b16 %v1483
        %v1521 = vunpack.c.l.b16 %v1484
        %v1522 = vunpack.c.l.b16 %v1485
        %v1523 = vunpack.c.l.b16 %v1486
        %v1524 = vunpack.c.l.b16 %v1487
        %v1525 = vunpack.c.l.b16 %v1488
        %v1526 = vunpack.c.l.b16 %v1489
        %v1527 = vunpack.c.l.b16 %v1490
        %v1528 = vunpack.c.l.b16 %v1491
        %v1529 = vunpack.c.l.b16 %v1492
        %v1530 = vunpack.c.l.b16 %v1493
        %v1531 = vpack.c.b16 %v1516, %v1515
        %v1532 = vpack.c.b16 %v1518, %v1517
        %v1533 = vpack.c.b16 %v1520, %v1519
        %v1534 = vpack.c.b16 %v1522, %v1521
        %v1535 = vpack.c.b16 %v1524, %v1523
        %v1536 = vpack.c.b16 %v1526, %v1525
        %v1537 = vpack.c.b16 %v1528, %v1527
        %v1538 = vpack.c.b16 %v1530, %v1529
        %1547 = vmatpush.bf16.msra.mxu0 %v1538
        %1548 = vmatpush.bf16.msra.mxu0 %v1537
        %1549 = vmatpush.bf16.msra.mxu0 %v1536
        %1550 = vmatpush.bf16.msra.mxu0 %v1535
        %1551 = vmatpush.bf16.msra.mxu0 %v1534
        %1552 = vmatpush.bf16.msra.mxu0 %v1533
        %1553 = vmatpush.bf16.msra.mxu0 %v1532
        %1554 = vmatpush.bf16.msra.mxu0 %v1531
        %1555 = vmatmul.bf16.gmra.mxu0 %v1461
        %v1556 = vpop.f32.mrf.mxu0
        %v1557 = vadd.f32 %v1497, %v1556
        %v1558 = vpop.f32.mrf.mxu0
        %v1559 = vadd.f32 %v1497, %v1558
        %1560 = vmatmul.bf16.gmra.mxu0 %v1462
        %v1561 = vpop.f32.mrf.mxu0
        %v1562 = vadd.f32 %v1497, %v1561
        %v1563 = vpop.f32.mrf.mxu0
        %v1564 = vadd.f32 %v1497, %v1563
        %1565 = vmatmul.bf16.gmra.mxu0 %v1463
        %v1566 = vpop.f32.mrf.mxu0
        %v1567 = vadd.f32 %v1497, %v1566
        %v1568 = vpop.f32.mrf.mxu0
        %v1569 = vadd.f32 %v1497, %v1568
        %1570 = vmatmul.bf16.gmra.mxu0 %v1464
        %v1571 = vpop.f32.mrf.mxu0
        %v1572 = vadd.f32 %v1497, %v1571
        %v1573 = vpop.f32.mrf.mxu0
        %v1574 = vadd.f32 %v1497, %v1573
        %1575 = vmatmul.bf16.gmra.mxu0 %v1465
        %v1576 = vpop.f32.mrf.mxu0
        %v1577 = vadd.f32 %v1497, %v1576
        %v1578 = vpop.f32.mrf.mxu0
        %v1579 = vadd.f32 %v1497, %v1578
        %1580 = vmatmul.bf16.gmra.mxu0 %v1466
        %v1581 = vpop.f32.mrf.mxu0
        %v1582 = vadd.f32 %v1497, %v1581
        %v1583 = vpop.f32.mrf.mxu0
        %v1584 = vadd.f32 %v1497, %v1583
        %1585 = vmatmul.bf16.gmra.mxu0 %v1467
        %v1586 = vpop.f32.mrf.mxu0
        %v1587 = vadd.f32 %v1497, %v1586
        %v1588 = vpop.f32.mrf.mxu0
        %v1589 = vadd.f32 %v1497, %v1588
        %1590 = vmatmul.bf16.gmra.mxu0 %v1468
        %v1591 = vpop.f32.mrf.mxu0
        %v1592 = vadd.f32 %v1497, %v1591
        %v1593 = vpop.f32.mrf.mxu0
        %v1594 = vadd.f32 %v1497, %v1593
        %1595 = vmatmul.bf16.gmra.mxu0 %v1469
        %v1596 = vpop.f32.mrf.mxu0
        %v1597 = vadd.f32 %v1497, %v1596
        %v1598 = vpop.f32.mrf.mxu0
        %v1599 = vadd.f32 %v1497, %v1598
        %1600 = vmatmul.bf16.gmra.mxu0 %v1470
        %v1601 = vpop.f32.mrf.mxu0
        %v1602 = vadd.f32 %v1497, %v1601
        %v1603 = vpop.f32.mrf.mxu0
        %v1604 = vadd.f32 %v1497, %v1603
        %1605 = vmatmul.bf16.gmra.mxu0 %v1471
        %v1606 = vpop.f32.mrf.mxu0
        %v1607 = vadd.f32 %v1497, %v1606
        %v1608 = vpop.f32.mrf.mxu0
        %v1609 = vadd.f32 %v1497, %v1608
        %1610 = vmatmul.bf16.gmra.mxu0 %v1472
        %v1611 = vpop.f32.mrf.mxu0
        %v1612 = vadd.f32 %v1497, %v1611
        %v1613 = vpop.f32.mrf.mxu0
        %v1614 = vadd.f32 %v1497, %v1613
        %1615 = vmatmul.bf16.gmra.mxu0 %v1473
        %v1616 = vpop.f32.mrf.mxu0
        %v1617 = vadd.f32 %v1497, %v1616
        %v1618 = vpop.f32.mrf.mxu0
        %v1619 = vadd.f32 %v1497, %v1618
        %1620 = vmatmul.bf16.gmra.mxu0 %v1474
        %v1621 = vpop.f32.mrf.mxu0
        %v1622 = vadd.f32 %v1497, %v1621
        %v1623 = vpop.f32.mrf.mxu0
        %v1624 = vadd.f32 %v1497, %v1623
        %1625 = vmatmul.bf16.gmra.mxu0 %v1475
        %v1626 = vpop.f32.mrf.mxu0
        %v1627 = vadd.f32 %v1497, %v1626
        %v1628 = vpop.f32.mrf.mxu0
        %v1629 = vadd.f32 %v1497, %v1628
        %1630 = vmatmul.bf16.gmra.mxu0 %v1476
        %v1631 = vpop.f32.mrf.mxu0
        %v1632 = vadd.f32 %v1497, %v1631
        %v1633 = vpop.f32.mrf.mxu0
        %v1634 = vadd.f32 %v1497, %v1633
        %1635 = vdwg.mxu0
        %v1636 = vtanh.pop %v1557
        %v1637 = vtanh.pop %v1559
        %v1638 = vtanh.pop %v1562
        %v1639 = vtanh.pop %v1564
        %v1640 = vtanh.pop %v1567
        %v1641 = vtanh.pop %v1569
        %v1642 = vtanh.pop %v1572
        %v1643 = vtanh.pop %v1574
        %v1644 = vtanh.pop %v1577
        %v1645 = vtanh.pop %v1579
        %v1646 = vtanh.pop %v1582
        %v1647 = vtanh.pop %v1584
        %v1648 = vtanh.pop %v1587
        %v1649 = vtanh.pop %v1589
        %v1650 = vtanh.pop %v1592
        %v1651 = vtanh.pop %v1594
        %v1652 = vtanh.pop %v1597
        %v1653 = vtanh.pop %v1599
        %v1654 = vtanh.pop %v1602
        %v1655 = vtanh.pop %v1604
        %v1656 = vtanh.pop %v1607
        %v1657 = vtanh.pop %v1609
        %v1658 = vtanh.pop %v1612
        %v1659 = vtanh.pop %v1614
        %v1660 = vtanh.pop %v1617
        %v1661 = vtanh.pop %v1619
        %v1662 = vtanh.pop %v1622
        %v1663 = vtanh.pop %v1624
        %v1664 = vtanh.pop %v1627
        %v1665 = vtanh.pop %v1629
        %v1666 = vtanh.pop %v1632
        %v1667 = vtanh.pop %v1634
        %v1668 = vpack.c.bf16 %v1637, %v1636
        %v1669 = vpack.c.bf16 %v1639, %v1638
        %v1670 = vpack.c.bf16 %v1641, %v1640
        %v1671 = vpack.c.bf16 %v1643, %v1642
        %v1672 = vpack.c.bf16 %v1645, %v1644
        %v1673 = vpack.c.bf16 %v1647, %v1646
        %v1674 = vpack.c.bf16 %v1649, %v1648
        %v1675 = vpack.c.bf16 %v1651, %v1650
        %v1676 = vpack.c.bf16 %v1653, %v1652
        %v1677 = vpack.c.bf16 %v1655, %v1654
        %v1678 = vpack.c.bf16 %v1657, %v1656
        %v1679 = vpack.c.bf16 %v1659, %v1658
        %v1680 = vpack.c.bf16 %v1661, %v1660
        %v1681 = vpack.c.bf16 %v1663, %v1662
        %v1682 = vpack.c.bf16 %v1665, %v1664
        %v1683 = vpack.c.bf16 %v1667, %v1666
        %s1684 = scalar_lea.vmem [#allocation8], 256
        %v1685 = vld [vmem:[%s1684] sm:$0xf]
        %v1686 = vld [vmem:[%s1684 + $0x4] sm:$0xf]
        %v1687 = vld [vmem:[%s1684 + $0x8] sm:$0xf]
        %v1688 = vld [vmem:[%s1684 + $0xc] sm:$0xf]
        %v1689 = vld [vmem:[%s1684 + $0x10] sm:$0xf]
        %v1690 = vld [vmem:[%s1684 + $0x14] sm:$0xf]
        %v1691 = vld [vmem:[%s1684 + $0x18] sm:$0xf]
        %v1692 = vld [vmem:[%s1684 + $0x1c] sm:$0xf]
        %v1693 = vld [vmem:[%s1684 + $0x20] sm:$0xf]
        %v1694 = vld [vmem:[%s1684 + $0x24] sm:$0xf]
        %v1695 = vld [vmem:[%s1684 + $0x28] sm:$0xf]
        %v1696 = vld [vmem:[%s1684 + $0x2c] sm:$0xf]
        %v1697 = vld [vmem:[%s1684 + $0x30] sm:$0xf]
        %v1698 = vld [vmem:[%s1684 + $0x34] sm:$0xf]
        %v1699 = vld [vmem:[%s1684 + $0x38] sm:$0xf]
        %v1700 = vld [vmem:[%s1684 + $0x3c] sm:$0xf]
        %s1701 = scalar_lea.vmem %s6, 4
        %v1702 = vld [vmem:[%s1701] sm:$0x1]
        %v1704 = vperm.slane %v1702, 0
        %v1722 = vunpack.c.l.b16 %v1685
        %v1723 = vunpack.c.l.b16 %v1686
        %v1724 = vunpack.c.l.b16 %v1687
        %v1725 = vunpack.c.l.b16 %v1688
        %v1726 = vunpack.c.l.b16 %v1689
        %v1727 = vunpack.c.l.b16 %v1690
        %v1728 = vunpack.c.l.b16 %v1691
        %v1729 = vunpack.c.l.b16 %v1692
        %v1730 = vunpack.c.l.b16 %v1693
        %v1731 = vunpack.c.l.b16 %v1694
        %v1732 = vunpack.c.l.b16 %v1695
        %v1733 = vunpack.c.l.b16 %v1696
        %v1734 = vunpack.c.l.b16 %v1697
        %v1735 = vunpack.c.l.b16 %v1698
        %v1736 = vunpack.c.l.b16 %v1699
        %v1737 = vunpack.c.l.b16 %v1700
        %v1738 = vpack.c.b16 %v1723, %v1722
        %v1739 = vpack.c.b16 %v1725, %v1724
        %v1740 = vpack.c.b16 %v1727, %v1726
        %v1741 = vpack.c.b16 %v1729, %v1728
        %v1742 = vpack.c.b16 %v1731, %v1730
        %v1743 = vpack.c.b16 %v1733, %v1732
        %v1744 = vpack.c.b16 %v1735, %v1734
        %v1745 = vpack.c.b16 %v1737, %v1736
        %1754 = vmatpush.bf16.msra.mxu0 %v1745
        %1755 = vmatpush.bf16.msra.mxu0 %v1744
        %1756 = vmatpush.bf16.msra.mxu0 %v1743
        %1757 = vmatpush.bf16.msra.mxu0 %v1742
        %1758 = vmatpush.bf16.msra.mxu0 %v1741
        %1759 = vmatpush.bf16.msra.mxu0 %v1740
        %1760 = vmatpush.bf16.msra.mxu0 %v1739
        %1761 = vmatpush.bf16.msra.mxu0 %v1738
        %1762 = vmatmul.bf16.gmra.mxu0 %v1668
        %v1763 = vpop.f32.mrf.mxu0
        %v1764 = vadd.f32 %v1704, %v1763
        %v1765 = vpop.f32.mrf.mxu0
        %v1766 = vadd.f32 %v1704, %v1765
        %1767 = vmatmul.bf16.gmra.mxu0 %v1669
        %v1768 = vpop.f32.mrf.mxu0
        %v1769 = vadd.f32 %v1704, %v1768
        %v1770 = vpop.f32.mrf.mxu0
        %v1771 = vadd.f32 %v1704, %v1770
        %1772 = vmatmul.bf16.gmra.mxu0 %v1670
        %v1773 = vpop.f32.mrf.mxu0
        %v1774 = vadd.f32 %v1704, %v1773
        %v1775 = vpop.f32.mrf.mxu0
        %v1776 = vadd.f32 %v1704, %v1775
        %1777 = vmatmul.bf16.gmra.mxu0 %v1671
        %v1778 = vpop.f32.mrf.mxu0
        %v1779 = vadd.f32 %v1704, %v1778
        %v1780 = vpop.f32.mrf.mxu0
        %v1781 = vadd.f32 %v1704, %v1780
        %1782 = vmatmul.bf16.gmra.mxu0 %v1672
        %v1783 = vpop.f32.mrf.mxu0
        %v1784 = vadd.f32 %v1704, %v1783
        %v1785 = vpop.f32.mrf.mxu0
        %v1786 = vadd.f32 %v1704, %v1785
        %1787 = vmatmul.bf16.gmra.mxu0 %v1673
        %v1788 = vpop.f32.mrf.mxu0
        %v1789 = vadd.f32 %v1704, %v1788
        %v1790 = vpop.f32.mrf.mxu0
        %v1791 = vadd.f32 %v1704, %v1790
        %1792 = vmatmul.bf16.gmra.mxu0 %v1674
        %v1793 = vpop.f32.mrf.mxu0
        %v1794 = vadd.f32 %v1704, %v1793
        %v1795 = vpop.f32.mrf.mxu0
        %v1796 = vadd.f32 %v1704, %v1795
        %1797 = vmatmul.bf16.gmra.mxu0 %v1675
        %v1798 = vpop.f32.mrf.mxu0
        %v1799 = vadd.f32 %v1704, %v1798
        %v1800 = vpop.f32.mrf.mxu0
        %v1801 = vadd.f32 %v1704, %v1800
        %1802 = vmatmul.bf16.gmra.mxu0 %v1676
        %v1803 = vpop.f32.mrf.mxu0
        %v1804 = vadd.f32 %v1704, %v1803
        %v1805 = vpop.f32.mrf.mxu0
        %v1806 = vadd.f32 %v1704, %v1805
        %1807 = vmatmul.bf16.gmra.mxu0 %v1677
        %v1808 = vpop.f32.mrf.mxu0
        %v1809 = vadd.f32 %v1704, %v1808
        %v1810 = vpop.f32.mrf.mxu0
        %v1811 = vadd.f32 %v1704, %v1810
        %1812 = vmatmul.bf16.gmra.mxu0 %v1678
        %v1813 = vpop.f32.mrf.mxu0
        %v1814 = vadd.f32 %v1704, %v1813
        %v1815 = vpop.f32.mrf.mxu0
        %v1816 = vadd.f32 %v1704, %v1815
        %1817 = vmatmul.bf16.gmra.mxu0 %v1679
        %v1818 = vpop.f32.mrf.mxu0
        %v1819 = vadd.f32 %v1704, %v1818
        %v1820 = vpop.f32.mrf.mxu0
        %v1821 = vadd.f32 %v1704, %v1820
        %1822 = vmatmul.bf16.gmra.mxu0 %v1680
        %v1823 = vpop.f32.mrf.mxu0
        %v1824 = vadd.f32 %v1704, %v1823
        %v1825 = vpop.f32.mrf.mxu0
        %v1826 = vadd.f32 %v1704, %v1825
        %1827 = vmatmul.bf16.gmra.mxu0 %v1681
        %v1828 = vpop.f32.mrf.mxu0
        %v1829 = vadd.f32 %v1704, %v1828
        %v1830 = vpop.f32.mrf.mxu0
        %v1831 = vadd.f32 %v1704, %v1830
        %1832 = vmatmul.bf16.gmra.mxu0 %v1682
        %v1833 = vpop.f32.mrf.mxu0
        %v1834 = vadd.f32 %v1704, %v1833
        %v1835 = vpop.f32.mrf.mxu0
        %v1836 = vadd.f32 %v1704, %v1835
        %1837 = vmatmul.bf16.gmra.mxu0 %v1683
        %v1838 = vpop.f32.mrf.mxu0
        %v1839 = vadd.f32 %v1704, %v1838
        %v1840 = vpop.f32.mrf.mxu0
        %v1841 = vadd.f32 %v1704, %v1840
        %1842 = vdwg.mxu0
        %v1843 = vtanh.pop %v1764
        %v1844 = vtanh.pop %v1766
        %v1845 = vtanh.pop %v1769
        %v1846 = vtanh.pop %v1771
        %v1847 = vtanh.pop %v1774
        %v1848 = vtanh.pop %v1776
        %v1849 = vtanh.pop %v1779
        %v1850 = vtanh.pop %v1781
        %v1851 = vtanh.pop %v1784
        %v1852 = vtanh.pop %v1786
        %v1853 = vtanh.pop %v1789
        %v1854 = vtanh.pop %v1791
        %v1855 = vtanh.pop %v1794
        %v1856 = vtanh.pop %v1796
        %v1857 = vtanh.pop %v1799
        %v1858 = vtanh.pop %v1801
        %v1859 = vtanh.pop %v1804
        %v1860 = vtanh.pop %v1806
        %v1861 = vtanh.pop %v1809
        %v1862 = vtanh.pop %v1811
        %v1863 = vtanh.pop %v1814
        %v1864 = vtanh.pop %v1816
        %v1865 = vtanh.pop %v1819
        %v1866 = vtanh.pop %v1821
        %v1867 = vtanh.pop %v1824
        %v1868 = vtanh.pop %v1826
        %v1869 = vtanh.pop %v1829
        %v1870 = vtanh.pop %v1831
        %v1871 = vtanh.pop %v1834
        %v1872 = vtanh.pop %v1836
        %v1873 = vtanh.pop %v1839
        %v1874 = vtanh.pop %v1841
        %v1875 = vpack.c.bf16 %v1844, %v1843
        %v1876 = vpack.c.bf16 %v1846, %v1845
        %v1877 = vpack.c.bf16 %v1848, %v1847
        %v1878 = vpack.c.bf16 %v1850, %v1849
        %v1879 = vpack.c.bf16 %v1852, %v1851
        %v1880 = vpack.c.bf16 %v1854, %v1853
        %v1881 = vpack.c.bf16 %v1856, %v1855
        %v1882 = vpack.c.bf16 %v1858, %v1857
        %v1883 = vpack.c.bf16 %v1860, %v1859
        %v1884 = vpack.c.bf16 %v1862, %v1861
        %v1885 = vpack.c.bf16 %v1864, %v1863
        %v1886 = vpack.c.bf16 %v1866, %v1865
        %v1887 = vpack.c.bf16 %v1868, %v1867
        %v1888 = vpack.c.bf16 %v1870, %v1869
        %v1889 = vpack.c.bf16 %v1872, %v1871
        %v1890 = vpack.c.bf16 %v1874, %v1873
        %s1891 = scalar_lea.vmem [#allocation8], 320
        %v1892 = vld [vmem:[%s1891] sm:$0xf]
        %v1893 = vld [vmem:[%s1891 + $0x4] sm:$0xf]
        %v1894 = vld [vmem:[%s1891 + $0x8] sm:$0xf]
        %v1895 = vld [vmem:[%s1891 + $0xc] sm:$0xf]
        %v1896 = vld [vmem:[%s1891 + $0x10] sm:$0xf]
        %v1897 = vld [vmem:[%s1891 + $0x14] sm:$0xf]
        %v1898 = vld [vmem:[%s1891 + $0x18] sm:$0xf]
        %v1899 = vld [vmem:[%s1891 + $0x1c] sm:$0xf]
        %v1900 = vld [vmem:[%s1891 + $0x20] sm:$0xf]
        %v1901 = vld [vmem:[%s1891 + $0x24] sm:$0xf]
        %v1902 = vld [vmem:[%s1891 + $0x28] sm:$0xf]
        %v1903 = vld [vmem:[%s1891 + $0x2c] sm:$0xf]
        %v1904 = vld [vmem:[%s1891 + $0x30] sm:$0xf]
        %v1905 = vld [vmem:[%s1891 + $0x34] sm:$0xf]
        %v1906 = vld [vmem:[%s1891 + $0x38] sm:$0xf]
        %v1907 = vld [vmem:[%s1891 + $0x3c] sm:$0xf]
        %s1908 = scalar_lea.vmem %s6, 5
        %v1909 = vld [vmem:[%s1908] sm:$0x1]
        %v1911 = vperm.slane %v1909, 0
        %v1929 = vunpack.c.l.b16 %v1892
        %v1930 = vunpack.c.l.b16 %v1893
        %v1931 = vunpack.c.l.b16 %v1894
        %v1932 = vunpack.c.l.b16 %v1895
        %v1933 = vunpack.c.l.b16 %v1896
        %v1934 = vunpack.c.l.b16 %v1897
        %v1935 = vunpack.c.l.b16 %v1898
        %v1936 = vunpack.c.l.b16 %v1899
        %v1937 = vunpack.c.l.b16 %v1900
        %v1938 = vunpack.c.l.b16 %v1901
        %v1939 = vunpack.c.l.b16 %v1902
        %v1940 = vunpack.c.l.b16 %v1903
        %v1941 = vunpack.c.l.b16 %v1904
        %v1942 = vunpack.c.l.b16 %v1905
        %v1943 = vunpack.c.l.b16 %v1906
        %v1944 = vunpack.c.l.b16 %v1907
        %v1945 = vpack.c.b16 %v1930, %v1929
        %v1946 = vpack.c.b16 %v1932, %v1931
        %v1947 = vpack.c.b16 %v1934, %v1933
        %v1948 = vpack.c.b16 %v1936, %v1935
        %v1949 = vpack.c.b16 %v1938, %v1937
        %v1950 = vpack.c.b16 %v1940, %v1939
        %v1951 = vpack.c.b16 %v1942, %v1941
        %v1952 = vpack.c.b16 %v1944, %v1943
        %1961 = vmatpush.bf16.msra.mxu0 %v1952
        %1962 = vmatpush.bf16.msra.mxu0 %v1951
        %1963 = vmatpush.bf16.msra.mxu0 %v1950
        %1964 = vmatpush.bf16.msra.mxu0 %v1949
        %1965 = vmatpush.bf16.msra.mxu0 %v1948
        %1966 = vmatpush.bf16.msra.mxu0 %v1947
        %1967 = vmatpush.bf16.msra.mxu0 %v1946
        %1968 = vmatpush.bf16.msra.mxu0 %v1945
        %1969 = vmatmul.bf16.gmra.mxu0 %v1875
        %v1970 = vpop.f32.mrf.mxu0
        %v1971 = vadd.f32 %v1911, %v1970
        %v1972 = vpop.f32.mrf.mxu0
        %v1973 = vadd.f32 %v1911, %v1972
        %1974 = vmatmul.bf16.gmra.mxu0 %v1876
        %v1975 = vpop.f32.mrf.mxu0
        %v1976 = vadd.f32 %v1911, %v1975
        %v1977 = vpop.f32.mrf.mxu0
        %v1978 = vadd.f32 %v1911, %v1977
        %1979 = vmatmul.bf16.gmra.mxu0 %v1877
        %v1980 = vpop.f32.mrf.mxu0
        %v1981 = vadd.f32 %v1911, %v1980
        %v1982 = vpop.f32.mrf.mxu0
        %v1983 = vadd.f32 %v1911, %v1982
        %1984 = vmatmul.bf16.gmra.mxu0 %v1878
        %v1985 = vpop.f32.mrf.mxu0
        %v1986 = vadd.f32 %v1911, %v1985
        %v1987 = vpop.f32.mrf.mxu0
        %v1988 = vadd.f32 %v1911, %v1987
        %1989 = vmatmul.bf16.gmra.mxu0 %v1879
        %v1990 = vpop.f32.mrf.mxu0
        %v1991 = vadd.f32 %v1911, %v1990
        %v1992 = vpop.f32.mrf.mxu0
        %v1993 = vadd.f32 %v1911, %v1992
        %1994 = vmatmul.bf16.gmra.mxu0 %v1880
        %v1995 = vpop.f32.mrf.mxu0
        %v1996 = vadd.f32 %v1911, %v1995
        %v1997 = vpop.f32.mrf.mxu0
        %v1998 = vadd.f32 %v1911, %v1997
        %1999 = vmatmul.bf16.gmra.mxu0 %v1881
        %v2000 = vpop.f32.mrf.mxu0
        %v2001 = vadd.f32 %v1911, %v2000
        %v2002 = vpop.f32.mrf.mxu0
        %v2003 = vadd.f32 %v1911, %v2002
        %2004 = vmatmul.bf16.gmra.mxu0 %v1882
        %v2005 = vpop.f32.mrf.mxu0
        %v2006 = vadd.f32 %v1911, %v2005
        %v2007 = vpop.f32.mrf.mxu0
        %v2008 = vadd.f32 %v1911, %v2007
        %2009 = vmatmul.bf16.gmra.mxu0 %v1883
        %v2010 = vpop.f32.mrf.mxu0
        %v2011 = vadd.f32 %v1911, %v2010
        %v2012 = vpop.f32.mrf.mxu0
        %v2013 = vadd.f32 %v1911, %v2012
        %2014 = vmatmul.bf16.gmra.mxu0 %v1884
        %v2015 = vpop.f32.mrf.mxu0
        %v2016 = vadd.f32 %v1911, %v2015
        %v2017 = vpop.f32.mrf.mxu0
        %v2018 = vadd.f32 %v1911, %v2017
        %2019 = vmatmul.bf16.gmra.mxu0 %v1885
        %v2020 = vpop.f32.mrf.mxu0
        %v2021 = vadd.f32 %v1911, %v2020
        %v2022 = vpop.f32.mrf.mxu0
        %v2023 = vadd.f32 %v1911, %v2022
        %2024 = vmatmul.bf16.gmra.mxu0 %v1886
        %v2025 = vpop.f32.mrf.mxu0
        %v2026 = vadd.f32 %v1911, %v2025
        %v2027 = vpop.f32.mrf.mxu0
        %v2028 = vadd.f32 %v1911, %v2027
        %2029 = vmatmul.bf16.gmra.mxu0 %v1887
        %v2030 = vpop.f32.mrf.mxu0
        %v2031 = vadd.f32 %v1911, %v2030
        %v2032 = vpop.f32.mrf.mxu0
        %v2033 = vadd.f32 %v1911, %v2032
        %2034 = vmatmul.bf16.gmra.mxu0 %v1888
        %v2035 = vpop.f32.mrf.mxu0
        %v2036 = vadd.f32 %v1911, %v2035
        %v2037 = vpop.f32.mrf.mxu0
        %v2038 = vadd.f32 %v1911, %v2037
        %2039 = vmatmul.bf16.gmra.mxu0 %v1889
        %v2040 = vpop.f32.mrf.mxu0
        %v2041 = vadd.f32 %v1911, %v2040
        %v2042 = vpop.f32.mrf.mxu0
        %v2043 = vadd.f32 %v1911, %v2042
        %2044 = vmatmul.bf16.gmra.mxu0 %v1890
        %v2045 = vpop.f32.mrf.mxu0
        %v2046 = vadd.f32 %v1911, %v2045
        %v2047 = vpop.f32.mrf.mxu0
        %v2048 = vadd.f32 %v1911, %v2047
        %2049 = vdwg.mxu0
        %v2050 = vtanh.pop %v1971
        %v2051 = vtanh.pop %v1973
        %v2052 = vtanh.pop %v1976
        %v2053 = vtanh.pop %v1978
        %v2054 = vtanh.pop %v1981
        %v2055 = vtanh.pop %v1983
        %v2056 = vtanh.pop %v1986
        %v2057 = vtanh.pop %v1988
        %v2058 = vtanh.pop %v1991
        %v2059 = vtanh.pop %v1993
        %v2060 = vtanh.pop %v1996
        %v2061 = vtanh.pop %v1998
        %v2062 = vtanh.pop %v2001
        %v2063 = vtanh.pop %v2003
        %v2064 = vtanh.pop %v2006
        %v2065 = vtanh.pop %v2008
        %v2066 = vtanh.pop %v2011
        %v2067 = vtanh.pop %v2013
        %v2068 = vtanh.pop %v2016
        %v2069 = vtanh.pop %v2018
        %v2070 = vtanh.pop %v2021
        %v2071 = vtanh.pop %v2023
        %v2072 = vtanh.pop %v2026
        %v2073 = vtanh.pop %v2028
        %v2074 = vtanh.pop %v2031
        %v2075 = vtanh.pop %v2033
        %v2076 = vtanh.pop %v2036
        %v2077 = vtanh.pop %v2038
        %v2078 = vtanh.pop %v2041
        %v2079 = vtanh.pop %v2043
        %v2080 = vtanh.pop %v2046
        %v2081 = vtanh.pop %v2048
        %v2082 = vpack.c.bf16 %v2051, %v2050
        %v2083 = vpack.c.bf16 %v2053, %v2052
        %v2084 = vpack.c.bf16 %v2055, %v2054
        %v2085 = vpack.c.bf16 %v2057, %v2056
        %v2086 = vpack.c.bf16 %v2059, %v2058
        %v2087 = vpack.c.bf16 %v2061, %v2060
        %v2088 = vpack.c.bf16 %v2063, %v2062
        %v2089 = vpack.c.bf16 %v2065, %v2064
        %v2090 = vpack.c.bf16 %v2067, %v2066
        %v2091 = vpack.c.bf16 %v2069, %v2068
        %v2092 = vpack.c.bf16 %v2071, %v2070
        %v2093 = vpack.c.bf16 %v2073, %v2072
        %v2094 = vpack.c.bf16 %v2075, %v2074
        %v2095 = vpack.c.bf16 %v2077, %v2076
        %v2096 = vpack.c.bf16 %v2079, %v2078
        %v2097 = vpack.c.bf16 %v2081, %v2080
        %s2098 = scalar_lea.vmem [#allocation8], 384
        %v2099 = vld [vmem:[%s2098] sm:$0xf]
        %v2100 = vld [vmem:[%s2098 + $0x4] sm:$0xf]
        %v2101 = vld [vmem:[%s2098 + $0x8] sm:$0xf]
        %v2102 = vld [vmem:[%s2098 + $0xc] sm:$0xf]
        %v2103 = vld [vmem:[%s2098 + $0x10] sm:$0xf]
        %v2104 = vld [vmem:[%s2098 + $0x14] sm:$0xf]
        %v2105 = vld [vmem:[%s2098 + $0x18] sm:$0xf]
        %v2106 = vld [vmem:[%s2098 + $0x1c] sm:$0xf]
        %v2107 = vld [vmem:[%s2098 + $0x20] sm:$0xf]
        %v2108 = vld [vmem:[%s2098 + $0x24] sm:$0xf]
        %v2109 = vld [vmem:[%s2098 + $0x28] sm:$0xf]
        %v2110 = vld [vmem:[%s2098 + $0x2c] sm:$0xf]
        %v2111 = vld [vmem:[%s2098 + $0x30] sm:$0xf]
        %v2112 = vld [vmem:[%s2098 + $0x34] sm:$0xf]
        %v2113 = vld [vmem:[%s2098 + $0x38] sm:$0xf]
        %v2114 = vld [vmem:[%s2098 + $0x3c] sm:$0xf]
        %s2115 = scalar_lea.vmem %s6, 6
        %v2116 = vld [vmem:[%s2115] sm:$0x1]
        %v2118 = vperm.slane %v2116, 0
        %v2136 = vunpack.c.l.b16 %v2099
        %v2137 = vunpack.c.l.b16 %v2100
        %v2138 = vunpack.c.l.b16 %v2101
        %v2139 = vunpack.c.l.b16 %v2102
        %v2140 = vunpack.c.l.b16 %v2103
        %v2141 = vunpack.c.l.b16 %v2104
        %v2142 = vunpack.c.l.b16 %v2105
        %v2143 = vunpack.c.l.b16 %v2106
        %v2144 = vunpack.c.l.b16 %v2107
        %v2145 = vunpack.c.l.b16 %v2108
        %v2146 = vunpack.c.l.b16 %v2109
        %v2147 = vunpack.c.l.b16 %v2110
        %v2148 = vunpack.c.l.b16 %v2111
        %v2149 = vunpack.c.l.b16 %v2112
        %v2150 = vunpack.c.l.b16 %v2113
        %v2151 = vunpack.c.l.b16 %v2114
        %v2152 = vpack.c.b16 %v2137, %v2136
        %v2153 = vpack.c.b16 %v2139, %v2138
        %v2154 = vpack.c.b16 %v2141, %v2140
        %v2155 = vpack.c.b16 %v2143, %v2142
        %v2156 = vpack.c.b16 %v2145, %v2144
        %v2157 = vpack.c.b16 %v2147, %v2146
        %v2158 = vpack.c.b16 %v2149, %v2148
        %v2159 = vpack.c.b16 %v2151, %v2150
        %2168 = vmatpush.bf16.msra.mxu0 %v2159
        %2169 = vmatpush.bf16.msra.mxu0 %v2158
        %2170 = vmatpush.bf16.msra.mxu0 %v2157
        %2171 = vmatpush.bf16.msra.mxu0 %v2156
        %2172 = vmatpush.bf16.msra.mxu0 %v2155
        %2173 = vmatpush.bf16.msra.mxu0 %v2154
        %2174 = vmatpush.bf16.msra.mxu0 %v2153
        %2175 = vmatpush.bf16.msra.mxu0 %v2152
        %2176 = vmatmul.bf16.gmra.mxu0 %v2082
        %v2177 = vpop.f32.mrf.mxu0
        %v2178 = vadd.f32 %v2118, %v2177
        %v2179 = vpop.f32.mrf.mxu0
        %v2180 = vadd.f32 %v2118, %v2179
        %2181 = vmatmul.bf16.gmra.mxu0 %v2083
        %v2182 = vpop.f32.mrf.mxu0
        %v2183 = vadd.f32 %v2118, %v2182
        %v2184 = vpop.f32.mrf.mxu0
        %v2185 = vadd.f32 %v2118, %v2184
        %2186 = vmatmul.bf16.gmra.mxu0 %v2084
        %v2187 = vpop.f32.mrf.mxu0
        %v2188 = vadd.f32 %v2118, %v2187
        %v2189 = vpop.f32.mrf.mxu0
        %v2190 = vadd.f32 %v2118, %v2189
        %2191 = vmatmul.bf16.gmra.mxu0 %v2085
        %v2192 = vpop.f32.mrf.mxu0
        %v2193 = vadd.f32 %v2118, %v2192
        %v2194 = vpop.f32.mrf.mxu0
        %v2195 = vadd.f32 %v2118, %v2194
        %2196 = vmatmul.bf16.gmra.mxu0 %v2086
        %v2197 = vpop.f32.mrf.mxu0
        %v2198 = vadd.f32 %v2118, %v2197
        %v2199 = vpop.f32.mrf.mxu0
        %v2200 = vadd.f32 %v2118, %v2199
        %2201 = vmatmul.bf16.gmra.mxu0 %v2087
        %v2202 = vpop.f32.mrf.mxu0
        %v2203 = vadd.f32 %v2118, %v2202
        %v2204 = vpop.f32.mrf.mxu0
        %v2205 = vadd.f32 %v2118, %v2204
        %2206 = vmatmul.bf16.gmra.mxu0 %v2088
        %v2207 = vpop.f32.mrf.mxu0
        %v2208 = vadd.f32 %v2118, %v2207
        %v2209 = vpop.f32.mrf.mxu0
        %v2210 = vadd.f32 %v2118, %v2209
        %2211 = vmatmul.bf16.gmra.mxu0 %v2089
        %v2212 = vpop.f32.mrf.mxu0
        %v2213 = vadd.f32 %v2118, %v2212
        %v2214 = vpop.f32.mrf.mxu0
        %v2215 = vadd.f32 %v2118, %v2214
        %2216 = vmatmul.bf16.gmra.mxu0 %v2090
        %v2217 = vpop.f32.mrf.mxu0
        %v2218 = vadd.f32 %v2118, %v2217
        %v2219 = vpop.f32.mrf.mxu0
        %v2220 = vadd.f32 %v2118, %v2219
        %2221 = vmatmul.bf16.gmra.mxu0 %v2091
        %v2222 = vpop.f32.mrf.mxu0
        %v2223 = vadd.f32 %v2118, %v2222
        %v2224 = vpop.f32.mrf.mxu0
        %v2225 = vadd.f32 %v2118, %v2224
        %2226 = vmatmul.bf16.gmra.mxu0 %v2092
        %v2227 = vpop.f32.mrf.mxu0
        %v2228 = vadd.f32 %v2118, %v2227
        %v2229 = vpop.f32.mrf.mxu0
        %v2230 = vadd.f32 %v2118, %v2229
        %2231 = vmatmul.bf16.gmra.mxu0 %v2093
        %v2232 = vpop.f32.mrf.mxu0
        %v2233 = vadd.f32 %v2118, %v2232
        %v2234 = vpop.f32.mrf.mxu0
        %v2235 = vadd.f32 %v2118, %v2234
        %2236 = vmatmul.bf16.gmra.mxu0 %v2094
        %v2237 = vpop.f32.mrf.mxu0
        %v2238 = vadd.f32 %v2118, %v2237
        %v2239 = vpop.f32.mrf.mxu0
        %v2240 = vadd.f32 %v2118, %v2239
        %2241 = vmatmul.bf16.gmra.mxu0 %v2095
        %v2242 = vpop.f32.mrf.mxu0
        %v2243 = vadd.f32 %v2118, %v2242
        %v2244 = vpop.f32.mrf.mxu0
        %v2245 = vadd.f32 %v2118, %v2244
        %2246 = vmatmul.bf16.gmra.mxu0 %v2096
        %v2247 = vpop.f32.mrf.mxu0
        %v2248 = vadd.f32 %v2118, %v2247
        %v2249 = vpop.f32.mrf.mxu0
        %v2250 = vadd.f32 %v2118, %v2249
        %2251 = vmatmul.bf16.gmra.mxu0 %v2097
        %v2252 = vpop.f32.mrf.mxu0
        %v2253 = vadd.f32 %v2118, %v2252
        %v2254 = vpop.f32.mrf.mxu0
        %v2255 = vadd.f32 %v2118, %v2254
        %2256 = vdwg.mxu0
        %v2257 = vtanh.pop %v2178
        %v2258 = vtanh.pop %v2180
        %v2259 = vtanh.pop %v2183
        %v2260 = vtanh.pop %v2185
        %v2261 = vtanh.pop %v2188
        %v2262 = vtanh.pop %v2190
        %v2263 = vtanh.pop %v2193
        %v2264 = vtanh.pop %v2195
        %v2265 = vtanh.pop %v2198
        %v2266 = vtanh.pop %v2200
        %v2267 = vtanh.pop %v2203
        %v2268 = vtanh.pop %v2205
        %v2269 = vtanh.pop %v2208
        %v2270 = vtanh.pop %v2210
        %v2271 = vtanh.pop %v2213
        %v2272 = vtanh.pop %v2215
        %v2273 = vtanh.pop %v2218
        %v2274 = vtanh.pop %v2220
        %v2275 = vtanh.pop %v2223
        %v2276 = vtanh.pop %v2225
        %v2277 = vtanh.pop %v2228
        %v2278 = vtanh.pop %v2230
        %v2279 = vtanh.pop %v2233
        %v2280 = vtanh.pop %v2235
        %v2281 = vtanh.pop %v2238
        %v2282 = vtanh.pop %v2240
        %v2283 = vtanh.pop %v2243
        %v2284 = vtanh.pop %v2245
        %v2285 = vtanh.pop %v2248
        %v2286 = vtanh.pop %v2250
        %v2287 = vtanh.pop %v2253
        %v2288 = vtanh.pop %v2255
        %v2289 = vpack.c.bf16 %v2258, %v2257
        %v2290 = vpack.c.bf16 %v2260, %v2259
        %v2291 = vpack.c.bf16 %v2262, %v2261
        %v2292 = vpack.c.bf16 %v2264, %v2263
        %v2293 = vpack.c.bf16 %v2266, %v2265
        %v2294 = vpack.c.bf16 %v2268, %v2267
        %v2295 = vpack.c.bf16 %v2270, %v2269
        %v2296 = vpack.c.bf16 %v2272, %v2271
        %v2297 = vpack.c.bf16 %v2274, %v2273
        %v2298 = vpack.c.bf16 %v2276, %v2275
        %v2299 = vpack.c.bf16 %v2278, %v2277
        %v2300 = vpack.c.bf16 %v2280, %v2279
        %v2301 = vpack.c.bf16 %v2282, %v2281
        %v2302 = vpack.c.bf16 %v2284, %v2283
        %v2303 = vpack.c.bf16 %v2286, %v2285
        %v2304 = vpack.c.bf16 %v2288, %v2287
        %s2305 = scalar_lea.vmem [#allocation8], 448
        %v2306 = vld [vmem:[%s2305] sm:$0xf]
        %v2307 = vld [vmem:[%s2305 + $0x4] sm:$0xf]
        %v2308 = vld [vmem:[%s2305 + $0x8] sm:$0xf]
        %v2309 = vld [vmem:[%s2305 + $0xc] sm:$0xf]
        %v2310 = vld [vmem:[%s2305 + $0x10] sm:$0xf]
        %v2311 = vld [vmem:[%s2305 + $0x14] sm:$0xf]
        %v2312 = vld [vmem:[%s2305 + $0x18] sm:$0xf]
        %v2313 = vld [vmem:[%s2305 + $0x1c] sm:$0xf]
        %v2314 = vld [vmem:[%s2305 + $0x20] sm:$0xf]
        %v2315 = vld [vmem:[%s2305 + $0x24] sm:$0xf]
        %v2316 = vld [vmem:[%s2305 + $0x28] sm:$0xf]
        %v2317 = vld [vmem:[%s2305 + $0x2c] sm:$0xf]
        %v2318 = vld [vmem:[%s2305 + $0x30] sm:$0xf]
        %v2319 = vld [vmem:[%s2305 + $0x34] sm:$0xf]
        %v2320 = vld [vmem:[%s2305 + $0x38] sm:$0xf]
        %v2321 = vld [vmem:[%s2305 + $0x3c] sm:$0xf]
        %s2322 = scalar_lea.vmem %s6, 7
        %v2323 = vld [vmem:[%s2322] sm:$0x1]
        %v2325 = vperm.slane %v2323, 0
        %v2343 = vunpack.c.l.b16 %v2306
        %v2344 = vunpack.c.l.b16 %v2307
        %v2345 = vunpack.c.l.b16 %v2308
        %v2346 = vunpack.c.l.b16 %v2309
        %v2347 = vunpack.c.l.b16 %v2310
        %v2348 = vunpack.c.l.b16 %v2311
        %v2349 = vunpack.c.l.b16 %v2312
        %v2350 = vunpack.c.l.b16 %v2313
        %v2351 = vunpack.c.l.b16 %v2314
        %v2352 = vunpack.c.l.b16 %v2315
        %v2353 = vunpack.c.l.b16 %v2316
        %v2354 = vunpack.c.l.b16 %v2317
        %v2355 = vunpack.c.l.b16 %v2318
        %v2356 = vunpack.c.l.b16 %v2319
        %v2357 = vunpack.c.l.b16 %v2320
        %v2358 = vunpack.c.l.b16 %v2321
        %v2359 = vpack.c.b16 %v2344, %v2343
        %v2360 = vpack.c.b16 %v2346, %v2345
        %v2361 = vpack.c.b16 %v2348, %v2347
        %v2362 = vpack.c.b16 %v2350, %v2349
        %v2363 = vpack.c.b16 %v2352, %v2351
        %v2364 = vpack.c.b16 %v2354, %v2353
        %v2365 = vpack.c.b16 %v2356, %v2355
        %v2366 = vpack.c.b16 %v2358, %v2357
        %2375 = vmatpush.bf16.msra.mxu0 %v2366
        %2376 = vmatpush.bf16.msra.mxu0 %v2365
        %2377 = vmatpush.bf16.msra.mxu0 %v2364
        %2378 = vmatpush.bf16.msra.mxu0 %v2363
        %2379 = vmatpush.bf16.msra.mxu0 %v2362
        %2380 = vmatpush.bf16.msra.mxu0 %v2361
        %2381 = vmatpush.bf16.msra.mxu0 %v2360
        %2382 = vmatpush.bf16.msra.mxu0 %v2359
        %2383 = vmatmul.bf16.gmra.mxu0 %v2289
        %v2384 = vpop.f32.mrf.mxu0
        %v2385 = vadd.f32 %v2325, %v2384
        %v2386 = vpop.f32.mrf.mxu0
        %v2387 = vadd.f32 %v2325, %v2386
        %2388 = vmatmul.bf16.gmra.mxu0 %v2290
        %v2389 = vpop.f32.mrf.mxu0
        %v2390 = vadd.f32 %v2325, %v2389
        %v2391 = vpop.f32.mrf.mxu0
        %v2392 = vadd.f32 %v2325, %v2391
        %2393 = vmatmul.bf16.gmra.mxu0 %v2291
        %v2394 = vpop.f32.mrf.mxu0
        %v2395 = vadd.f32 %v2325, %v2394
        %v2396 = vpop.f32.mrf.mxu0
        %v2397 = vadd.f32 %v2325, %v2396
        %2398 = vmatmul.bf16.gmra.mxu0 %v2292
        %v2399 = vpop.f32.mrf.mxu0
        %v2400 = vadd.f32 %v2325, %v2399
        %v2401 = vpop.f32.mrf.mxu0
        %v2402 = vadd.f32 %v2325, %v2401
        %2403 = vmatmul.bf16.gmra.mxu0 %v2293
        %v2404 = vpop.f32.mrf.mxu0
        %v2405 = vadd.f32 %v2325, %v2404
        %v2406 = vpop.f32.mrf.mxu0
        %v2407 = vadd.f32 %v2325, %v2406
        %2408 = vmatmul.bf16.gmra.mxu0 %v2294
        %v2409 = vpop.f32.mrf.mxu0
        %v2410 = vadd.f32 %v2325, %v2409
        %v2411 = vpop.f32.mrf.mxu0
        %v2412 = vadd.f32 %v2325, %v2411
        %2413 = vmatmul.bf16.gmra.mxu0 %v2295
        %v2414 = vpop.f32.mrf.mxu0
        %v2415 = vadd.f32 %v2325, %v2414
        %v2416 = vpop.f32.mrf.mxu0
        %v2417 = vadd.f32 %v2325, %v2416
        %2418 = vmatmul.bf16.gmra.mxu0 %v2296
        %v2419 = vpop.f32.mrf.mxu0
        %v2420 = vadd.f32 %v2325, %v2419
        %v2421 = vpop.f32.mrf.mxu0
        %v2422 = vadd.f32 %v2325, %v2421
        %2423 = vmatmul.bf16.gmra.mxu0 %v2297
        %v2424 = vpop.f32.mrf.mxu0
        %v2425 = vadd.f32 %v2325, %v2424
        %v2426 = vpop.f32.mrf.mxu0
        %v2427 = vadd.f32 %v2325, %v2426
        %2428 = vmatmul.bf16.gmra.mxu0 %v2298
        %v2429 = vpop.f32.mrf.mxu0
        %v2430 = vadd.f32 %v2325, %v2429
        %v2431 = vpop.f32.mrf.mxu0
        %v2432 = vadd.f32 %v2325, %v2431
        %2433 = vmatmul.bf16.gmra.mxu0 %v2299
        %v2434 = vpop.f32.mrf.mxu0
        %v2435 = vadd.f32 %v2325, %v2434
        %v2436 = vpop.f32.mrf.mxu0
        %v2437 = vadd.f32 %v2325, %v2436
        %2438 = vmatmul.bf16.gmra.mxu0 %v2300
        %v2439 = vpop.f32.mrf.mxu0
        %v2440 = vadd.f32 %v2325, %v2439
        %v2441 = vpop.f32.mrf.mxu0
        %v2442 = vadd.f32 %v2325, %v2441
        %2443 = vmatmul.bf16.gmra.mxu0 %v2301
        %v2444 = vpop.f32.mrf.mxu0
        %v2445 = vadd.f32 %v2325, %v2444
        %v2446 = vpop.f32.mrf.mxu0
        %v2447 = vadd.f32 %v2325, %v2446
        %2448 = vmatmul.bf16.gmra.mxu0 %v2302
        %v2449 = vpop.f32.mrf.mxu0
        %v2450 = vadd.f32 %v2325, %v2449
        %v2451 = vpop.f32.mrf.mxu0
        %v2452 = vadd.f32 %v2325, %v2451
        %2453 = vmatmul.bf16.gmra.mxu0 %v2303
        %v2454 = vpop.f32.mrf.mxu0
        %v2455 = vadd.f32 %v2325, %v2454
        %v2456 = vpop.f32.mrf.mxu0
        %v2457 = vadd.f32 %v2325, %v2456
        %2458 = vmatmul.bf16.gmra.mxu0 %v2304
        %v2459 = vpop.f32.mrf.mxu0
        %v2460 = vadd.f32 %v2325, %v2459
        %v2461 = vpop.f32.mrf.mxu0
        %v2462 = vadd.f32 %v2325, %v2461
        %2463 = vdwg.mxu0
        %v2464 = vtanh.pop %v2385
        %v2465 = vtanh.pop %v2387
        %v2466 = vtanh.pop %v2390
        %v2467 = vtanh.pop %v2392
        %v2468 = vtanh.pop %v2395
        %v2469 = vtanh.pop %v2397
        %v2470 = vtanh.pop %v2400
        %v2471 = vtanh.pop %v2402
        %v2472 = vtanh.pop %v2405
        %v2473 = vtanh.pop %v2407
        %v2474 = vtanh.pop %v2410
        %v2475 = vtanh.pop %v2412
        %v2476 = vtanh.pop %v2415
        %v2477 = vtanh.pop %v2417
        %v2478 = vtanh.pop %v2420
        %v2479 = vtanh.pop %v2422
        %v2480 = vtanh.pop %v2425
        %v2481 = vtanh.pop %v2427
        %v2482 = vtanh.pop %v2430
        %v2483 = vtanh.pop %v2432
        %v2484 = vtanh.pop %v2435
        %v2485 = vtanh.pop %v2437
        %v2486 = vtanh.pop %v2440
        %v2487 = vtanh.pop %v2442
        %v2488 = vtanh.pop %v2445
        %v2489 = vtanh.pop %v2447
        %v2490 = vtanh.pop %v2450
        %v2491 = vtanh.pop %v2452
        %v2492 = vtanh.pop %v2455
        %v2493 = vtanh.pop %v2457
        %v2494 = vtanh.pop %v2460
        %v2495 = vtanh.pop %v2462
        %v2496 = vld [vmem:[%s7] sm:$0x1]
        %v2498 = vperm.slane %v2496, 0
        %v2500 = vmul.f32 %v2464, %v2498
        %v2501 = vmul.f32 %v2465, %v2498
        %v2502 = vmul.f32 %v2466, %v2498
        %v2503 = vmul.f32 %v2467, %v2498
        %v2504 = vmul.f32 %v2468, %v2498
        %v2505 = vmul.f32 %v2469, %v2498
        %v2506 = vmul.f32 %v2470, %v2498
        %v2507 = vmul.f32 %v2471, %v2498
        %v2508 = vmul.f32 %v2472, %v2498
        %v2509 = vmul.f32 %v2473, %v2498
        %v2510 = vmul.f32 %v2474, %v2498
        %v2511 = vmul.f32 %v2475, %v2498
        %v2512 = vmul.f32 %v2476, %v2498
        %v2513 = vmul.f32 %v2477, %v2498
        %v2514 = vmul.f32 %v2478, %v2498
        %v2515 = vmul.f32 %v2479, %v2498
        %v2516 = vmul.f32 %v2480, %v2498
        %v2517 = vmul.f32 %v2481, %v2498
        %v2518 = vmul.f32 %v2482, %v2498
        %v2519 = vmul.f32 %v2483, %v2498
        %v2520 = vmul.f32 %v2484, %v2498
        %v2521 = vmul.f32 %v2485, %v2498
        %v2522 = vmul.f32 %v2486, %v2498
        %v2523 = vmul.f32 %v2487, %v2498
        %v2524 = vmul.f32 %v2488, %v2498
        %v2525 = vmul.f32 %v2489, %v2498
        %v2526 = vmul.f32 %v2490, %v2498
        %v2527 = vmul.f32 %v2491, %v2498
        %v2528 = vmul.f32 %v2492, %v2498
        %v2529 = vmul.f32 %v2493, %v2498
        %v2530 = vmul.f32 %v2494, %v2498
        %v2531 = vmul.f32 %v2495, %v2498
        %2532 = vadd.xlane.f32.xlu0 %v2500
        %v2533 = vpop.xlane.xlu0 %2532
        %2534 = vadd.xlane.f32.xlu0 %v2501
        %v2535 = vpop.xlane.xlu0 %2534
        %2536 = vadd.xlane.f32.xlu0 %v2502
        %v2537 = vpop.xlane.xlu0 %2536
        %2538 = vadd.xlane.f32.xlu0 %v2503
        %v2539 = vpop.xlane.xlu0 %2538
        %2540 = vadd.xlane.f32.xlu0 %v2504
        %v2541 = vpop.xlane.xlu0 %2540
        %2542 = vadd.xlane.f32.xlu0 %v2505
        %v2543 = vpop.xlane.xlu0 %2542
        %2544 = vadd.xlane.f32.xlu0 %v2506
        %v2545 = vpop.xlane.xlu0 %2544
        %2546 = vadd.xlane.f32.xlu0 %v2507
        %v2547 = vpop.xlane.xlu0 %2546
        %2548 = vadd.xlane.f32.xlu0 %v2508
        %v2549 = vpop.xlane.xlu0 %2548
        %2550 = vadd.xlane.f32.xlu0 %v2509
        %v2551 = vpop.xlane.xlu0 %2550
        %2552 = vadd.xlane.f32.xlu0 %v2510
        %v2553 = vpop.xlane.xlu0 %2552
        %2554 = vadd.xlane.f32.xlu0 %v2511
        %v2555 = vpop.xlane.xlu0 %2554
        %2556 = vadd.xlane.f32.xlu0 %v2512
        %v2557 = vpop.xlane.xlu0 %2556
        %2558 = vadd.xlane.f32.xlu0 %v2513
        %v2559 = vpop.xlane.xlu0 %2558
        %2560 = vadd.xlane.f32.xlu0 %v2514
        %v2561 = vpop.xlane.xlu0 %2560
        %2562 = vadd.xlane.f32.xlu0 %v2515
        %v2563 = vpop.xlane.xlu0 %2562
        %2564 = vadd.xlane.f32.xlu0 %v2516
        %v2565 = vpop.xlane.xlu0 %2564
        %2566 = vadd.xlane.f32.xlu0 %v2517
        %v2567 = vpop.xlane.xlu0 %2566
        %2568 = vadd.xlane.f32.xlu0 %v2518
        %v2569 = vpop.xlane.xlu0 %2568
        %2570 = vadd.xlane.f32.xlu0 %v2519
        %v2571 = vpop.xlane.xlu0 %2570
        %2572 = vadd.xlane.f32.xlu0 %v2520
        %v2573 = vpop.xlane.xlu0 %2572
        %2574 = vadd.xlane.f32.xlu0 %v2521
        %v2575 = vpop.xlane.xlu0 %2574
        %2576 = vadd.xlane.f32.xlu0 %v2522
        %v2577 = vpop.xlane.xlu0 %2576
        %2578 = vadd.xlane.f32.xlu0 %v2523
        %v2579 = vpop.xlane.xlu0 %2578
        %2580 = vadd.xlane.f32.xlu0 %v2524
        %v2581 = vpop.xlane.xlu0 %2580
        %2582 = vadd.xlane.f32.xlu0 %v2525
        %v2583 = vpop.xlane.xlu0 %2582
        %2584 = vadd.xlane.f32.xlu0 %v2526
        %v2585 = vpop.xlane.xlu0 %2584
        %2586 = vadd.xlane.f32.xlu0 %v2527
        %v2587 = vpop.xlane.xlu0 %2586
        %2588 = vadd.xlane.f32.xlu0 %v2528
        %v2589 = vpop.xlane.xlu0 %2588
        %2590 = vadd.xlane.f32.xlu0 %v2529
        %v2591 = vpop.xlane.xlu0 %2590
        %2592 = vadd.xlane.f32.xlu0 %v2530
        %v2593 = vpop.xlane.xlu0 %2592
        %2594 = vadd.xlane.f32.xlu0 %v2531
        %v2595 = vpop.xlane.xlu0 %2594
        %s2596 = sld [smem:[#allocation6]]
        %v2597 = vstv %s2596
        %v2598 = vadd.f32 %v2533, %v2597
        %v2599 = vadd.f32 %v2535, %v2597
        %v2600 = vadd.f32 %v2537, %v2597
        %v2601 = vadd.f32 %v2539, %v2597
        %v2602 = vadd.f32 %v2541, %v2597
        %v2603 = vadd.f32 %v2543, %v2597
        %v2604 = vadd.f32 %v2545, %v2597
        %v2605 = vadd.f32 %v2547, %v2597
        %v2606 = vadd.f32 %v2549, %v2597
        %v2607 = vadd.f32 %v2551, %v2597
        %v2608 = vadd.f32 %v2553, %v2597
        %v2609 = vadd.f32 %v2555, %v2597
        %v2610 = vadd.f32 %v2557, %v2597
        %v2611 = vadd.f32 %v2559, %v2597
        %v2612 = vadd.f32 %v2561, %v2597
        %v2613 = vadd.f32 %v2563, %v2597
        %v2614 = vadd.f32 %v2565, %v2597
        %v2615 = vadd.f32 %v2567, %v2597
        %v2616 = vadd.f32 %v2569, %v2597
        %v2617 = vadd.f32 %v2571, %v2597
        %v2618 = vadd.f32 %v2573, %v2597
        %v2619 = vadd.f32 %v2575, %v2597
        %v2620 = vadd.f32 %v2577, %v2597
        %v2621 = vadd.f32 %v2579, %v2597
        %v2622 = vadd.f32 %v2581, %v2597
        %v2623 = vadd.f32 %v2583, %v2597
        %v2624 = vadd.f32 %v2585, %v2597
        %v2625 = vadd.f32 %v2587, %v2597
        %v2626 = vadd.f32 %v2589, %v2597
        %v2627 = vadd.f32 %v2591, %v2597
        %v2628 = vadd.f32 %v2593, %v2597
        %v2629 = vadd.f32 %v2595, %v2597
        %v2630 = vmul.f32 %v2598, 1.442695
        %v2631 = vpow.pop %v2630
        %v2632 = vmul.f32 %v2599, 1.442695
        %v2633 = vpow.pop %v2632
        %v2634 = vmul.f32 %v2600, 1.442695
        %v2635 = vpow.pop %v2634
        %v2636 = vmul.f32 %v2601, 1.442695
        %v2637 = vpow.pop %v2636
        %v2638 = vmul.f32 %v2602, 1.442695
        %v2639 = vpow.pop %v2638
        %v2640 = vmul.f32 %v2603, 1.442695
        %v2641 = vpow.pop %v2640
        %v2642 = vmul.f32 %v2604, 1.442695
        %v2643 = vpow.pop %v2642
        %v2644 = vmul.f32 %v2605, 1.442695
        %v2645 = vpow.pop %v2644
        %v2646 = vmul.f32 %v2606, 1.442695
        %v2647 = vpow.pop %v2646
        %v2648 = vmul.f32 %v2607, 1.442695
        %v2649 = vpow.pop %v2648
        %v2650 = vmul.f32 %v2608, 1.442695
        %v2651 = vpow.pop %v2650
        %v2652 = vmul.f32 %v2609, 1.442695
        %v2653 = vpow.pop %v2652
        %v2654 = vmul.f32 %v2610, 1.442695
        %v2655 = vpow.pop %v2654
        %v2656 = vmul.f32 %v2611, 1.442695
        %v2657 = vpow.pop %v2656
        %v2658 = vmul.f32 %v2612, 1.442695
        %v2659 = vpow.pop %v2658
        %v2660 = vmul.f32 %v2613, 1.442695
        %v2661 = vpow.pop %v2660
        %v2662 = vmul.f32 %v2614, 1.442695
        %v2663 = vpow.pop %v2662
        %v2664 = vmul.f32 %v2615, 1.442695
        %v2665 = vpow.pop %v2664
        %v2666 = vmul.f32 %v2616, 1.442695
        %v2667 = vpow.pop %v2666
        %v2668 = vmul.f32 %v2617, 1.442695
        %v2669 = vpow.pop %v2668
        %v2670 = vmul.f32 %v2618, 1.442695
        %v2671 = vpow.pop %v2670
        %v2672 = vmul.f32 %v2619, 1.442695
        %v2673 = vpow.pop %v2672
        %v2674 = vmul.f32 %v2620, 1.442695
        %v2675 = vpow.pop %v2674
        %v2676 = vmul.f32 %v2621, 1.442695
        %v2677 = vpow.pop %v2676
        %v2678 = vmul.f32 %v2622, 1.442695
        %v2679 = vpow.pop %v2678
        %v2680 = vmul.f32 %v2623, 1.442695
        %v2681 = vpow.pop %v2680
        %v2682 = vmul.f32 %v2624, 1.442695
        %v2683 = vpow.pop %v2682
        %v2684 = vmul.f32 %v2625, 1.442695
        %v2685 = vpow.pop %v2684
        %v2686 = vmul.f32 %v2626, 1.442695
        %v2687 = vpow.pop %v2686
        %v2688 = vmul.f32 %v2627, 1.442695
        %v2689 = vpow.pop %v2688
        %v2690 = vmul.f32 %v2628, 1.442695
        %v2691 = vpow.pop %v2690
        %v2692 = vmul.f32 %v2629, 1.442695
        %v2693 = vpow.pop %v2692
        %v2694 = vsub.f32 0.0, %v2631
        %v2695 = vsub.f32 0.0, %v2633
        %v2696 = vsub.f32 0.0, %v2635
        %v2697 = vsub.f32 0.0, %v2637
        %v2698 = vsub.f32 0.0, %v2639
        %v2699 = vsub.f32 0.0, %v2641
        %v2700 = vsub.f32 0.0, %v2643
        %v2701 = vsub.f32 0.0, %v2645
        %v2702 = vsub.f32 0.0, %v2647
        %v2703 = vsub.f32 0.0, %v2649
        %v2704 = vsub.f32 0.0, %v2651
        %v2705 = vsub.f32 0.0, %v2653
        %v2706 = vsub.f32 0.0, %v2655
        %v2707 = vsub.f32 0.0, %v2657
        %v2708 = vsub.f32 0.0, %v2659
        %v2709 = vsub.f32 0.0, %v2661
        %v2710 = vsub.f32 0.0, %v2663
        %v2711 = vsub.f32 0.0, %v2665
        %v2712 = vsub.f32 0.0, %v2667
        %v2713 = vsub.f32 0.0, %v2669
        %v2714 = vsub.f32 0.0, %v2671
        %v2715 = vsub.f32 0.0, %v2673
        %v2716 = vsub.f32 0.0, %v2675
        %v2717 = vsub.f32 0.0, %v2677
        %v2718 = vsub.f32 0.0, %v2679
        %v2719 = vsub.f32 0.0, %v2681
        %v2720 = vsub.f32 0.0, %v2683
        %v2721 = vsub.f32 0.0, %v2685
        %v2722 = vsub.f32 0.0, %v2687
        %v2723 = vsub.f32 0.0, %v2689
        %v2724 = vsub.f32 0.0, %v2691
        %v2725 = vsub.f32 0.0, %v2693
        %v2726 = vsub.f32 0.0, %v2598
        %v2727 = vsub.f32 0.0, %v2599
        %v2728 = vsub.f32 0.0, %v2600
        %v2729 = vsub.f32 0.0, %v2601
        %v2730 = vsub.f32 0.0, %v2602
        %v2731 = vsub.f32 0.0, %v2603
        %v2732 = vsub.f32 0.0, %v2604
        %v2733 = vsub.f32 0.0, %v2605
        %v2734 = vsub.f32 0.0, %v2606
        %v2735 = vsub.f32 0.0, %v2607
        %v2736 = vsub.f32 0.0, %v2608
        %v2737 = vsub.f32 0.0, %v2609
        %v2738 = vsub.f32 0.0, %v2610
        %v2739 = vsub.f32 0.0, %v2611
        %v2740 = vsub.f32 0.0, %v2612
        %v2741 = vsub.f32 0.0, %v2613
        %v2742 = vsub.f32 0.0, %v2614
        %v2743 = vsub.f32 0.0, %v2615
        %v2744 = vsub.f32 0.0, %v2616
        %v2745 = vsub.f32 0.0, %v2617
        %v2746 = vsub.f32 0.0, %v2618
        %v2747 = vsub.f32 0.0, %v2619
        %v2748 = vsub.f32 0.0, %v2620
        %v2749 = vsub.f32 0.0, %v2621
        %v2750 = vsub.f32 0.0, %v2622
        %v2751 = vsub.f32 0.0, %v2623
        %v2752 = vsub.f32 0.0, %v2624
        %v2753 = vsub.f32 0.0, %v2625
        %v2754 = vsub.f32 0.0, %v2626
        %v2755 = vsub.f32 0.0, %v2627
        %v2756 = vsub.f32 0.0, %v2628
        %v2757 = vsub.f32 0.0, %v2629
        %s2758 = scalar_lea.vmem %s3, 2
        %v2759 = vld [vmem:[%s2758] sm:$0x3]
        %v2760 = vperm.slane %v2759, 0
        %v2761 = vmul.f32 %v2726, %v2760
        %v2762 = vmul.f32 %v2727, %v2760
        %v2763 = vmul.f32 %v2728, %v2760
        %v2764 = vmul.f32 %v2729, %v2760
        %v2765 = vmul.f32 %v2730, %v2760
        %v2766 = vmul.f32 %v2731, %v2760
        %v2767 = vmul.f32 %v2732, %v2760
        %v2768 = vmul.f32 %v2733, %v2760
        %v2769 = vmul.f32 %v2734, %v2760
        %v2770 = vmul.f32 %v2735, %v2760
        %v2771 = vmul.f32 %v2736, %v2760
        %v2772 = vmul.f32 %v2737, %v2760
        %v2773 = vmul.f32 %v2738, %v2760
        %v2774 = vmul.f32 %v2739, %v2760
        %v2775 = vmul.f32 %v2740, %v2760
        %v2776 = vmul.f32 %v2741, %v2760
        %v2777 = vmul.f32 %v2742, %v2760
        %v2778 = vmul.f32 %v2743, %v2760
        %v2779 = vmul.f32 %v2744, %v2760
        %v2780 = vmul.f32 %v2745, %v2760
        %v2781 = vmul.f32 %v2746, %v2760
        %v2782 = vmul.f32 %v2747, %v2760
        %v2783 = vmul.f32 %v2748, %v2760
        %v2784 = vmul.f32 %v2749, %v2760
        %v2785 = vmul.f32 %v2750, %v2760
        %v2786 = vmul.f32 %v2751, %v2760
        %v2787 = vmul.f32 %v2752, %v2760
        %v2788 = vmul.f32 %v2753, %v2760
        %v2789 = vmul.f32 %v2754, %v2760
        %v2790 = vmul.f32 %v2755, %v2760
        %v2791 = vmul.f32 %v2756, %v2760
        %v2792 = vmul.f32 %v2757, %v2760
        %s2793 = scalar_lea.vmem %s4, 1
        %v2794 = vld [vmem:[%s2793] sm:$0x1]
        %v2796 = vperm.slane %v2794, 0
        %v2798 = vadd.f32 %v2761, %v2796
        %v2799 = vadd.f32 %v2762, %v2796
        %v2800 = vadd.f32 %v2763, %v2796
        %v2801 = vadd.f32 %v2764, %v2796
        %v2802 = vadd.f32 %v2765, %v2796
        %v2803 = vadd.f32 %v2766, %v2796
        %v2804 = vadd.f32 %v2767, %v2796
        %v2805 = vadd.f32 %v2768, %v2796
        %v2806 = vadd.f32 %v2769, %v2796
        %v2807 = vadd.f32 %v2770, %v2796
        %v2808 = vadd.f32 %v2771, %v2796
        %v2809 = vadd.f32 %v2772, %v2796
        %v2810 = vadd.f32 %v2773, %v2796
        %v2811 = vadd.f32 %v2774, %v2796
        %v2812 = vadd.f32 %v2775, %v2796
        %v2813 = vadd.f32 %v2776, %v2796
        %v2814 = vadd.f32 %v2777, %v2796
        %v2815 = vadd.f32 %v2778, %v2796
        %v2816 = vadd.f32 %v2779, %v2796
        %v2817 = vadd.f32 %v2780, %v2796
        %v2818 = vadd.f32 %v2781, %v2796
        %v2819 = vadd.f32 %v2782, %v2796
        %v2820 = vadd.f32 %v2783, %v2796
        %v2821 = vadd.f32 %v2784, %v2796
        %v2822 = vadd.f32 %v2785, %v2796
        %v2823 = vadd.f32 %v2786, %v2796
        %v2824 = vadd.f32 %v2787, %v2796
        %v2825 = vadd.f32 %v2788, %v2796
        %v2826 = vadd.f32 %v2789, %v2796
        %v2827 = vadd.f32 %v2790, %v2796
        %v2828 = vadd.f32 %v2791, %v2796
        %v2829 = vadd.f32 %v2792, %v2796
        %v2830 = vtanh.pop %v2798
        %v2831 = vtanh.pop %v2799
        %v2832 = vtanh.pop %v2800
        %v2833 = vtanh.pop %v2801
        %v2834 = vtanh.pop %v2802
        %v2835 = vtanh.pop %v2803
        %v2836 = vtanh.pop %v2804
        %v2837 = vtanh.pop %v2805
        %v2838 = vtanh.pop %v2806
        %v2839 = vtanh.pop %v2807
        %v2840 = vtanh.pop %v2808
        %v2841 = vtanh.pop %v2809
        %v2842 = vtanh.pop %v2810
        %v2843 = vtanh.pop %v2811
        %v2844 = vtanh.pop %v2812
        %v2845 = vtanh.pop %v2813
        %v2846 = vtanh.pop %v2814
        %v2847 = vtanh.pop %v2815
        %v2848 = vtanh.pop %v2816
        %v2849 = vtanh.pop %v2817
        %v2850 = vtanh.pop %v2818
        %v2851 = vtanh.pop %v2819
        %v2852 = vtanh.pop %v2820
        %v2853 = vtanh.pop %v2821
        %v2854 = vtanh.pop %v2822
        %v2855 = vtanh.pop %v2823
        %v2856 = vtanh.pop %v2824
        %v2857 = vtanh.pop %v2825
        %v2858 = vtanh.pop %v2826
        %v2859 = vtanh.pop %v2827
        %v2860 = vtanh.pop %v2828
        %v2861 = vtanh.pop %v2829
        %v2862 = vpack.c.bf16 %v2831, %v2830
        %v2863 = vpack.c.bf16 %v2833, %v2832
        %v2864 = vpack.c.bf16 %v2835, %v2834
        %v2865 = vpack.c.bf16 %v2837, %v2836
        %v2866 = vpack.c.bf16 %v2839, %v2838
        %v2867 = vpack.c.bf16 %v2841, %v2840
        %v2868 = vpack.c.bf16 %v2843, %v2842
        %v2869 = vpack.c.bf16 %v2845, %v2844
        %v2870 = vpack.c.bf16 %v2847, %v2846
        %v2871 = vpack.c.bf16 %v2849, %v2848
        %v2872 = vpack.c.bf16 %v2851, %v2850
        %v2873 = vpack.c.bf16 %v2853, %v2852
        %v2874 = vpack.c.bf16 %v2855, %v2854
        %v2875 = vpack.c.bf16 %v2857, %v2856
        %v2876 = vpack.c.bf16 %v2859, %v2858
        %v2877 = vpack.c.bf16 %v2861, %v2860
        %s2878 = scalar_lea.vmem [#allocation8], 512
        %v2879 = vld [vmem:[%s2878] sm:$0xf]
        %v2880 = vld [vmem:[%s2878 + $0x4] sm:$0xf]
        %v2881 = vld [vmem:[%s2878 + $0x8] sm:$0xf]
        %v2882 = vld [vmem:[%s2878 + $0xc] sm:$0xf]
        %v2883 = vld [vmem:[%s2878 + $0x10] sm:$0xf]
        %v2884 = vld [vmem:[%s2878 + $0x14] sm:$0xf]
        %v2885 = vld [vmem:[%s2878 + $0x18] sm:$0xf]
        %v2886 = vld [vmem:[%s2878 + $0x1c] sm:$0xf]
        %v2887 = vld [vmem:[%s2878 + $0x20] sm:$0xf]
        %v2888 = vld [vmem:[%s2878 + $0x24] sm:$0xf]
        %v2889 = vld [vmem:[%s2878 + $0x28] sm:$0xf]
        %v2890 = vld [vmem:[%s2878 + $0x2c] sm:$0xf]
        %v2891 = vld [vmem:[%s2878 + $0x30] sm:$0xf]
        %v2892 = vld [vmem:[%s2878 + $0x34] sm:$0xf]
        %v2893 = vld [vmem:[%s2878 + $0x38] sm:$0xf]
        %v2894 = vld [vmem:[%s2878 + $0x3c] sm:$0xf]
        %s2895 = scalar_lea.vmem %s6, 8
        %v2896 = vld [vmem:[%s2895] sm:$0x1]
        %v2898 = vperm.slane %v2896, 0
        %v2916 = vunpack.c.l.b16 %v2879
        %v2917 = vunpack.c.l.b16 %v2880
        %v2918 = vunpack.c.l.b16 %v2881
        %v2919 = vunpack.c.l.b16 %v2882
        %v2920 = vunpack.c.l.b16 %v2883
        %v2921 = vunpack.c.l.b16 %v2884
        %v2922 = vunpack.c.l.b16 %v2885
        %v2923 = vunpack.c.l.b16 %v2886
        %v2924 = vunpack.c.l.b16 %v2887
        %v2925 = vunpack.c.l.b16 %v2888
        %v2926 = vunpack.c.l.b16 %v2889
        %v2927 = vunpack.c.l.b16 %v2890
        %v2928 = vunpack.c.l.b16 %v2891
        %v2929 = vunpack.c.l.b16 %v2892
        %v2930 = vunpack.c.l.b16 %v2893
        %v2931 = vunpack.c.l.b16 %v2894
        %v2932 = vpack.c.b16 %v2917, %v2916
        %v2933 = vpack.c.b16 %v2919, %v2918
        %v2934 = vpack.c.b16 %v2921, %v2920
        %v2935 = vpack.c.b16 %v2923, %v2922
        %v2936 = vpack.c.b16 %v2925, %v2924
        %v2937 = vpack.c.b16 %v2927, %v2926
        %v2938 = vpack.c.b16 %v2929, %v2928
        %v2939 = vpack.c.b16 %v2931, %v2930
        %2948 = vmatpush.bf16.msra.mxu0 %v2939
        %2949 = vmatpush.bf16.msra.mxu0 %v2938
        %2950 = vmatpush.bf16.msra.mxu0 %v2937
        %2951 = vmatpush.bf16.msra.mxu0 %v2936
        %2952 = vmatpush.bf16.msra.mxu0 %v2935
        %2953 = vmatpush.bf16.msra.mxu0 %v2934
        %2954 = vmatpush.bf16.msra.mxu0 %v2933
        %2955 = vmatpush.bf16.msra.mxu0 %v2932
        %2956 = vmatmul.bf16.gmra.mxu0 %v2862
        %v2957 = vpop.f32.mrf.mxu0
        %v2958 = vadd.f32 %v2898, %v2957
        %v2959 = vpop.f32.mrf.mxu0
        %v2960 = vadd.f32 %v2898, %v2959
        %2961 = vmatmul.bf16.gmra.mxu0 %v2863
        %v2962 = vpop.f32.mrf.mxu0
        %v2963 = vadd.f32 %v2898, %v2962
        %v2964 = vpop.f32.mrf.mxu0
        %v2965 = vadd.f32 %v2898, %v2964
        %2966 = vmatmul.bf16.gmra.mxu0 %v2864
        %v2967 = vpop.f32.mrf.mxu0
        %v2968 = vadd.f32 %v2898, %v2967
        %v2969 = vpop.f32.mrf.mxu0
        %v2970 = vadd.f32 %v2898, %v2969
        %2971 = vmatmul.bf16.gmra.mxu0 %v2865
        %v2972 = vpop.f32.mrf.mxu0
        %v2973 = vadd.f32 %v2898, %v2972
        %v2974 = vpop.f32.mrf.mxu0
        %v2975 = vadd.f32 %v2898, %v2974
        %2976 = vmatmul.bf16.gmra.mxu0 %v2866
        %v2977 = vpop.f32.mrf.mxu0
        %v2978 = vadd.f32 %v2898, %v2977
        %v2979 = vpop.f32.mrf.mxu0
        %v2980 = vadd.f32 %v2898, %v2979
        %2981 = vmatmul.bf16.gmra.mxu0 %v2867
        %v2982 = vpop.f32.mrf.mxu0
        %v2983 = vadd.f32 %v2898, %v2982
        %v2984 = vpop.f32.mrf.mxu0
        %v2985 = vadd.f32 %v2898, %v2984
        %2986 = vmatmul.bf16.gmra.mxu0 %v2868
        %v2987 = vpop.f32.mrf.mxu0
        %v2988 = vadd.f32 %v2898, %v2987
        %v2989 = vpop.f32.mrf.mxu0
        %v2990 = vadd.f32 %v2898, %v2989
        %2991 = vmatmul.bf16.gmra.mxu0 %v2869
        %v2992 = vpop.f32.mrf.mxu0
        %v2993 = vadd.f32 %v2898, %v2992
        %v2994 = vpop.f32.mrf.mxu0
        %v2995 = vadd.f32 %v2898, %v2994
        %2996 = vmatmul.bf16.gmra.mxu0 %v2870
        %v2997 = vpop.f32.mrf.mxu0
        %v2998 = vadd.f32 %v2898, %v2997
        %v2999 = vpop.f32.mrf.mxu0
        %v3000 = vadd.f32 %v2898, %v2999
        %3001 = vmatmul.bf16.gmra.mxu0 %v2871
        %v3002 = vpop.f32.mrf.mxu0
        %v3003 = vadd.f32 %v2898, %v3002
        %v3004 = vpop.f32.mrf.mxu0
        %v3005 = vadd.f32 %v2898, %v3004
        %3006 = vmatmul.bf16.gmra.mxu0 %v2872
        %v3007 = vpop.f32.mrf.mxu0
        %v3008 = vadd.f32 %v2898, %v3007
        %v3009 = vpop.f32.mrf.mxu0
        %v3010 = vadd.f32 %v2898, %v3009
        %3011 = vmatmul.bf16.gmra.mxu0 %v2873
        %v3012 = vpop.f32.mrf.mxu0
        %v3013 = vadd.f32 %v2898, %v3012
        %v3014 = vpop.f32.mrf.mxu0
        %v3015 = vadd.f32 %v2898, %v3014
        %3016 = vmatmul.bf16.gmra.mxu0 %v2874
        %v3017 = vpop.f32.mrf.mxu0
        %v3018 = vadd.f32 %v2898, %v3017
        %v3019 = vpop.f32.mrf.mxu0
        %v3020 = vadd.f32 %v2898, %v3019
        %3021 = vmatmul.bf16.gmra.mxu0 %v2875
        %v3022 = vpop.f32.mrf.mxu0
        %v3023 = vadd.f32 %v2898, %v3022
        %v3024 = vpop.f32.mrf.mxu0
        %v3025 = vadd.f32 %v2898, %v3024
        %3026 = vmatmul.bf16.gmra.mxu0 %v2876
        %v3027 = vpop.f32.mrf.mxu0
        %v3028 = vadd.f32 %v2898, %v3027
        %v3029 = vpop.f32.mrf.mxu0
        %v3030 = vadd.f32 %v2898, %v3029
        %3031 = vmatmul.bf16.gmra.mxu0 %v2877
        %v3032 = vpop.f32.mrf.mxu0
        %v3033 = vadd.f32 %v2898, %v3032
        %v3034 = vpop.f32.mrf.mxu0
        %v3035 = vadd.f32 %v2898, %v3034
        %3036 = vdwg.mxu0
        %v3037 = vtanh.pop %v2958
        %v3038 = vtanh.pop %v2960
        %v3039 = vtanh.pop %v2963
        %v3040 = vtanh.pop %v2965
        %v3041 = vtanh.pop %v2968
        %v3042 = vtanh.pop %v2970
        %v3043 = vtanh.pop %v2973
        %v3044 = vtanh.pop %v2975
        %v3045 = vtanh.pop %v2978
        %v3046 = vtanh.pop %v2980
        %v3047 = vtanh.pop %v2983
        %v3048 = vtanh.pop %v2985
        %v3049 = vtanh.pop %v2988
        %v3050 = vtanh.pop %v2990
        %v3051 = vtanh.pop %v2993
        %v3052 = vtanh.pop %v2995
        %v3053 = vtanh.pop %v2998
        %v3054 = vtanh.pop %v3000
        %v3055 = vtanh.pop %v3003
        %v3056 = vtanh.pop %v3005
        %v3057 = vtanh.pop %v3008
        %v3058 = vtanh.pop %v3010
        %v3059 = vtanh.pop %v3013
        %v3060 = vtanh.pop %v3015
        %v3061 = vtanh.pop %v3018
        %v3062 = vtanh.pop %v3020
        %v3063 = vtanh.pop %v3023
        %v3064 = vtanh.pop %v3025
        %v3065 = vtanh.pop %v3028
        %v3066 = vtanh.pop %v3030
        %v3067 = vtanh.pop %v3033
        %v3068 = vtanh.pop %v3035
        %v3069 = vpack.c.bf16 %v3038, %v3037
        %v3070 = vpack.c.bf16 %v3040, %v3039
        %v3071 = vpack.c.bf16 %v3042, %v3041
        %v3072 = vpack.c.bf16 %v3044, %v3043
        %v3073 = vpack.c.bf16 %v3046, %v3045
        %v3074 = vpack.c.bf16 %v3048, %v3047
        %v3075 = vpack.c.bf16 %v3050, %v3049
        %v3076 = vpack.c.bf16 %v3052, %v3051
        %v3077 = vpack.c.bf16 %v3054, %v3053
        %v3078 = vpack.c.bf16 %v3056, %v3055
        %v3079 = vpack.c.bf16 %v3058, %v3057
        %v3080 = vpack.c.bf16 %v3060, %v3059
        %v3081 = vpack.c.bf16 %v3062, %v3061
        %v3082 = vpack.c.bf16 %v3064, %v3063
        %v3083 = vpack.c.bf16 %v3066, %v3065
        %v3084 = vpack.c.bf16 %v3068, %v3067
        %s3085 = scalar_lea.vmem [#allocation8], 576
        %v3086 = vld [vmem:[%s3085] sm:$0xf]
        %v3087 = vld [vmem:[%s3085 + $0x4] sm:$0xf]
        %v3088 = vld [vmem:[%s3085 + $0x8] sm:$0xf]
        %v3089 = vld [vmem:[%s3085 + $0xc] sm:$0xf]
        %v3090 = vld [vmem:[%s3085 + $0x10] sm:$0xf]
        %v3091 = vld [vmem:[%s3085 + $0x14] sm:$0xf]
        %v3092 = vld [vmem:[%s3085 + $0x18] sm:$0xf]
        %v3093 = vld [vmem:[%s3085 + $0x1c] sm:$0xf]
        %v3094 = vld [vmem:[%s3085 + $0x20] sm:$0xf]
        %v3095 = vld [vmem:[%s3085 + $0x24] sm:$0xf]
        %v3096 = vld [vmem:[%s3085 + $0x28] sm:$0xf]
        %v3097 = vld [vmem:[%s3085 + $0x2c] sm:$0xf]
        %v3098 = vld [vmem:[%s3085 + $0x30] sm:$0xf]
        %v3099 = vld [vmem:[%s3085 + $0x34] sm:$0xf]
        %v3100 = vld [vmem:[%s3085 + $0x38] sm:$0xf]
        %v3101 = vld [vmem:[%s3085 + $0x3c] sm:$0xf]
        %s3102 = scalar_lea.vmem %s6, 9
        %v3103 = vld [vmem:[%s3102] sm:$0x1]
        %v3105 = vperm.slane %v3103, 0
        %v3123 = vunpack.c.l.b16 %v3086
        %v3124 = vunpack.c.l.b16 %v3087
        %v3125 = vunpack.c.l.b16 %v3088
        %v3126 = vunpack.c.l.b16 %v3089
        %v3127 = vunpack.c.l.b16 %v3090
        %v3128 = vunpack.c.l.b16 %v3091
        %v3129 = vunpack.c.l.b16 %v3092
        %v3130 = vunpack.c.l.b16 %v3093
        %v3131 = vunpack.c.l.b16 %v3094
        %v3132 = vunpack.c.l.b16 %v3095
        %v3133 = vunpack.c.l.b16 %v3096
        %v3134 = vunpack.c.l.b16 %v3097
        %v3135 = vunpack.c.l.b16 %v3098
        %v3136 = vunpack.c.l.b16 %v3099
        %v3137 = vunpack.c.l.b16 %v3100
        %v3138 = vunpack.c.l.b16 %v3101
        %v3139 = vpack.c.b16 %v3124, %v3123
        %v3140 = vpack.c.b16 %v3126, %v3125
        %v3141 = vpack.c.b16 %v3128, %v3127
        %v3142 = vpack.c.b16 %v3130, %v3129
        %v3143 = vpack.c.b16 %v3132, %v3131
        %v3144 = vpack.c.b16 %v3134, %v3133
        %v3145 = vpack.c.b16 %v3136, %v3135
        %v3146 = vpack.c.b16 %v3138, %v3137
        %3155 = vmatpush.bf16.msra.mxu0 %v3146
        %3156 = vmatpush.bf16.msra.mxu0 %v3145
        %3157 = vmatpush.bf16.msra.mxu0 %v3144
        %3158 = vmatpush.bf16.msra.mxu0 %v3143
        %3159 = vmatpush.bf16.msra.mxu0 %v3142
        %3160 = vmatpush.bf16.msra.mxu0 %v3141
        %3161 = vmatpush.bf16.msra.mxu0 %v3140
        %3162 = vmatpush.bf16.msra.mxu0 %v3139
        %3163 = vmatmul.bf16.gmra.mxu0 %v3069
        %v3164 = vpop.f32.mrf.mxu0
        %v3165 = vadd.f32 %v3105, %v3164
        %v3166 = vpop.f32.mrf.mxu0
        %v3167 = vadd.f32 %v3105, %v3166
        %3168 = vmatmul.bf16.gmra.mxu0 %v3070
        %v3169 = vpop.f32.mrf.mxu0
        %v3170 = vadd.f32 %v3105, %v3169
        %v3171 = vpop.f32.mrf.mxu0
        %v3172 = vadd.f32 %v3105, %v3171
        %3173 = vmatmul.bf16.gmra.mxu0 %v3071
        %v3174 = vpop.f32.mrf.mxu0
        %v3175 = vadd.f32 %v3105, %v3174
        %v3176 = vpop.f32.mrf.mxu0
        %v3177 = vadd.f32 %v3105, %v3176
        %3178 = vmatmul.bf16.gmra.mxu0 %v3072
        %v3179 = vpop.f32.mrf.mxu0
        %v3180 = vadd.f32 %v3105, %v3179
        %v3181 = vpop.f32.mrf.mxu0
        %v3182 = vadd.f32 %v3105, %v3181
        %3183 = vmatmul.bf16.gmra.mxu0 %v3073
        %v3184 = vpop.f32.mrf.mxu0
        %v3185 = vadd.f32 %v3105, %v3184
        %v3186 = vpop.f32.mrf.mxu0
        %v3187 = vadd.f32 %v3105, %v3186
        %3188 = vmatmul.bf16.gmra.mxu0 %v3074
        %v3189 = vpop.f32.mrf.mxu0
        %v3190 = vadd.f32 %v3105, %v3189
        %v3191 = vpop.f32.mrf.mxu0
        %v3192 = vadd.f32 %v3105, %v3191
        %3193 = vmatmul.bf16.gmra.mxu0 %v3075
        %v3194 = vpop.f32.mrf.mxu0
        %v3195 = vadd.f32 %v3105, %v3194
        %v3196 = vpop.f32.mrf.mxu0
        %v3197 = vadd.f32 %v3105, %v3196
        %3198 = vmatmul.bf16.gmra.mxu0 %v3076
        %v3199 = vpop.f32.mrf.mxu0
        %v3200 = vadd.f32 %v3105, %v3199
        %v3201 = vpop.f32.mrf.mxu0
        %v3202 = vadd.f32 %v3105, %v3201
        %3203 = vmatmul.bf16.gmra.mxu0 %v3077
        %v3204 = vpop.f32.mrf.mxu0
        %v3205 = vadd.f32 %v3105, %v3204
        %v3206 = vpop.f32.mrf.mxu0
        %v3207 = vadd.f32 %v3105, %v3206
        %3208 = vmatmul.bf16.gmra.mxu0 %v3078
        %v3209 = vpop.f32.mrf.mxu0
        %v3210 = vadd.f32 %v3105, %v3209
        %v3211 = vpop.f32.mrf.mxu0
        %v3212 = vadd.f32 %v3105, %v3211
        %3213 = vmatmul.bf16.gmra.mxu0 %v3079
        %v3214 = vpop.f32.mrf.mxu0
        %v3215 = vadd.f32 %v3105, %v3214
        %v3216 = vpop.f32.mrf.mxu0
        %v3217 = vadd.f32 %v3105, %v3216
        %3218 = vmatmul.bf16.gmra.mxu0 %v3080
        %v3219 = vpop.f32.mrf.mxu0
        %v3220 = vadd.f32 %v3105, %v3219
        %v3221 = vpop.f32.mrf.mxu0
        %v3222 = vadd.f32 %v3105, %v3221
        %3223 = vmatmul.bf16.gmra.mxu0 %v3081
        %v3224 = vpop.f32.mrf.mxu0
        %v3225 = vadd.f32 %v3105, %v3224
        %v3226 = vpop.f32.mrf.mxu0
        %v3227 = vadd.f32 %v3105, %v3226
        %3228 = vmatmul.bf16.gmra.mxu0 %v3082
        %v3229 = vpop.f32.mrf.mxu0
        %v3230 = vadd.f32 %v3105, %v3229
        %v3231 = vpop.f32.mrf.mxu0
        %v3232 = vadd.f32 %v3105, %v3231
        %3233 = vmatmul.bf16.gmra.mxu0 %v3083
        %v3234 = vpop.f32.mrf.mxu0
        %v3235 = vadd.f32 %v3105, %v3234
        %v3236 = vpop.f32.mrf.mxu0
        %v3237 = vadd.f32 %v3105, %v3236
        %3238 = vmatmul.bf16.gmra.mxu0 %v3084
        %v3239 = vpop.f32.mrf.mxu0
        %v3240 = vadd.f32 %v3105, %v3239
        %v3241 = vpop.f32.mrf.mxu0
        %v3242 = vadd.f32 %v3105, %v3241
        %3243 = vdwg.mxu0
        %v3244 = vtanh.pop %v3165
        %v3245 = vtanh.pop %v3167
        %v3246 = vtanh.pop %v3170
        %v3247 = vtanh.pop %v3172
        %v3248 = vtanh.pop %v3175
        %v3249 = vtanh.pop %v3177
        %v3250 = vtanh.pop %v3180
        %v3251 = vtanh.pop %v3182
        %v3252 = vtanh.pop %v3185
        %v3253 = vtanh.pop %v3187
        %v3254 = vtanh.pop %v3190
        %v3255 = vtanh.pop %v3192
        %v3256 = vtanh.pop %v3195
        %v3257 = vtanh.pop %v3197
        %v3258 = vtanh.pop %v3200
        %v3259 = vtanh.pop %v3202
        %v3260 = vtanh.pop %v3205
        %v3261 = vtanh.pop %v3207
        %v3262 = vtanh.pop %v3210
        %v3263 = vtanh.pop %v3212
        %v3264 = vtanh.pop %v3215
        %v3265 = vtanh.pop %v3217
        %v3266 = vtanh.pop %v3220
        %v3267 = vtanh.pop %v3222
        %v3268 = vtanh.pop %v3225
        %v3269 = vtanh.pop %v3227
        %v3270 = vtanh.pop %v3230
        %v3271 = vtanh.pop %v3232
        %v3272 = vtanh.pop %v3235
        %v3273 = vtanh.pop %v3237
        %v3274 = vtanh.pop %v3240
        %v3275 = vtanh.pop %v3242
        %v3276 = vpack.c.bf16 %v3245, %v3244
        %v3277 = vpack.c.bf16 %v3247, %v3246
        %v3278 = vpack.c.bf16 %v3249, %v3248
        %v3279 = vpack.c.bf16 %v3251, %v3250
        %v3280 = vpack.c.bf16 %v3253, %v3252
        %v3281 = vpack.c.bf16 %v3255, %v3254
        %v3282 = vpack.c.bf16 %v3257, %v3256
        %v3283 = vpack.c.bf16 %v3259, %v3258
        %v3284 = vpack.c.bf16 %v3261, %v3260
        %v3285 = vpack.c.bf16 %v3263, %v3262
        %v3286 = vpack.c.bf16 %v3265, %v3264
        %v3287 = vpack.c.bf16 %v3267, %v3266
        %v3288 = vpack.c.bf16 %v3269, %v3268
        %v3289 = vpack.c.bf16 %v3271, %v3270
        %v3290 = vpack.c.bf16 %v3273, %v3272
        %v3291 = vpack.c.bf16 %v3275, %v3274
        %s3292 = scalar_lea.vmem [#allocation8], 640
        %v3293 = vld [vmem:[%s3292] sm:$0xf]
        %v3294 = vld [vmem:[%s3292 + $0x4] sm:$0xf]
        %v3295 = vld [vmem:[%s3292 + $0x8] sm:$0xf]
        %v3296 = vld [vmem:[%s3292 + $0xc] sm:$0xf]
        %v3297 = vld [vmem:[%s3292 + $0x10] sm:$0xf]
        %v3298 = vld [vmem:[%s3292 + $0x14] sm:$0xf]
        %v3299 = vld [vmem:[%s3292 + $0x18] sm:$0xf]
        %v3300 = vld [vmem:[%s3292 + $0x1c] sm:$0xf]
        %v3301 = vld [vmem:[%s3292 + $0x20] sm:$0xf]
        %v3302 = vld [vmem:[%s3292 + $0x24] sm:$0xf]
        %v3303 = vld [vmem:[%s3292 + $0x28] sm:$0xf]
        %v3304 = vld [vmem:[%s3292 + $0x2c] sm:$0xf]
        %v3305 = vld [vmem:[%s3292 + $0x30] sm:$0xf]
        %v3306 = vld [vmem:[%s3292 + $0x34] sm:$0xf]
        %v3307 = vld [vmem:[%s3292 + $0x38] sm:$0xf]
        %v3308 = vld [vmem:[%s3292 + $0x3c] sm:$0xf]
        %s3309 = scalar_lea.vmem %s6, 10
        %v3310 = vld [vmem:[%s3309] sm:$0x1]
        %v3312 = vperm.slane %v3310, 0
        %v3330 = vunpack.c.l.b16 %v3293
        %v3331 = vunpack.c.l.b16 %v3294
        %v3332 = vunpack.c.l.b16 %v3295
        %v3333 = vunpack.c.l.b16 %v3296
        %v3334 = vunpack.c.l.b16 %v3297
        %v3335 = vunpack.c.l.b16 %v3298
        %v3336 = vunpack.c.l.b16 %v3299
        %v3337 = vunpack.c.l.b16 %v3300
        %v3338 = vunpack.c.l.b16 %v3301
        %v3339 = vunpack.c.l.b16 %v3302
        %v3340 = vunpack.c.l.b16 %v3303
        %v3341 = vunpack.c.l.b16 %v3304
        %v3342 = vunpack.c.l.b16 %v3305
        %v3343 = vunpack.c.l.b16 %v3306
        %v3344 = vunpack.c.l.b16 %v3307
        %v3345 = vunpack.c.l.b16 %v3308
        %v3346 = vpack.c.b16 %v3331, %v3330
        %v3347 = vpack.c.b16 %v3333, %v3332
        %v3348 = vpack.c.b16 %v3335, %v3334
        %v3349 = vpack.c.b16 %v3337, %v3336
        %v3350 = vpack.c.b16 %v3339, %v3338
        %v3351 = vpack.c.b16 %v3341, %v3340
        %v3352 = vpack.c.b16 %v3343, %v3342
        %v3353 = vpack.c.b16 %v3345, %v3344
        %3362 = vmatpush.bf16.msra.mxu0 %v3353
        %3363 = vmatpush.bf16.msra.mxu0 %v3352
        %3364 = vmatpush.bf16.msra.mxu0 %v3351
        %3365 = vmatpush.bf16.msra.mxu0 %v3350
        %3366 = vmatpush.bf16.msra.mxu0 %v3349
        %3367 = vmatpush.bf16.msra.mxu0 %v3348
        %3368 = vmatpush.bf16.msra.mxu0 %v3347
        %3369 = vmatpush.bf16.msra.mxu0 %v3346
        %3370 = vmatmul.bf16.gmra.mxu0 %v3276
        %v3371 = vpop.f32.mrf.mxu0
        %v3372 = vadd.f32 %v3312, %v3371
        %v3373 = vpop.f32.mrf.mxu0
        %v3374 = vadd.f32 %v3312, %v3373
        %3375 = vmatmul.bf16.gmra.mxu0 %v3277
        %v3376 = vpop.f32.mrf.mxu0
        %v3377 = vadd.f32 %v3312, %v3376
        %v3378 = vpop.f32.mrf.mxu0
        %v3379 = vadd.f32 %v3312, %v3378
        %3380 = vmatmul.bf16.gmra.mxu0 %v3278
        %v3381 = vpop.f32.mrf.mxu0
        %v3382 = vadd.f32 %v3312, %v3381
        %v3383 = vpop.f32.mrf.mxu0
        %v3384 = vadd.f32 %v3312, %v3383
        %3385 = vmatmul.bf16.gmra.mxu0 %v3279
        %v3386 = vpop.f32.mrf.mxu0
        %v3387 = vadd.f32 %v3312, %v3386
        %v3388 = vpop.f32.mrf.mxu0
        %v3389 = vadd.f32 %v3312, %v3388
        %3390 = vmatmul.bf16.gmra.mxu0 %v3280
        %v3391 = vpop.f32.mrf.mxu0
        %v3392 = vadd.f32 %v3312, %v3391
        %v3393 = vpop.f32.mrf.mxu0
        %v3394 = vadd.f32 %v3312, %v3393
        %3395 = vmatmul.bf16.gmra.mxu0 %v3281
        %v3396 = vpop.f32.mrf.mxu0
        %v3397 = vadd.f32 %v3312, %v3396
        %v3398 = vpop.f32.mrf.mxu0
        %v3399 = vadd.f32 %v3312, %v3398
        %3400 = vmatmul.bf16.gmra.mxu0 %v3282
        %v3401 = vpop.f32.mrf.mxu0
        %v3402 = vadd.f32 %v3312, %v3401
        %v3403 = vpop.f32.mrf.mxu0
        %v3404 = vadd.f32 %v3312, %v3403
        %3405 = vmatmul.bf16.gmra.mxu0 %v3283
        %v3406 = vpop.f32.mrf.mxu0
        %v3407 = vadd.f32 %v3312, %v3406
        %v3408 = vpop.f32.mrf.mxu0
        %v3409 = vadd.f32 %v3312, %v3408
        %3410 = vmatmul.bf16.gmra.mxu0 %v3284
        %v3411 = vpop.f32.mrf.mxu0
        %v3412 = vadd.f32 %v3312, %v3411
        %v3413 = vpop.f32.mrf.mxu0
        %v3414 = vadd.f32 %v3312, %v3413
        %3415 = vmatmul.bf16.gmra.mxu0 %v3285
        %v3416 = vpop.f32.mrf.mxu0
        %v3417 = vadd.f32 %v3312, %v3416
        %v3418 = vpop.f32.mrf.mxu0
        %v3419 = vadd.f32 %v3312, %v3418
        %3420 = vmatmul.bf16.gmra.mxu0 %v3286
        %v3421 = vpop.f32.mrf.mxu0
        %v3422 = vadd.f32 %v3312, %v3421
        %v3423 = vpop.f32.mrf.mxu0
        %v3424 = vadd.f32 %v3312, %v3423
        %3425 = vmatmul.bf16.gmra.mxu0 %v3287
        %v3426 = vpop.f32.mrf.mxu0
        %v3427 = vadd.f32 %v3312, %v3426
        %v3428 = vpop.f32.mrf.mxu0
        %v3429 = vadd.f32 %v3312, %v3428
        %3430 = vmatmul.bf16.gmra.mxu0 %v3288
        %v3431 = vpop.f32.mrf.mxu0
        %v3432 = vadd.f32 %v3312, %v3431
        %v3433 = vpop.f32.mrf.mxu0
        %v3434 = vadd.f32 %v3312, %v3433
        %3435 = vmatmul.bf16.gmra.mxu0 %v3289
        %v3436 = vpop.f32.mrf.mxu0
        %v3437 = vadd.f32 %v3312, %v3436
        %v3438 = vpop.f32.mrf.mxu0
        %v3439 = vadd.f32 %v3312, %v3438
        %3440 = vmatmul.bf16.gmra.mxu0 %v3290
        %v3441 = vpop.f32.mrf.mxu0
        %v3442 = vadd.f32 %v3312, %v3441
        %v3443 = vpop.f32.mrf.mxu0
        %v3444 = vadd.f32 %v3312, %v3443
        %3445 = vmatmul.bf16.gmra.mxu0 %v3291
        %v3446 = vpop.f32.mrf.mxu0
        %v3447 = vadd.f32 %v3312, %v3446
        %v3448 = vpop.f32.mrf.mxu0
        %v3449 = vadd.f32 %v3312, %v3448
        %3450 = vdwg.mxu0
        %v3451 = vtanh.pop %v3372
        %v3452 = vtanh.pop %v3374
        %v3453 = vtanh.pop %v3377
        %v3454 = vtanh.pop %v3379
        %v3455 = vtanh.pop %v3382
        %v3456 = vtanh.pop %v3384
        %v3457 = vtanh.pop %v3387
        %v3458 = vtanh.pop %v3389
        %v3459 = vtanh.pop %v3392
        %v3460 = vtanh.pop %v3394
        %v3461 = vtanh.pop %v3397
        %v3462 = vtanh.pop %v3399
        %v3463 = vtanh.pop %v3402
        %v3464 = vtanh.pop %v3404
        %v3465 = vtanh.pop %v3407
        %v3466 = vtanh.pop %v3409
        %v3467 = vtanh.pop %v3412
        %v3468 = vtanh.pop %v3414
        %v3469 = vtanh.pop %v3417
        %v3470 = vtanh.pop %v3419
        %v3471 = vtanh.pop %v3422
        %v3472 = vtanh.pop %v3424
        %v3473 = vtanh.pop %v3427
        %v3474 = vtanh.pop %v3429
        %v3475 = vtanh.pop %v3432
        %v3476 = vtanh.pop %v3434
        %v3477 = vtanh.pop %v3437
        %v3478 = vtanh.pop %v3439
        %v3479 = vtanh.pop %v3442
        %v3480 = vtanh.pop %v3444
        %v3481 = vtanh.pop %v3447
        %v3482 = vtanh.pop %v3449
        %v3483 = vpack.c.bf16 %v3452, %v3451
        %v3484 = vpack.c.bf16 %v3454, %v3453
        %v3485 = vpack.c.bf16 %v3456, %v3455
        %v3486 = vpack.c.bf16 %v3458, %v3457
        %v3487 = vpack.c.bf16 %v3460, %v3459
        %v3488 = vpack.c.bf16 %v3462, %v3461
        %v3489 = vpack.c.bf16 %v3464, %v3463
        %v3490 = vpack.c.bf16 %v3466, %v3465
        %v3491 = vpack.c.bf16 %v3468, %v3467
        %v3492 = vpack.c.bf16 %v3470, %v3469
        %v3493 = vpack.c.bf16 %v3472, %v3471
        %v3494 = vpack.c.bf16 %v3474, %v3473
        %v3495 = vpack.c.bf16 %v3476, %v3475
        %v3496 = vpack.c.bf16 %v3478, %v3477
        %v3497 = vpack.c.bf16 %v3480, %v3479
        %v3498 = vpack.c.bf16 %v3482, %v3481
        %s3499 = scalar_lea.vmem [#allocation8], 704
        %v3500 = vld [vmem:[%s3499] sm:$0xf]
        %v3501 = vld [vmem:[%s3499 + $0x4] sm:$0xf]
        %v3502 = vld [vmem:[%s3499 + $0x8] sm:$0xf]
        %v3503 = vld [vmem:[%s3499 + $0xc] sm:$0xf]
        %v3504 = vld [vmem:[%s3499 + $0x10] sm:$0xf]
        %v3505 = vld [vmem:[%s3499 + $0x14] sm:$0xf]
        %v3506 = vld [vmem:[%s3499 + $0x18] sm:$0xf]
        %v3507 = vld [vmem:[%s3499 + $0x1c] sm:$0xf]
        %v3508 = vld [vmem:[%s3499 + $0x20] sm:$0xf]
        %v3509 = vld [vmem:[%s3499 + $0x24] sm:$0xf]
        %v3510 = vld [vmem:[%s3499 + $0x28] sm:$0xf]
        %v3511 = vld [vmem:[%s3499 + $0x2c] sm:$0xf]
        %v3512 = vld [vmem:[%s3499 + $0x30] sm:$0xf]
        %v3513 = vld [vmem:[%s3499 + $0x34] sm:$0xf]
        %v3514 = vld [vmem:[%s3499 + $0x38] sm:$0xf]
        %v3515 = vld [vmem:[%s3499 + $0x3c] sm:$0xf]
        %s3516 = scalar_lea.vmem %s6, 11
        %v3517 = vld [vmem:[%s3516] sm:$0x1]
        %v3519 = vperm.slane %v3517, 0
        %v3537 = vunpack.c.l.b16 %v3500
        %v3538 = vunpack.c.l.b16 %v3501
        %v3539 = vunpack.c.l.b16 %v3502
        %v3540 = vunpack.c.l.b16 %v3503
        %v3541 = vunpack.c.l.b16 %v3504
        %v3542 = vunpack.c.l.b16 %v3505
        %v3543 = vunpack.c.l.b16 %v3506
        %v3544 = vunpack.c.l.b16 %v3507
        %v3545 = vunpack.c.l.b16 %v3508
        %v3546 = vunpack.c.l.b16 %v3509
        %v3547 = vunpack.c.l.b16 %v3510
        %v3548 = vunpack.c.l.b16 %v3511
        %v3549 = vunpack.c.l.b16 %v3512
        %v3550 = vunpack.c.l.b16 %v3513
        %v3551 = vunpack.c.l.b16 %v3514
        %v3552 = vunpack.c.l.b16 %v3515
        %v3553 = vpack.c.b16 %v3538, %v3537
        %v3554 = vpack.c.b16 %v3540, %v3539
        %v3555 = vpack.c.b16 %v3542, %v3541
        %v3556 = vpack.c.b16 %v3544, %v3543
        %v3557 = vpack.c.b16 %v3546, %v3545
        %v3558 = vpack.c.b16 %v3548, %v3547
        %v3559 = vpack.c.b16 %v3550, %v3549
        %v3560 = vpack.c.b16 %v3552, %v3551
        %3569 = vmatpush.bf16.msra.mxu0 %v3560
        %3570 = vmatpush.bf16.msra.mxu0 %v3559
        %3571 = vmatpush.bf16.msra.mxu0 %v3558
        %3572 = vmatpush.bf16.msra.mxu0 %v3557
        %3573 = vmatpush.bf16.msra.mxu0 %v3556
        %3574 = vmatpush.bf16.msra.mxu0 %v3555
        %3575 = vmatpush.bf16.msra.mxu0 %v3554
        %3576 = vmatpush.bf16.msra.mxu0 %v3553
        %3577 = vmatmul.bf16.gmra.mxu0 %v3483
        %v3578 = vpop.f32.mrf.mxu0
        %v3579 = vadd.f32 %v3519, %v3578
        %v3580 = vpop.f32.mrf.mxu0
        %v3581 = vadd.f32 %v3519, %v3580
        %3582 = vmatmul.bf16.gmra.mxu0 %v3484
        %v3583 = vpop.f32.mrf.mxu0
        %v3584 = vadd.f32 %v3519, %v3583
        %v3585 = vpop.f32.mrf.mxu0
        %v3586 = vadd.f32 %v3519, %v3585
        %3587 = vmatmul.bf16.gmra.mxu0 %v3485
        %v3588 = vpop.f32.mrf.mxu0
        %v3589 = vadd.f32 %v3519, %v3588
        %v3590 = vpop.f32.mrf.mxu0
        %v3591 = vadd.f32 %v3519, %v3590
        %3592 = vmatmul.bf16.gmra.mxu0 %v3486
        %v3593 = vpop.f32.mrf.mxu0
        %v3594 = vadd.f32 %v3519, %v3593
        %v3595 = vpop.f32.mrf.mxu0
        %v3596 = vadd.f32 %v3519, %v3595
        %3597 = vmatmul.bf16.gmra.mxu0 %v3487
        %v3598 = vpop.f32.mrf.mxu0
        %v3599 = vadd.f32 %v3519, %v3598
        %v3600 = vpop.f32.mrf.mxu0
        %v3601 = vadd.f32 %v3519, %v3600
        %3602 = vmatmul.bf16.gmra.mxu0 %v3488
        %v3603 = vpop.f32.mrf.mxu0
        %v3604 = vadd.f32 %v3519, %v3603
        %v3605 = vpop.f32.mrf.mxu0
        %v3606 = vadd.f32 %v3519, %v3605
        %3607 = vmatmul.bf16.gmra.mxu0 %v3489
        %v3608 = vpop.f32.mrf.mxu0
        %v3609 = vadd.f32 %v3519, %v3608
        %v3610 = vpop.f32.mrf.mxu0
        %v3611 = vadd.f32 %v3519, %v3610
        %3612 = vmatmul.bf16.gmra.mxu0 %v3490
        %v3613 = vpop.f32.mrf.mxu0
        %v3614 = vadd.f32 %v3519, %v3613
        %v3615 = vpop.f32.mrf.mxu0
        %v3616 = vadd.f32 %v3519, %v3615
        %3617 = vmatmul.bf16.gmra.mxu0 %v3491
        %v3618 = vpop.f32.mrf.mxu0
        %v3619 = vadd.f32 %v3519, %v3618
        %v3620 = vpop.f32.mrf.mxu0
        %v3621 = vadd.f32 %v3519, %v3620
        %3622 = vmatmul.bf16.gmra.mxu0 %v3492
        %v3623 = vpop.f32.mrf.mxu0
        %v3624 = vadd.f32 %v3519, %v3623
        %v3625 = vpop.f32.mrf.mxu0
        %v3626 = vadd.f32 %v3519, %v3625
        %3627 = vmatmul.bf16.gmra.mxu0 %v3493
        %v3628 = vpop.f32.mrf.mxu0
        %v3629 = vadd.f32 %v3519, %v3628
        %v3630 = vpop.f32.mrf.mxu0
        %v3631 = vadd.f32 %v3519, %v3630
        %3632 = vmatmul.bf16.gmra.mxu0 %v3494
        %v3633 = vpop.f32.mrf.mxu0
        %v3634 = vadd.f32 %v3519, %v3633
        %v3635 = vpop.f32.mrf.mxu0
        %v3636 = vadd.f32 %v3519, %v3635
        %3637 = vmatmul.bf16.gmra.mxu0 %v3495
        %v3638 = vpop.f32.mrf.mxu0
        %v3639 = vadd.f32 %v3519, %v3638
        %v3640 = vpop.f32.mrf.mxu0
        %v3641 = vadd.f32 %v3519, %v3640
        %3642 = vmatmul.bf16.gmra.mxu0 %v3496
        %v3643 = vpop.f32.mrf.mxu0
        %v3644 = vadd.f32 %v3519, %v3643
        %v3645 = vpop.f32.mrf.mxu0
        %v3646 = vadd.f32 %v3519, %v3645
        %3647 = vmatmul.bf16.gmra.mxu0 %v3497
        %v3648 = vpop.f32.mrf.mxu0
        %v3649 = vadd.f32 %v3519, %v3648
        %v3650 = vpop.f32.mrf.mxu0
        %v3651 = vadd.f32 %v3519, %v3650
        %3652 = vmatmul.bf16.gmra.mxu0 %v3498
        %v3653 = vpop.f32.mrf.mxu0
        %v3654 = vadd.f32 %v3519, %v3653
        %v3655 = vpop.f32.mrf.mxu0
        %v3656 = vadd.f32 %v3519, %v3655
        %3657 = vdwg.mxu0
        %v3658 = vtanh.pop %v3579
        %v3659 = vtanh.pop %v3581
        %v3660 = vtanh.pop %v3584
        %v3661 = vtanh.pop %v3586
        %v3662 = vtanh.pop %v3589
        %v3663 = vtanh.pop %v3591
        %v3664 = vtanh.pop %v3594
        %v3665 = vtanh.pop %v3596
        %v3666 = vtanh.pop %v3599
        %v3667 = vtanh.pop %v3601
        %v3668 = vtanh.pop %v3604
        %v3669 = vtanh.pop %v3606
        %v3670 = vtanh.pop %v3609
        %v3671 = vtanh.pop %v3611
        %v3672 = vtanh.pop %v3614
        %v3673 = vtanh.pop %v3616
        %v3674 = vtanh.pop %v3619
        %v3675 = vtanh.pop %v3621
        %v3676 = vtanh.pop %v3624
        %v3677 = vtanh.pop %v3626
        %v3678 = vtanh.pop %v3629
        %v3679 = vtanh.pop %v3631
        %v3680 = vtanh.pop %v3634
        %v3681 = vtanh.pop %v3636
        %v3682 = vtanh.pop %v3639
        %v3683 = vtanh.pop %v3641
        %v3684 = vtanh.pop %v3644
        %v3685 = vtanh.pop %v3646
        %v3686 = vtanh.pop %v3649
        %v3687 = vtanh.pop %v3651
        %v3688 = vtanh.pop %v3654
        %v3689 = vtanh.pop %v3656
        %v3690 = vpack.c.bf16 %v3659, %v3658
        %v3691 = vpack.c.bf16 %v3661, %v3660
        %v3692 = vpack.c.bf16 %v3663, %v3662
        %v3693 = vpack.c.bf16 %v3665, %v3664
        %v3694 = vpack.c.bf16 %v3667, %v3666
        %v3695 = vpack.c.bf16 %v3669, %v3668
        %v3696 = vpack.c.bf16 %v3671, %v3670
        %v3697 = vpack.c.bf16 %v3673, %v3672
        %v3698 = vpack.c.bf16 %v3675, %v3674
        %v3699 = vpack.c.bf16 %v3677, %v3676
        %v3700 = vpack.c.bf16 %v3679, %v3678
        %v3701 = vpack.c.bf16 %v3681, %v3680
        %v3702 = vpack.c.bf16 %v3683, %v3682
        %v3703 = vpack.c.bf16 %v3685, %v3684
        %v3704 = vpack.c.bf16 %v3687, %v3686
        %v3705 = vpack.c.bf16 %v3689, %v3688
        %s3706 = scalar_lea.vmem [#allocation8], 768
        %v3707 = vld [vmem:[%s3706] sm:$0xf]
        %v3708 = vld [vmem:[%s3706 + $0x4] sm:$0xf]
        %v3709 = vld [vmem:[%s3706 + $0x8] sm:$0xf]
        %v3710 = vld [vmem:[%s3706 + $0xc] sm:$0xf]
        %v3711 = vld [vmem:[%s3706 + $0x10] sm:$0xf]
        %v3712 = vld [vmem:[%s3706 + $0x14] sm:$0xf]
        %v3713 = vld [vmem:[%s3706 + $0x18] sm:$0xf]
        %v3714 = vld [vmem:[%s3706 + $0x1c] sm:$0xf]
        %v3715 = vld [vmem:[%s3706 + $0x20] sm:$0xf]
        %v3716 = vld [vmem:[%s3706 + $0x24] sm:$0xf]
        %v3717 = vld [vmem:[%s3706 + $0x28] sm:$0xf]
        %v3718 = vld [vmem:[%s3706 + $0x2c] sm:$0xf]
        %v3719 = vld [vmem:[%s3706 + $0x30] sm:$0xf]
        %v3720 = vld [vmem:[%s3706 + $0x34] sm:$0xf]
        %v3721 = vld [vmem:[%s3706 + $0x38] sm:$0xf]
        %v3722 = vld [vmem:[%s3706 + $0x3c] sm:$0xf]
        %s3723 = scalar_lea.vmem %s6, 12
        %v3724 = vld [vmem:[%s3723] sm:$0x1]
        %v3726 = vperm.slane %v3724, 0
        %v3744 = vunpack.c.l.b16 %v3707
        %v3745 = vunpack.c.l.b16 %v3708
        %v3746 = vunpack.c.l.b16 %v3709
        %v3747 = vunpack.c.l.b16 %v3710
        %v3748 = vunpack.c.l.b16 %v3711
        %v3749 = vunpack.c.l.b16 %v3712
        %v3750 = vunpack.c.l.b16 %v3713
        %v3751 = vunpack.c.l.b16 %v3714
        %v3752 = vunpack.c.l.b16 %v3715
        %v3753 = vunpack.c.l.b16 %v3716
        %v3754 = vunpack.c.l.b16 %v3717
        %v3755 = vunpack.c.l.b16 %v3718
        %v3756 = vunpack.c.l.b16 %v3719
        %v3757 = vunpack.c.l.b16 %v3720
        %v3758 = vunpack.c.l.b16 %v3721
        %v3759 = vunpack.c.l.b16 %v3722
        %v3760 = vpack.c.b16 %v3745, %v3744
        %v3761 = vpack.c.b16 %v3747, %v3746
        %v3762 = vpack.c.b16 %v3749, %v3748
        %v3763 = vpack.c.b16 %v3751, %v3750
        %v3764 = vpack.c.b16 %v3753, %v3752
        %v3765 = vpack.c.b16 %v3755, %v3754
        %v3766 = vpack.c.b16 %v3757, %v3756
        %v3767 = vpack.c.b16 %v3759, %v3758
        %3776 = vmatpush.bf16.msra.mxu0 %v3767
        %3777 = vmatpush.bf16.msra.mxu0 %v3766
        %3778 = vmatpush.bf16.msra.mxu0 %v3765
        %3779 = vmatpush.bf16.msra.mxu0 %v3764
        %3780 = vmatpush.bf16.msra.mxu0 %v3763
        %3781 = vmatpush.bf16.msra.mxu0 %v3762
        %3782 = vmatpush.bf16.msra.mxu0 %v3761
        %3783 = vmatpush.bf16.msra.mxu0 %v3760
        %3784 = vmatmul.bf16.gmra.mxu0 %v3690
        %v3785 = vpop.f32.mrf.mxu0
        %v3786 = vadd.f32 %v3726, %v3785
        %v3787 = vpop.f32.mrf.mxu0
        %v3788 = vadd.f32 %v3726, %v3787
        %3789 = vmatmul.bf16.gmra.mxu0 %v3691
        %v3790 = vpop.f32.mrf.mxu0
        %v3791 = vadd.f32 %v3726, %v3790
        %v3792 = vpop.f32.mrf.mxu0
        %v3793 = vadd.f32 %v3726, %v3792
        %3794 = vmatmul.bf16.gmra.mxu0 %v3692
        %v3795 = vpop.f32.mrf.mxu0
        %v3796 = vadd.f32 %v3726, %v3795
        %v3797 = vpop.f32.mrf.mxu0
        %v3798 = vadd.f32 %v3726, %v3797
        %3799 = vmatmul.bf16.gmra.mxu0 %v3693
        %v3800 = vpop.f32.mrf.mxu0
        %v3801 = vadd.f32 %v3726, %v3800
        %v3802 = vpop.f32.mrf.mxu0
        %v3803 = vadd.f32 %v3726, %v3802
        %3804 = vmatmul.bf16.gmra.mxu0 %v3694
        %v3805 = vpop.f32.mrf.mxu0
        %v3806 = vadd.f32 %v3726, %v3805
        %v3807 = vpop.f32.mrf.mxu0
        %v3808 = vadd.f32 %v3726, %v3807
        %3809 = vmatmul.bf16.gmra.mxu0 %v3695
        %v3810 = vpop.f32.mrf.mxu0
        %v3811 = vadd.f32 %v3726, %v3810
        %v3812 = vpop.f32.mrf.mxu0
        %v3813 = vadd.f32 %v3726, %v3812
        %3814 = vmatmul.bf16.gmra.mxu0 %v3696
        %v3815 = vpop.f32.mrf.mxu0
        %v3816 = vadd.f32 %v3726, %v3815
        %v3817 = vpop.f32.mrf.mxu0
        %v3818 = vadd.f32 %v3726, %v3817
        %3819 = vmatmul.bf16.gmra.mxu0 %v3697
        %v3820 = vpop.f32.mrf.mxu0
        %v3821 = vadd.f32 %v3726, %v3820
        %v3822 = vpop.f32.mrf.mxu0
        %v3823 = vadd.f32 %v3726, %v3822
        %3824 = vmatmul.bf16.gmra.mxu0 %v3698
        %v3825 = vpop.f32.mrf.mxu0
        %v3826 = vadd.f32 %v3726, %v3825
        %v3827 = vpop.f32.mrf.mxu0
        %v3828 = vadd.f32 %v3726, %v3827
        %3829 = vmatmul.bf16.gmra.mxu0 %v3699
        %v3830 = vpop.f32.mrf.mxu0
        %v3831 = vadd.f32 %v3726, %v3830
        %v3832 = vpop.f32.mrf.mxu0
        %v3833 = vadd.f32 %v3726, %v3832
        %3834 = vmatmul.bf16.gmra.mxu0 %v3700
        %v3835 = vpop.f32.mrf.mxu0
        %v3836 = vadd.f32 %v3726, %v3835
        %v3837 = vpop.f32.mrf.mxu0
        %v3838 = vadd.f32 %v3726, %v3837
        %3839 = vmatmul.bf16.gmra.mxu0 %v3701
        %v3840 = vpop.f32.mrf.mxu0
        %v3841 = vadd.f32 %v3726, %v3840
        %v3842 = vpop.f32.mrf.mxu0
        %v3843 = vadd.f32 %v3726, %v3842
        %3844 = vmatmul.bf16.gmra.mxu0 %v3702
        %v3845 = vpop.f32.mrf.mxu0
        %v3846 = vadd.f32 %v3726, %v3845
        %v3847 = vpop.f32.mrf.mxu0
        %v3848 = vadd.f32 %v3726, %v3847
        %3849 = vmatmul.bf16.gmra.mxu0 %v3703
        %v3850 = vpop.f32.mrf.mxu0
        %v3851 = vadd.f32 %v3726, %v3850
        %v3852 = vpop.f32.mrf.mxu0
        %v3853 = vadd.f32 %v3726, %v3852
        %3854 = vmatmul.bf16.gmra.mxu0 %v3704
        %v3855 = vpop.f32.mrf.mxu0
        %v3856 = vadd.f32 %v3726, %v3855
        %v3857 = vpop.f32.mrf.mxu0
        %v3858 = vadd.f32 %v3726, %v3857
        %3859 = vmatmul.bf16.gmra.mxu0 %v3705
        %v3860 = vpop.f32.mrf.mxu0
        %v3861 = vadd.f32 %v3726, %v3860
        %v3862 = vpop.f32.mrf.mxu0
        %v3863 = vadd.f32 %v3726, %v3862
        %3864 = vdwg.mxu0
        %v3865 = vtanh.pop %v3786
        %v3866 = vtanh.pop %v3788
        %v3867 = vtanh.pop %v3791
        %v3868 = vtanh.pop %v3793
        %v3869 = vtanh.pop %v3796
        %v3870 = vtanh.pop %v3798
        %v3871 = vtanh.pop %v3801
        %v3872 = vtanh.pop %v3803
        %v3873 = vtanh.pop %v3806
        %v3874 = vtanh.pop %v3808
        %v3875 = vtanh.pop %v3811
        %v3876 = vtanh.pop %v3813
        %v3877 = vtanh.pop %v3816
        %v3878 = vtanh.pop %v3818
        %v3879 = vtanh.pop %v3821
        %v3880 = vtanh.pop %v3823
        %v3881 = vtanh.pop %v3826
        %v3882 = vtanh.pop %v3828
        %v3883 = vtanh.pop %v3831
        %v3884 = vtanh.pop %v3833
        %v3885 = vtanh.pop %v3836
        %v3886 = vtanh.pop %v3838
        %v3887 = vtanh.pop %v3841
        %v3888 = vtanh.pop %v3843
        %v3889 = vtanh.pop %v3846
        %v3890 = vtanh.pop %v3848
        %v3891 = vtanh.pop %v3851
        %v3892 = vtanh.pop %v3853
        %v3893 = vtanh.pop %v3856
        %v3894 = vtanh.pop %v3858
        %v3895 = vtanh.pop %v3861
        %v3896 = vtanh.pop %v3863
        %v3897 = vpack.c.bf16 %v3866, %v3865
        %v3898 = vpack.c.bf16 %v3868, %v3867
        %v3899 = vpack.c.bf16 %v3870, %v3869
        %v3900 = vpack.c.bf16 %v3872, %v3871
        %v3901 = vpack.c.bf16 %v3874, %v3873
        %v3902 = vpack.c.bf16 %v3876, %v3875
        %v3903 = vpack.c.bf16 %v3878, %v3877
        %v3904 = vpack.c.bf16 %v3880, %v3879
        %v3905 = vpack.c.bf16 %v3882, %v3881
        %v3906 = vpack.c.bf16 %v3884, %v3883
        %v3907 = vpack.c.bf16 %v3886, %v3885
        %v3908 = vpack.c.bf16 %v3888, %v3887
        %v3909 = vpack.c.bf16 %v3890, %v3889
        %v3910 = vpack.c.bf16 %v3892, %v3891
        %v3911 = vpack.c.bf16 %v3894, %v3893
        %v3912 = vpack.c.bf16 %v3896, %v3895
        %s3913 = scalar_lea.vmem [#allocation8], 832
        %v3914 = vld [vmem:[%s3913] sm:$0xf]
        %v3915 = vld [vmem:[%s3913 + $0x4] sm:$0xf]
        %v3916 = vld [vmem:[%s3913 + $0x8] sm:$0xf]
        %v3917 = vld [vmem:[%s3913 + $0xc] sm:$0xf]
        %v3918 = vld [vmem:[%s3913 + $0x10] sm:$0xf]
        %v3919 = vld [vmem:[%s3913 + $0x14] sm:$0xf]
        %v3920 = vld [vmem:[%s3913 + $0x18] sm:$0xf]
        %v3921 = vld [vmem:[%s3913 + $0x1c] sm:$0xf]
        %v3922 = vld [vmem:[%s3913 + $0x20] sm:$0xf]
        %v3923 = vld [vmem:[%s3913 + $0x24] sm:$0xf]
        %v3924 = vld [vmem:[%s3913 + $0x28] sm:$0xf]
        %v3925 = vld [vmem:[%s3913 + $0x2c] sm:$0xf]
        %v3926 = vld [vmem:[%s3913 + $0x30] sm:$0xf]
        %v3927 = vld [vmem:[%s3913 + $0x34] sm:$0xf]
        %v3928 = vld [vmem:[%s3913 + $0x38] sm:$0xf]
        %v3929 = vld [vmem:[%s3913 + $0x3c] sm:$0xf]
        %s3930 = scalar_lea.vmem %s6, 13
        %v3931 = vld [vmem:[%s3930] sm:$0x1]
        %v3933 = vperm.slane %v3931, 0
        %v3951 = vunpack.c.l.b16 %v3914
        %v3952 = vunpack.c.l.b16 %v3915
        %v3953 = vunpack.c.l.b16 %v3916
        %v3954 = vunpack.c.l.b16 %v3917
        %v3955 = vunpack.c.l.b16 %v3918
        %v3956 = vunpack.c.l.b16 %v3919
        %v3957 = vunpack.c.l.b16 %v3920
        %v3958 = vunpack.c.l.b16 %v3921
        %v3959 = vunpack.c.l.b16 %v3922
        %v3960 = vunpack.c.l.b16 %v3923
        %v3961 = vunpack.c.l.b16 %v3924
        %v3962 = vunpack.c.l.b16 %v3925
        %v3963 = vunpack.c.l.b16 %v3926
        %v3964 = vunpack.c.l.b16 %v3927
        %v3965 = vunpack.c.l.b16 %v3928
        %v3966 = vunpack.c.l.b16 %v3929
        %v3967 = vpack.c.b16 %v3952, %v3951
        %v3968 = vpack.c.b16 %v3954, %v3953
        %v3969 = vpack.c.b16 %v3956, %v3955
        %v3970 = vpack.c.b16 %v3958, %v3957
        %v3971 = vpack.c.b16 %v3960, %v3959
        %v3972 = vpack.c.b16 %v3962, %v3961
        %v3973 = vpack.c.b16 %v3964, %v3963
        %v3974 = vpack.c.b16 %v3966, %v3965
        %3983 = vmatpush.bf16.msra.mxu0 %v3974
        %3984 = vmatpush.bf16.msra.mxu0 %v3973
        %3985 = vmatpush.bf16.msra.mxu0 %v3972
        %3986 = vmatpush.bf16.msra.mxu0 %v3971
        %3987 = vmatpush.bf16.msra.mxu0 %v3970
        %3988 = vmatpush.bf16.msra.mxu0 %v3969
        %3989 = vmatpush.bf16.msra.mxu0 %v3968
        %3990 = vmatpush.bf16.msra.mxu0 %v3967
        %3991 = vmatmul.bf16.gmra.mxu0 %v3897
        %v3992 = vpop.f32.mrf.mxu0
        %v3993 = vadd.f32 %v3933, %v3992
        %v3994 = vpop.f32.mrf.mxu0
        %v3995 = vadd.f32 %v3933, %v3994
        %3996 = vmatmul.bf16.gmra.mxu0 %v3898
        %v3997 = vpop.f32.mrf.mxu0
        %v3998 = vadd.f32 %v3933, %v3997
        %v3999 = vpop.f32.mrf.mxu0
        %v4000 = vadd.f32 %v3933, %v3999
        %4001 = vmatmul.bf16.gmra.mxu0 %v3899
        %v4002 = vpop.f32.mrf.mxu0
        %v4003 = vadd.f32 %v3933, %v4002
        %v4004 = vpop.f32.mrf.mxu0
        %v4005 = vadd.f32 %v3933, %v4004
        %4006 = vmatmul.bf16.gmra.mxu0 %v3900
        %v4007 = vpop.f32.mrf.mxu0
        %v4008 = vadd.f32 %v3933, %v4007
        %v4009 = vpop.f32.mrf.mxu0
        %v4010 = vadd.f32 %v3933, %v4009
        %4011 = vmatmul.bf16.gmra.mxu0 %v3901
        %v4012 = vpop.f32.mrf.mxu0
        %v4013 = vadd.f32 %v3933, %v4012
        %v4014 = vpop.f32.mrf.mxu0
        %v4015 = vadd.f32 %v3933, %v4014
        %4016 = vmatmul.bf16.gmra.mxu0 %v3902
        %v4017 = vpop.f32.mrf.mxu0
        %v4018 = vadd.f32 %v3933, %v4017
        %v4019 = vpop.f32.mrf.mxu0
        %v4020 = vadd.f32 %v3933, %v4019
        %4021 = vmatmul.bf16.gmra.mxu0 %v3903
        %v4022 = vpop.f32.mrf.mxu0
        %v4023 = vadd.f32 %v3933, %v4022
        %v4024 = vpop.f32.mrf.mxu0
        %v4025 = vadd.f32 %v3933, %v4024
        %4026 = vmatmul.bf16.gmra.mxu0 %v3904
        %v4027 = vpop.f32.mrf.mxu0
        %v4028 = vadd.f32 %v3933, %v4027
        %v4029 = vpop.f32.mrf.mxu0
        %v4030 = vadd.f32 %v3933, %v4029
        %4031 = vmatmul.bf16.gmra.mxu0 %v3905
        %v4032 = vpop.f32.mrf.mxu0
        %v4033 = vadd.f32 %v3933, %v4032
        %v4034 = vpop.f32.mrf.mxu0
        %v4035 = vadd.f32 %v3933, %v4034
        %4036 = vmatmul.bf16.gmra.mxu0 %v3906
        %v4037 = vpop.f32.mrf.mxu0
        %v4038 = vadd.f32 %v3933, %v4037
        %v4039 = vpop.f32.mrf.mxu0
        %v4040 = vadd.f32 %v3933, %v4039
        %4041 = vmatmul.bf16.gmra.mxu0 %v3907
        %v4042 = vpop.f32.mrf.mxu0
        %v4043 = vadd.f32 %v3933, %v4042
        %v4044 = vpop.f32.mrf.mxu0
        %v4045 = vadd.f32 %v3933, %v4044
        %4046 = vmatmul.bf16.gmra.mxu0 %v3908
        %v4047 = vpop.f32.mrf.mxu0
        %v4048 = vadd.f32 %v3933, %v4047
        %v4049 = vpop.f32.mrf.mxu0
        %v4050 = vadd.f32 %v3933, %v4049
        %4051 = vmatmul.bf16.gmra.mxu0 %v3909
        %v4052 = vpop.f32.mrf.mxu0
        %v4053 = vadd.f32 %v3933, %v4052
        %v4054 = vpop.f32.mrf.mxu0
        %v4055 = vadd.f32 %v3933, %v4054
        %4056 = vmatmul.bf16.gmra.mxu0 %v3910
        %v4057 = vpop.f32.mrf.mxu0
        %v4058 = vadd.f32 %v3933, %v4057
        %v4059 = vpop.f32.mrf.mxu0
        %v4060 = vadd.f32 %v3933, %v4059
        %4061 = vmatmul.bf16.gmra.mxu0 %v3911
        %v4062 = vpop.f32.mrf.mxu0
        %v4063 = vadd.f32 %v3933, %v4062
        %v4064 = vpop.f32.mrf.mxu0
        %v4065 = vadd.f32 %v3933, %v4064
        %4066 = vmatmul.bf16.gmra.mxu0 %v3912
        %v4067 = vpop.f32.mrf.mxu0
        %v4068 = vadd.f32 %v3933, %v4067
        %v4069 = vpop.f32.mrf.mxu0
        %v4070 = vadd.f32 %v3933, %v4069
        %4071 = vdwg.mxu0
        %v4072 = vtanh.pop %v3993
        %v4073 = vtanh.pop %v3995
        %v4074 = vtanh.pop %v3998
        %v4075 = vtanh.pop %v4000
        %v4076 = vtanh.pop %v4003
        %v4077 = vtanh.pop %v4005
        %v4078 = vtanh.pop %v4008
        %v4079 = vtanh.pop %v4010
        %v4080 = vtanh.pop %v4013
        %v4081 = vtanh.pop %v4015
        %v4082 = vtanh.pop %v4018
        %v4083 = vtanh.pop %v4020
        %v4084 = vtanh.pop %v4023
        %v4085 = vtanh.pop %v4025
        %v4086 = vtanh.pop %v4028
        %v4087 = vtanh.pop %v4030
        %v4088 = vtanh.pop %v4033
        %v4089 = vtanh.pop %v4035
        %v4090 = vtanh.pop %v4038
        %v4091 = vtanh.pop %v4040
        %v4092 = vtanh.pop %v4043
        %v4093 = vtanh.pop %v4045
        %v4094 = vtanh.pop %v4048
        %v4095 = vtanh.pop %v4050
        %v4096 = vtanh.pop %v4053
        %v4097 = vtanh.pop %v4055
        %v4098 = vtanh.pop %v4058
        %v4099 = vtanh.pop %v4060
        %v4100 = vtanh.pop %v4063
        %v4101 = vtanh.pop %v4065
        %v4102 = vtanh.pop %v4068
        %v4103 = vtanh.pop %v4070
        %v4104 = vpack.c.bf16 %v4073, %v4072
        %v4105 = vpack.c.bf16 %v4075, %v4074
        %v4106 = vpack.c.bf16 %v4077, %v4076
        %v4107 = vpack.c.bf16 %v4079, %v4078
        %v4108 = vpack.c.bf16 %v4081, %v4080
        %v4109 = vpack.c.bf16 %v4083, %v4082
        %v4110 = vpack.c.bf16 %v4085, %v4084
        %v4111 = vpack.c.bf16 %v4087, %v4086
        %v4112 = vpack.c.bf16 %v4089, %v4088
        %v4113 = vpack.c.bf16 %v4091, %v4090
        %v4114 = vpack.c.bf16 %v4093, %v4092
        %v4115 = vpack.c.bf16 %v4095, %v4094
        %v4116 = vpack.c.bf16 %v4097, %v4096
        %v4117 = vpack.c.bf16 %v4099, %v4098
        %v4118 = vpack.c.bf16 %v4101, %v4100
        %v4119 = vpack.c.bf16 %v4103, %v4102
        %s4120 = scalar_lea.vmem [#allocation8], 896
        %v4121 = vld [vmem:[%s4120] sm:$0xf]
        %v4122 = vld [vmem:[%s4120 + $0x4] sm:$0xf]
        %v4123 = vld [vmem:[%s4120 + $0x8] sm:$0xf]
        %v4124 = vld [vmem:[%s4120 + $0xc] sm:$0xf]
        %v4125 = vld [vmem:[%s4120 + $0x10] sm:$0xf]
        %v4126 = vld [vmem:[%s4120 + $0x14] sm:$0xf]
        %v4127 = vld [vmem:[%s4120 + $0x18] sm:$0xf]
        %v4128 = vld [vmem:[%s4120 + $0x1c] sm:$0xf]
        %v4129 = vld [vmem:[%s4120 + $0x20] sm:$0xf]
        %v4130 = vld [vmem:[%s4120 + $0x24] sm:$0xf]
        %v4131 = vld [vmem:[%s4120 + $0x28] sm:$0xf]
        %v4132 = vld [vmem:[%s4120 + $0x2c] sm:$0xf]
        %v4133 = vld [vmem:[%s4120 + $0x30] sm:$0xf]
        %v4134 = vld [vmem:[%s4120 + $0x34] sm:$0xf]
        %v4135 = vld [vmem:[%s4120 + $0x38] sm:$0xf]
        %v4136 = vld [vmem:[%s4120 + $0x3c] sm:$0xf]
        %s4137 = scalar_lea.vmem %s6, 14
        %v4138 = vld [vmem:[%s4137] sm:$0x1]
        %v4140 = vperm.slane %v4138, 0
        %v4158 = vunpack.c.l.b16 %v4121
        %v4159 = vunpack.c.l.b16 %v4122
        %v4160 = vunpack.c.l.b16 %v4123
        %v4161 = vunpack.c.l.b16 %v4124
        %v4162 = vunpack.c.l.b16 %v4125
        %v4163 = vunpack.c.l.b16 %v4126
        %v4164 = vunpack.c.l.b16 %v4127
        %v4165 = vunpack.c.l.b16 %v4128
        %v4166 = vunpack.c.l.b16 %v4129
        %v4167 = vunpack.c.l.b16 %v4130
        %v4168 = vunpack.c.l.b16 %v4131
        %v4169 = vunpack.c.l.b16 %v4132
        %v4170 = vunpack.c.l.b16 %v4133
        %v4171 = vunpack.c.l.b16 %v4134
        %v4172 = vunpack.c.l.b16 %v4135
        %v4173 = vunpack.c.l.b16 %v4136
        %v4174 = vpack.c.b16 %v4159, %v4158
        %v4175 = vpack.c.b16 %v4161, %v4160
        %v4176 = vpack.c.b16 %v4163, %v4162
        %v4177 = vpack.c.b16 %v4165, %v4164
        %v4178 = vpack.c.b16 %v4167, %v4166
        %v4179 = vpack.c.b16 %v4169, %v4168
        %v4180 = vpack.c.b16 %v4171, %v4170
        %v4181 = vpack.c.b16 %v4173, %v4172
        %4190 = vmatpush.bf16.msra.mxu0 %v4181
        %4191 = vmatpush.bf16.msra.mxu0 %v4180
        %4192 = vmatpush.bf16.msra.mxu0 %v4179
        %4193 = vmatpush.bf16.msra.mxu0 %v4178
        %4194 = vmatpush.bf16.msra.mxu0 %v4177
        %4195 = vmatpush.bf16.msra.mxu0 %v4176
        %4196 = vmatpush.bf16.msra.mxu0 %v4175
        %4197 = vmatpush.bf16.msra.mxu0 %v4174
        %4198 = vmatmul.bf16.gmra.mxu0 %v4104
        %v4199 = vpop.f32.mrf.mxu0
        %v4200 = vadd.f32 %v4140, %v4199
        %v4201 = vpop.f32.mrf.mxu0
        %v4202 = vadd.f32 %v4140, %v4201
        %4203 = vmatmul.bf16.gmra.mxu0 %v4105
        %v4204 = vpop.f32.mrf.mxu0
        %v4205 = vadd.f32 %v4140, %v4204
        %v4206 = vpop.f32.mrf.mxu0
        %v4207 = vadd.f32 %v4140, %v4206
        %4208 = vmatmul.bf16.gmra.mxu0 %v4106
        %v4209 = vpop.f32.mrf.mxu0
        %v4210 = vadd.f32 %v4140, %v4209
        %v4211 = vpop.f32.mrf.mxu0
        %v4212 = vadd.f32 %v4140, %v4211
        %4213 = vmatmul.bf16.gmra.mxu0 %v4107
        %v4214 = vpop.f32.mrf.mxu0
        %v4215 = vadd.f32 %v4140, %v4214
        %v4216 = vpop.f32.mrf.mxu0
        %v4217 = vadd.f32 %v4140, %v4216
        %4218 = vmatmul.bf16.gmra.mxu0 %v4108
        %v4219 = vpop.f32.mrf.mxu0
        %v4220 = vadd.f32 %v4140, %v4219
        %v4221 = vpop.f32.mrf.mxu0
        %v4222 = vadd.f32 %v4140, %v4221
        %4223 = vmatmul.bf16.gmra.mxu0 %v4109
        %v4224 = vpop.f32.mrf.mxu0
        %v4225 = vadd.f32 %v4140, %v4224
        %v4226 = vpop.f32.mrf.mxu0
        %v4227 = vadd.f32 %v4140, %v4226
        %4228 = vmatmul.bf16.gmra.mxu0 %v4110
        %v4229 = vpop.f32.mrf.mxu0
        %v4230 = vadd.f32 %v4140, %v4229
        %v4231 = vpop.f32.mrf.mxu0
        %v4232 = vadd.f32 %v4140, %v4231
        %4233 = vmatmul.bf16.gmra.mxu0 %v4111
        %v4234 = vpop.f32.mrf.mxu0
        %v4235 = vadd.f32 %v4140, %v4234
        %v4236 = vpop.f32.mrf.mxu0
        %v4237 = vadd.f32 %v4140, %v4236
        %4238 = vmatmul.bf16.gmra.mxu0 %v4112
        %v4239 = vpop.f32.mrf.mxu0
        %v4240 = vadd.f32 %v4140, %v4239
        %v4241 = vpop.f32.mrf.mxu0
        %v4242 = vadd.f32 %v4140, %v4241
        %4243 = vmatmul.bf16.gmra.mxu0 %v4113
        %v4244 = vpop.f32.mrf.mxu0
        %v4245 = vadd.f32 %v4140, %v4244
        %v4246 = vpop.f32.mrf.mxu0
        %v4247 = vadd.f32 %v4140, %v4246
        %4248 = vmatmul.bf16.gmra.mxu0 %v4114
        %v4249 = vpop.f32.mrf.mxu0
        %v4250 = vadd.f32 %v4140, %v4249
        %v4251 = vpop.f32.mrf.mxu0
        %v4252 = vadd.f32 %v4140, %v4251
        %4253 = vmatmul.bf16.gmra.mxu0 %v4115
        %v4254 = vpop.f32.mrf.mxu0
        %v4255 = vadd.f32 %v4140, %v4254
        %v4256 = vpop.f32.mrf.mxu0
        %v4257 = vadd.f32 %v4140, %v4256
        %4258 = vmatmul.bf16.gmra.mxu0 %v4116
        %v4259 = vpop.f32.mrf.mxu0
        %v4260 = vadd.f32 %v4140, %v4259
        %v4261 = vpop.f32.mrf.mxu0
        %v4262 = vadd.f32 %v4140, %v4261
        %4263 = vmatmul.bf16.gmra.mxu0 %v4117
        %v4264 = vpop.f32.mrf.mxu0
        %v4265 = vadd.f32 %v4140, %v4264
        %v4266 = vpop.f32.mrf.mxu0
        %v4267 = vadd.f32 %v4140, %v4266
        %4268 = vmatmul.bf16.gmra.mxu0 %v4118
        %v4269 = vpop.f32.mrf.mxu0
        %v4270 = vadd.f32 %v4140, %v4269
        %v4271 = vpop.f32.mrf.mxu0
        %v4272 = vadd.f32 %v4140, %v4271
        %4273 = vmatmul.bf16.gmra.mxu0 %v4119
        %v4274 = vpop.f32.mrf.mxu0
        %v4275 = vadd.f32 %v4140, %v4274
        %v4276 = vpop.f32.mrf.mxu0
        %v4277 = vadd.f32 %v4140, %v4276
        %4278 = vdwg.mxu0
        %v4279 = vtanh.pop %v4200
        %v4280 = vtanh.pop %v4202
        %v4281 = vtanh.pop %v4205
        %v4282 = vtanh.pop %v4207
        %v4283 = vtanh.pop %v4210
        %v4284 = vtanh.pop %v4212
        %v4285 = vtanh.pop %v4215
        %v4286 = vtanh.pop %v4217
        %v4287 = vtanh.pop %v4220
        %v4288 = vtanh.pop %v4222
        %v4289 = vtanh.pop %v4225
        %v4290 = vtanh.pop %v4227
        %v4291 = vtanh.pop %v4230
        %v4292 = vtanh.pop %v4232
        %v4293 = vtanh.pop %v4235
        %v4294 = vtanh.pop %v4237
        %v4295 = vtanh.pop %v4240
        %v4296 = vtanh.pop %v4242
        %v4297 = vtanh.pop %v4245
        %v4298 = vtanh.pop %v4247
        %v4299 = vtanh.pop %v4250
        %v4300 = vtanh.pop %v4252
        %v4301 = vtanh.pop %v4255
        %v4302 = vtanh.pop %v4257
        %v4303 = vtanh.pop %v4260
        %v4304 = vtanh.pop %v4262
        %v4305 = vtanh.pop %v4265
        %v4306 = vtanh.pop %v4267
        %v4307 = vtanh.pop %v4270
        %v4308 = vtanh.pop %v4272
        %v4309 = vtanh.pop %v4275
        %v4310 = vtanh.pop %v4277
        %v4311 = vpack.c.bf16 %v4280, %v4279
        %v4312 = vpack.c.bf16 %v4282, %v4281
        %v4313 = vpack.c.bf16 %v4284, %v4283
        %v4314 = vpack.c.bf16 %v4286, %v4285
        %v4315 = vpack.c.bf16 %v4288, %v4287
        %v4316 = vpack.c.bf16 %v4290, %v4289
        %v4317 = vpack.c.bf16 %v4292, %v4291
        %v4318 = vpack.c.bf16 %v4294, %v4293
        %v4319 = vpack.c.bf16 %v4296, %v4295
        %v4320 = vpack.c.bf16 %v4298, %v4297
        %v4321 = vpack.c.bf16 %v4300, %v4299
        %v4322 = vpack.c.bf16 %v4302, %v4301
        %v4323 = vpack.c.bf16 %v4304, %v4303
        %v4324 = vpack.c.bf16 %v4306, %v4305
        %v4325 = vpack.c.bf16 %v4308, %v4307
        %v4326 = vpack.c.bf16 %v4310, %v4309
        %s4327 = scalar_lea.vmem [#allocation8], 960
        %v4328 = vld [vmem:[%s4327] sm:$0xf]
        %v4329 = vld [vmem:[%s4327 + $0x4] sm:$0xf]
        %v4330 = vld [vmem:[%s4327 + $0x8] sm:$0xf]
        %v4331 = vld [vmem:[%s4327 + $0xc] sm:$0xf]
        %v4332 = vld [vmem:[%s4327 + $0x10] sm:$0xf]
        %v4333 = vld [vmem:[%s4327 + $0x14] sm:$0xf]
        %v4334 = vld [vmem:[%s4327 + $0x18] sm:$0xf]
        %v4335 = vld [vmem:[%s4327 + $0x1c] sm:$0xf]
        %v4336 = vld [vmem:[%s4327 + $0x20] sm:$0xf]
        %v4337 = vld [vmem:[%s4327 + $0x24] sm:$0xf]
        %v4338 = vld [vmem:[%s4327 + $0x28] sm:$0xf]
        %v4339 = vld [vmem:[%s4327 + $0x2c] sm:$0xf]
        %v4340 = vld [vmem:[%s4327 + $0x30] sm:$0xf]
        %v4341 = vld [vmem:[%s4327 + $0x34] sm:$0xf]
        %v4342 = vld [vmem:[%s4327 + $0x38] sm:$0xf]
        %v4343 = vld [vmem:[%s4327 + $0x3c] sm:$0xf]
        %s4344 = scalar_lea.vmem %s6, 15
        %v4345 = vld [vmem:[%s4344] sm:$0x1]
        %v4347 = vperm.slane %v4345, 0
        %v4365 = vunpack.c.l.b16 %v4328
        %v4366 = vunpack.c.l.b16 %v4329
        %v4367 = vunpack.c.l.b16 %v4330
        %v4368 = vunpack.c.l.b16 %v4331
        %v4369 = vunpack.c.l.b16 %v4332
        %v4370 = vunpack.c.l.b16 %v4333
        %v4371 = vunpack.c.l.b16 %v4334
        %v4372 = vunpack.c.l.b16 %v4335
        %v4373 = vunpack.c.l.b16 %v4336
        %v4374 = vunpack.c.l.b16 %v4337
        %v4375 = vunpack.c.l.b16 %v4338
        %v4376 = vunpack.c.l.b16 %v4339
        %v4377 = vunpack.c.l.b16 %v4340
        %v4378 = vunpack.c.l.b16 %v4341
        %v4379 = vunpack.c.l.b16 %v4342
        %v4380 = vunpack.c.l.b16 %v4343
        %v4381 = vpack.c.b16 %v4366, %v4365
        %v4382 = vpack.c.b16 %v4368, %v4367
        %v4383 = vpack.c.b16 %v4370, %v4369
        %v4384 = vpack.c.b16 %v4372, %v4371
        %v4385 = vpack.c.b16 %v4374, %v4373
        %v4386 = vpack.c.b16 %v4376, %v4375
        %v4387 = vpack.c.b16 %v4378, %v4377
        %v4388 = vpack.c.b16 %v4380, %v4379
        %4397 = vmatpush.bf16.msra.mxu0 %v4388
        %4398 = vmatpush.bf16.msra.mxu0 %v4387
        %4399 = vmatpush.bf16.msra.mxu0 %v4386
        %4400 = vmatpush.bf16.msra.mxu0 %v4385
        %4401 = vmatpush.bf16.msra.mxu0 %v4384
        %4402 = vmatpush.bf16.msra.mxu0 %v4383
        %4403 = vmatpush.bf16.msra.mxu0 %v4382
        %4404 = vmatpush.bf16.msra.mxu0 %v4381
        %4405 = vmatmul.bf16.gmra.mxu0 %v4311
        %v4406 = vpop.f32.mrf.mxu0
        %v4407 = vadd.f32 %v4347, %v4406
        %v4408 = vpop.f32.mrf.mxu0
        %v4409 = vadd.f32 %v4347, %v4408
        %4410 = vmatmul.bf16.gmra.mxu0 %v4312
        %v4411 = vpop.f32.mrf.mxu0
        %v4412 = vadd.f32 %v4347, %v4411
        %v4413 = vpop.f32.mrf.mxu0
        %v4414 = vadd.f32 %v4347, %v4413
        %4415 = vmatmul.bf16.gmra.mxu0 %v4313
        %v4416 = vpop.f32.mrf.mxu0
        %v4417 = vadd.f32 %v4347, %v4416
        %v4418 = vpop.f32.mrf.mxu0
        %v4419 = vadd.f32 %v4347, %v4418
        %4420 = vmatmul.bf16.gmra.mxu0 %v4314
        %v4421 = vpop.f32.mrf.mxu0
        %v4422 = vadd.f32 %v4347, %v4421
        %v4423 = vpop.f32.mrf.mxu0
        %v4424 = vadd.f32 %v4347, %v4423
        %4425 = vmatmul.bf16.gmra.mxu0 %v4315
        %v4426 = vpop.f32.mrf.mxu0
        %v4427 = vadd.f32 %v4347, %v4426
        %v4428 = vpop.f32.mrf.mxu0
        %v4429 = vadd.f32 %v4347, %v4428
        %4430 = vmatmul.bf16.gmra.mxu0 %v4316
        %v4431 = vpop.f32.mrf.mxu0
        %v4432 = vadd.f32 %v4347, %v4431
        %v4433 = vpop.f32.mrf.mxu0
        %v4434 = vadd.f32 %v4347, %v4433
        %4435 = vmatmul.bf16.gmra.mxu0 %v4317
        %v4436 = vpop.f32.mrf.mxu0
        %v4437 = vadd.f32 %v4347, %v4436
        %v4438 = vpop.f32.mrf.mxu0
        %v4439 = vadd.f32 %v4347, %v4438
        %4440 = vmatmul.bf16.gmra.mxu0 %v4318
        %v4441 = vpop.f32.mrf.mxu0
        %v4442 = vadd.f32 %v4347, %v4441
        %v4443 = vpop.f32.mrf.mxu0
        %v4444 = vadd.f32 %v4347, %v4443
        %4445 = vmatmul.bf16.gmra.mxu0 %v4319
        %v4446 = vpop.f32.mrf.mxu0
        %v4447 = vadd.f32 %v4347, %v4446
        %v4448 = vpop.f32.mrf.mxu0
        %v4449 = vadd.f32 %v4347, %v4448
        %4450 = vmatmul.bf16.gmra.mxu0 %v4320
        %v4451 = vpop.f32.mrf.mxu0
        %v4452 = vadd.f32 %v4347, %v4451
        %v4453 = vpop.f32.mrf.mxu0
        %v4454 = vadd.f32 %v4347, %v4453
        %4455 = vmatmul.bf16.gmra.mxu0 %v4321
        %v4456 = vpop.f32.mrf.mxu0
        %v4457 = vadd.f32 %v4347, %v4456
        %v4458 = vpop.f32.mrf.mxu0
        %v4459 = vadd.f32 %v4347, %v4458
        %4460 = vmatmul.bf16.gmra.mxu0 %v4322
        %v4461 = vpop.f32.mrf.mxu0
        %v4462 = vadd.f32 %v4347, %v4461
        %v4463 = vpop.f32.mrf.mxu0
        %v4464 = vadd.f32 %v4347, %v4463
        %4465 = vmatmul.bf16.gmra.mxu0 %v4323
        %v4466 = vpop.f32.mrf.mxu0
        %v4467 = vadd.f32 %v4347, %v4466
        %v4468 = vpop.f32.mrf.mxu0
        %v4469 = vadd.f32 %v4347, %v4468
        %4470 = vmatmul.bf16.gmra.mxu0 %v4324
        %v4471 = vpop.f32.mrf.mxu0
        %v4472 = vadd.f32 %v4347, %v4471
        %v4473 = vpop.f32.mrf.mxu0
        %v4474 = vadd.f32 %v4347, %v4473
        %4475 = vmatmul.bf16.gmra.mxu0 %v4325
        %v4476 = vpop.f32.mrf.mxu0
        %v4477 = vadd.f32 %v4347, %v4476
        %v4478 = vpop.f32.mrf.mxu0
        %v4479 = vadd.f32 %v4347, %v4478
        %4480 = vmatmul.bf16.gmra.mxu0 %v4326
        %v4481 = vpop.f32.mrf.mxu0
        %v4482 = vadd.f32 %v4347, %v4481
        %v4483 = vpop.f32.mrf.mxu0
        %v4484 = vadd.f32 %v4347, %v4483
        %4485 = vdwg.mxu0
        %v4486 = vtanh.pop %v4407
        %v4487 = vtanh.pop %v4409
        %v4488 = vtanh.pop %v4412
        %v4489 = vtanh.pop %v4414
        %v4490 = vtanh.pop %v4417
        %v4491 = vtanh.pop %v4419
        %v4492 = vtanh.pop %v4422
        %v4493 = vtanh.pop %v4424
        %v4494 = vtanh.pop %v4427
        %v4495 = vtanh.pop %v4429
        %v4496 = vtanh.pop %v4432
        %v4497 = vtanh.pop %v4434
        %v4498 = vtanh.pop %v4437
        %v4499 = vtanh.pop %v4439
        %v4500 = vtanh.pop %v4442
        %v4501 = vtanh.pop %v4444
        %v4502 = vtanh.pop %v4447
        %v4503 = vtanh.pop %v4449
        %v4504 = vtanh.pop %v4452
        %v4505 = vtanh.pop %v4454
        %v4506 = vtanh.pop %v4457
        %v4507 = vtanh.pop %v4459
        %v4508 = vtanh.pop %v4462
        %v4509 = vtanh.pop %v4464
        %v4510 = vtanh.pop %v4467
        %v4511 = vtanh.pop %v4469
        %v4512 = vtanh.pop %v4472
        %v4513 = vtanh.pop %v4474
        %v4514 = vtanh.pop %v4477
        %v4515 = vtanh.pop %v4479
        %v4516 = vtanh.pop %v4482
        %v4517 = vtanh.pop %v4484
        %s4518 = scalar_lea.vmem %s7, 1
        %v4519 = vld [vmem:[%s4518] sm:$0x1]
        %v4521 = vperm.slane %v4519, 0
        %v4523 = vmul.f32 %v4486, %v4521
        %v4524 = vmul.f32 %v4487, %v4521
        %v4525 = vmul.f32 %v4488, %v4521
        %v4526 = vmul.f32 %v4489, %v4521
        %v4527 = vmul.f32 %v4490, %v4521
        %v4528 = vmul.f32 %v4491, %v4521
        %v4529 = vmul.f32 %v4492, %v4521
        %v4530 = vmul.f32 %v4493, %v4521
        %v4531 = vmul.f32 %v4494, %v4521
        %v4532 = vmul.f32 %v4495, %v4521
        %v4533 = vmul.f32 %v4496, %v4521
        %v4534 = vmul.f32 %v4497, %v4521
        %v4535 = vmul.f32 %v4498, %v4521
        %v4536 = vmul.f32 %v4499, %v4521
        %v4537 = vmul.f32 %v4500, %v4521
        %v4538 = vmul.f32 %v4501, %v4521
        %v4539 = vmul.f32 %v4502, %v4521
        %v4540 = vmul.f32 %v4503, %v4521
        %v4541 = vmul.f32 %v4504, %v4521
        %v4542 = vmul.f32 %v4505, %v4521
        %v4543 = vmul.f32 %v4506, %v4521
        %v4544 = vmul.f32 %v4507, %v4521
        %v4545 = vmul.f32 %v4508, %v4521
        %v4546 = vmul.f32 %v4509, %v4521
        %v4547 = vmul.f32 %v4510, %v4521
        %v4548 = vmul.f32 %v4511, %v4521
        %v4549 = vmul.f32 %v4512, %v4521
        %v4550 = vmul.f32 %v4513, %v4521
        %v4551 = vmul.f32 %v4514, %v4521
        %v4552 = vmul.f32 %v4515, %v4521
        %v4553 = vmul.f32 %v4516, %v4521
        %v4554 = vmul.f32 %v4517, %v4521
        %4555 = vadd.xlane.f32.xlu0 %v4523
        %v4556 = vpop.xlane.xlu0 %4555
        %4557 = vadd.xlane.f32.xlu0 %v4524
        %v4558 = vpop.xlane.xlu0 %4557
        %4559 = vadd.xlane.f32.xlu0 %v4525
        %v4560 = vpop.xlane.xlu0 %4559
        %4561 = vadd.xlane.f32.xlu0 %v4526
        %v4562 = vpop.xlane.xlu0 %4561
        %4563 = vadd.xlane.f32.xlu0 %v4527
        %v4564 = vpop.xlane.xlu0 %4563
        %4565 = vadd.xlane.f32.xlu0 %v4528
        %v4566 = vpop.xlane.xlu0 %4565
        %4567 = vadd.xlane.f32.xlu0 %v4529
        %v4568 = vpop.xlane.xlu0 %4567
        %4569 = vadd.xlane.f32.xlu0 %v4530
        %v4570 = vpop.xlane.xlu0 %4569
        %4571 = vadd.xlane.f32.xlu0 %v4531
        %v4572 = vpop.xlane.xlu0 %4571
        %4573 = vadd.xlane.f32.xlu0 %v4532
        %v4574 = vpop.xlane.xlu0 %4573
        %4575 = vadd.xlane.f32.xlu0 %v4533
        %v4576 = vpop.xlane.xlu0 %4575
        %4577 = vadd.xlane.f32.xlu0 %v4534
        %v4578 = vpop.xlane.xlu0 %4577
        %4579 = vadd.xlane.f32.xlu0 %v4535
        %v4580 = vpop.xlane.xlu0 %4579
        %4581 = vadd.xlane.f32.xlu0 %v4536
        %v4582 = vpop.xlane.xlu0 %4581
        %4583 = vadd.xlane.f32.xlu0 %v4537
        %v4584 = vpop.xlane.xlu0 %4583
        %4585 = vadd.xlane.f32.xlu0 %v4538
        %v4586 = vpop.xlane.xlu0 %4585
        %4587 = vadd.xlane.f32.xlu0 %v4539
        %v4588 = vpop.xlane.xlu0 %4587
        %4589 = vadd.xlane.f32.xlu0 %v4540
        %v4590 = vpop.xlane.xlu0 %4589
        %4591 = vadd.xlane.f32.xlu0 %v4541
        %v4592 = vpop.xlane.xlu0 %4591
        %4593 = vadd.xlane.f32.xlu0 %v4542
        %v4594 = vpop.xlane.xlu0 %4593
        %4595 = vadd.xlane.f32.xlu0 %v4543
        %v4596 = vpop.xlane.xlu0 %4595
        %4597 = vadd.xlane.f32.xlu0 %v4544
        %v4598 = vpop.xlane.xlu0 %4597
        %4599 = vadd.xlane.f32.xlu0 %v4545
        %v4600 = vpop.xlane.xlu0 %4599
        %4601 = vadd.xlane.f32.xlu0 %v4546
        %v4602 = vpop.xlane.xlu0 %4601
        %4603 = vadd.xlane.f32.xlu0 %v4547
        %v4604 = vpop.xlane.xlu0 %4603
        %4605 = vadd.xlane.f32.xlu0 %v4548
        %v4606 = vpop.xlane.xlu0 %4605
        %4607 = vadd.xlane.f32.xlu0 %v4549
        %v4608 = vpop.xlane.xlu0 %4607
        %4609 = vadd.xlane.f32.xlu0 %v4550
        %v4610 = vpop.xlane.xlu0 %4609
        %4611 = vadd.xlane.f32.xlu0 %v4551
        %v4612 = vpop.xlane.xlu0 %4611
        %4613 = vadd.xlane.f32.xlu0 %v4552
        %v4614 = vpop.xlane.xlu0 %4613
        %4615 = vadd.xlane.f32.xlu0 %v4553
        %v4616 = vpop.xlane.xlu0 %4615
        %4617 = vadd.xlane.f32.xlu0 %v4554
        %v4618 = vpop.xlane.xlu0 %4617
        %s4619 = sld [smem:[#allocation6 + $0x1]]
        %v4620 = vstv %s4619
        %v4621 = vadd.f32 %v4556, %v4620
        %v4622 = vadd.f32 %v4558, %v4620
        %v4623 = vadd.f32 %v4560, %v4620
        %v4624 = vadd.f32 %v4562, %v4620
        %v4625 = vadd.f32 %v4564, %v4620
        %v4626 = vadd.f32 %v4566, %v4620
        %v4627 = vadd.f32 %v4568, %v4620
        %v4628 = vadd.f32 %v4570, %v4620
        %v4629 = vadd.f32 %v4572, %v4620
        %v4630 = vadd.f32 %v4574, %v4620
        %v4631 = vadd.f32 %v4576, %v4620
        %v4632 = vadd.f32 %v4578, %v4620
        %v4633 = vadd.f32 %v4580, %v4620
        %v4634 = vadd.f32 %v4582, %v4620
        %v4635 = vadd.f32 %v4584, %v4620
        %v4636 = vadd.f32 %v4586, %v4620
        %v4637 = vadd.f32 %v4588, %v4620
        %v4638 = vadd.f32 %v4590, %v4620
        %v4639 = vadd.f32 %v4592, %v4620
        %v4640 = vadd.f32 %v4594, %v4620
        %v4641 = vadd.f32 %v4596, %v4620
        %v4642 = vadd.f32 %v4598, %v4620
        %v4643 = vadd.f32 %v4600, %v4620
        %v4644 = vadd.f32 %v4602, %v4620
        %v4645 = vadd.f32 %v4604, %v4620
        %v4646 = vadd.f32 %v4606, %v4620
        %v4647 = vadd.f32 %v4608, %v4620
        %v4648 = vadd.f32 %v4610, %v4620
        %v4649 = vadd.f32 %v4612, %v4620
        %v4650 = vadd.f32 %v4614, %v4620
        %v4651 = vadd.f32 %v4616, %v4620
        %v4652 = vadd.f32 %v4618, %v4620
        %s4653 = scalar_lea.vmem %s7, 2
        %v4654 = vld [vmem:[%s4653] sm:$0x1]
        %v4656 = vperm.slane %v4654, 0
        %v4658 = vmul.f32 %v4486, %v4656
        %v4659 = vmul.f32 %v4487, %v4656
        %v4660 = vmul.f32 %v4488, %v4656
        %v4661 = vmul.f32 %v4489, %v4656
        %v4662 = vmul.f32 %v4490, %v4656
        %v4663 = vmul.f32 %v4491, %v4656
        %v4664 = vmul.f32 %v4492, %v4656
        %v4665 = vmul.f32 %v4493, %v4656
        %v4666 = vmul.f32 %v4494, %v4656
        %v4667 = vmul.f32 %v4495, %v4656
        %v4668 = vmul.f32 %v4496, %v4656
        %v4669 = vmul.f32 %v4497, %v4656
        %v4670 = vmul.f32 %v4498, %v4656
        %v4671 = vmul.f32 %v4499, %v4656
        %v4672 = vmul.f32 %v4500, %v4656
        %v4673 = vmul.f32 %v4501, %v4656
        %v4674 = vmul.f32 %v4502, %v4656
        %v4675 = vmul.f32 %v4503, %v4656
        %v4676 = vmul.f32 %v4504, %v4656
        %v4677 = vmul.f32 %v4505, %v4656
        %v4678 = vmul.f32 %v4506, %v4656
        %v4679 = vmul.f32 %v4507, %v4656
        %v4680 = vmul.f32 %v4508, %v4656
        %v4681 = vmul.f32 %v4509, %v4656
        %v4682 = vmul.f32 %v4510, %v4656
        %v4683 = vmul.f32 %v4511, %v4656
        %v4684 = vmul.f32 %v4512, %v4656
        %v4685 = vmul.f32 %v4513, %v4656
        %v4686 = vmul.f32 %v4514, %v4656
        %v4687 = vmul.f32 %v4515, %v4656
        %v4688 = vmul.f32 %v4516, %v4656
        %v4689 = vmul.f32 %v4517, %v4656
        %4690 = vadd.xlane.f32.xlu0 %v4658
        %v4691 = vpop.xlane.xlu0 %4690
        %4692 = vadd.xlane.f32.xlu0 %v4659
        %v4693 = vpop.xlane.xlu0 %4692
        %4694 = vadd.xlane.f32.xlu0 %v4660
        %v4695 = vpop.xlane.xlu0 %4694
        %4696 = vadd.xlane.f32.xlu0 %v4661
        %v4697 = vpop.xlane.xlu0 %4696
        %4698 = vadd.xlane.f32.xlu0 %v4662
        %v4699 = vpop.xlane.xlu0 %4698
        %4700 = vadd.xlane.f32.xlu0 %v4663
        %v4701 = vpop.xlane.xlu0 %4700
        %4702 = vadd.xlane.f32.xlu0 %v4664
        %v4703 = vpop.xlane.xlu0 %4702
        %4704 = vadd.xlane.f32.xlu0 %v4665
        %v4705 = vpop.xlane.xlu0 %4704
        %4706 = vadd.xlane.f32.xlu0 %v4666
        %v4707 = vpop.xlane.xlu0 %4706
        %4708 = vadd.xlane.f32.xlu0 %v4667
        %v4709 = vpop.xlane.xlu0 %4708
        %4710 = vadd.xlane.f32.xlu0 %v4668
        %v4711 = vpop.xlane.xlu0 %4710
        %4712 = vadd.xlane.f32.xlu0 %v4669
        %v4713 = vpop.xlane.xlu0 %4712
        %4714 = vadd.xlane.f32.xlu0 %v4670
        %v4715 = vpop.xlane.xlu0 %4714
        %4716 = vadd.xlane.f32.xlu0 %v4671
        %v4717 = vpop.xlane.xlu0 %4716
        %4718 = vadd.xlane.f32.xlu0 %v4672
        %v4719 = vpop.xlane.xlu0 %4718
        %4720 = vadd.xlane.f32.xlu0 %v4673
        %v4721 = vpop.xlane.xlu0 %4720
        %4722 = vadd.xlane.f32.xlu0 %v4674
        %v4723 = vpop.xlane.xlu0 %4722
        %4724 = vadd.xlane.f32.xlu0 %v4675
        %v4725 = vpop.xlane.xlu0 %4724
        %4726 = vadd.xlane.f32.xlu0 %v4676
        %v4727 = vpop.xlane.xlu0 %4726
        %4728 = vadd.xlane.f32.xlu0 %v4677
        %v4729 = vpop.xlane.xlu0 %4728
        %4730 = vadd.xlane.f32.xlu0 %v4678
        %v4731 = vpop.xlane.xlu0 %4730
        %4732 = vadd.xlane.f32.xlu0 %v4679
        %v4733 = vpop.xlane.xlu0 %4732
        %4734 = vadd.xlane.f32.xlu0 %v4680
        %v4735 = vpop.xlane.xlu0 %4734
        %4736 = vadd.xlane.f32.xlu0 %v4681
        %v4737 = vpop.xlane.xlu0 %4736
        %4738 = vadd.xlane.f32.xlu0 %v4682
        %v4739 = vpop.xlane.xlu0 %4738
        %4740 = vadd.xlane.f32.xlu0 %v4683
        %v4741 = vpop.xlane.xlu0 %4740
        %4742 = vadd.xlane.f32.xlu0 %v4684
        %v4743 = vpop.xlane.xlu0 %4742
        %4744 = vadd.xlane.f32.xlu0 %v4685
        %v4745 = vpop.xlane.xlu0 %4744
        %4746 = vadd.xlane.f32.xlu0 %v4686
        %v4747 = vpop.xlane.xlu0 %4746
        %4748 = vadd.xlane.f32.xlu0 %v4687
        %v4749 = vpop.xlane.xlu0 %4748
        %4750 = vadd.xlane.f32.xlu0 %v4688
        %v4751 = vpop.xlane.xlu0 %4750
        %4752 = vadd.xlane.f32.xlu0 %v4689
        %v4753 = vpop.xlane.xlu0 %4752
        %s4754 = sld [smem:[#allocation6 + $0x2]]
        %v4755 = vstv %s4754
        %v4756 = vadd.f32 %v4691, %v4755
        %v4757 = vadd.f32 %v4693, %v4755
        %v4758 = vadd.f32 %v4695, %v4755
        %v4759 = vadd.f32 %v4697, %v4755
        %v4760 = vadd.f32 %v4699, %v4755
        %v4761 = vadd.f32 %v4701, %v4755
        %v4762 = vadd.f32 %v4703, %v4755
        %v4763 = vadd.f32 %v4705, %v4755
        %v4764 = vadd.f32 %v4707, %v4755
        %v4765 = vadd.f32 %v4709, %v4755
        %v4766 = vadd.f32 %v4711, %v4755
        %v4767 = vadd.f32 %v4713, %v4755
        %v4768 = vadd.f32 %v4715, %v4755
        %v4769 = vadd.f32 %v4717, %v4755
        %v4770 = vadd.f32 %v4719, %v4755
        %v4771 = vadd.f32 %v4721, %v4755
        %v4772 = vadd.f32 %v4723, %v4755
        %v4773 = vadd.f32 %v4725, %v4755
        %v4774 = vadd.f32 %v4727, %v4755
        %v4775 = vadd.f32 %v4729, %v4755
        %v4776 = vadd.f32 %v4731, %v4755
        %v4777 = vadd.f32 %v4733, %v4755
        %v4778 = vadd.f32 %v4735, %v4755
        %v4779 = vadd.f32 %v4737, %v4755
        %v4780 = vadd.f32 %v4739, %v4755
        %v4781 = vadd.f32 %v4741, %v4755
        %v4782 = vadd.f32 %v4743, %v4755
        %v4783 = vadd.f32 %v4745, %v4755
        %v4784 = vadd.f32 %v4747, %v4755
        %v4785 = vadd.f32 %v4749, %v4755
        %v4786 = vadd.f32 %v4751, %v4755
        %v4787 = vadd.f32 %v4753, %v4755
        %s4788 = ssub.f32 0.0, %s351
        %v4789 = vstv %s4788
        %v4790 = vmul.f32 %v4789, %v4621
        %v4791 = vmul.f32 %v4789, %v4622
        %v4792 = vmul.f32 %v4789, %v4623
        %v4793 = vmul.f32 %v4789, %v4624
        %v4794 = vmul.f32 %v4789, %v4625
        %v4795 = vmul.f32 %v4789, %v4626
        %v4796 = vmul.f32 %v4789, %v4627
        %v4797 = vmul.f32 %v4789, %v4628
        %v4798 = vmul.f32 %v4789, %v4629
        %v4799 = vmul.f32 %v4789, %v4630
        %v4800 = vmul.f32 %v4789, %v4631
        %v4801 = vmul.f32 %v4789, %v4632
        %v4802 = vmul.f32 %v4789, %v4633
        %v4803 = vmul.f32 %v4789, %v4634
        %v4804 = vmul.f32 %v4789, %v4635
        %v4805 = vmul.f32 %v4789, %v4636
        %v4806 = vmul.f32 %v4789, %v4637
        %v4807 = vmul.f32 %v4789, %v4638
        %v4808 = vmul.f32 %v4789, %v4639
        %v4809 = vmul.f32 %v4789, %v4640
        %v4810 = vmul.f32 %v4789, %v4641
        %v4811 = vmul.f32 %v4789, %v4642
        %v4812 = vmul.f32 %v4789, %v4643
        %v4813 = vmul.f32 %v4789, %v4644
        %v4814 = vmul.f32 %v4789, %v4645
        %v4815 = vmul.f32 %v4789, %v4646
        %v4816 = vmul.f32 %v4789, %v4647
        %v4817 = vmul.f32 %v4789, %v4648
        %v4818 = vmul.f32 %v4789, %v4649
        %v4819 = vmul.f32 %v4789, %v4650
        %v4820 = vmul.f32 %v4789, %v4651
        %v4821 = vmul.f32 %v4789, %v4652
        %v4822 = vmul.f32 %v4790, 1.442695
        %v4823 = vpow.pop %v4822
        %v4824 = vmul.f32 %v4791, 1.442695
        %v4825 = vpow.pop %v4824
        %v4826 = vmul.f32 %v4792, 1.442695
        %v4827 = vpow.pop %v4826
        %v4828 = vmul.f32 %v4793, 1.442695
        %v4829 = vpow.pop %v4828
        %v4830 = vmul.f32 %v4794, 1.442695
        %v4831 = vpow.pop %v4830
        %v4832 = vmul.f32 %v4795, 1.442695
        %v4833 = vpow.pop %v4832
        %v4834 = vmul.f32 %v4796, 1.442695
        %v4835 = vpow.pop %v4834
        %v4836 = vmul.f32 %v4797, 1.442695
        %v4837 = vpow.pop %v4836
        %v4838 = vmul.f32 %v4798, 1.442695
        %v4839 = vpow.pop %v4838
        %v4840 = vmul.f32 %v4799, 1.442695
        %v4841 = vpow.pop %v4840
        %v4842 = vmul.f32 %v4800, 1.442695
        %v4843 = vpow.pop %v4842
        %v4844 = vmul.f32 %v4801, 1.442695
        %v4845 = vpow.pop %v4844
        %v4846 = vmul.f32 %v4802, 1.442695
        %v4847 = vpow.pop %v4846
        %v4848 = vmul.f32 %v4803, 1.442695
        %v4849 = vpow.pop %v4848
        %v4850 = vmul.f32 %v4804, 1.442695
        %v4851 = vpow.pop %v4850
        %v4852 = vmul.f32 %v4805, 1.442695
        %v4853 = vpow.pop %v4852
        %v4854 = vmul.f32 %v4806, 1.442695
        %v4855 = vpow.pop %v4854
        %v4856 = vmul.f32 %v4807, 1.442695
        %v4857 = vpow.pop %v4856
        %v4858 = vmul.f32 %v4808, 1.442695
        %v4859 = vpow.pop %v4858
        %v4860 = vmul.f32 %v4809, 1.442695
        %v4861 = vpow.pop %v4860
        %v4862 = vmul.f32 %v4810, 1.442695
        %v4863 = vpow.pop %v4862
        %v4864 = vmul.f32 %v4811, 1.442695
        %v4865 = vpow.pop %v4864
        %v4866 = vmul.f32 %v4812, 1.442695
        %v4867 = vpow.pop %v4866
        %v4868 = vmul.f32 %v4813, 1.442695
        %v4869 = vpow.pop %v4868
        %v4870 = vmul.f32 %v4814, 1.442695
        %v4871 = vpow.pop %v4870
        %v4872 = vmul.f32 %v4815, 1.442695
        %v4873 = vpow.pop %v4872
        %v4874 = vmul.f32 %v4816, 1.442695
        %v4875 = vpow.pop %v4874
        %v4876 = vmul.f32 %v4817, 1.442695
        %v4877 = vpow.pop %v4876
        %v4878 = vmul.f32 %v4818, 1.442695
        %v4879 = vpow.pop %v4878
        %v4880 = vmul.f32 %v4819, 1.442695
        %v4881 = vpow.pop %v4880
        %v4882 = vmul.f32 %v4820, 1.442695
        %v4883 = vpow.pop %v4882
        %v4884 = vmul.f32 %v4821, 1.442695
        %v4885 = vpow.pop %v4884
        %v4886 = vadd.f32 %v4823, 1.0
        %v4887 = vadd.f32 %v4825, 1.0
        %v4888 = vadd.f32 %v4827, 1.0
        %v4889 = vadd.f32 %v4829, 1.0
        %v4890 = vadd.f32 %v4831, 1.0
        %v4891 = vadd.f32 %v4833, 1.0
        %v4892 = vadd.f32 %v4835, 1.0
        %v4893 = vadd.f32 %v4837, 1.0
        %v4894 = vadd.f32 %v4839, 1.0
        %v4895 = vadd.f32 %v4841, 1.0
        %v4896 = vadd.f32 %v4843, 1.0
        %v4897 = vadd.f32 %v4845, 1.0
        %v4898 = vadd.f32 %v4847, 1.0
        %v4899 = vadd.f32 %v4849, 1.0
        %v4900 = vadd.f32 %v4851, 1.0
        %v4901 = vadd.f32 %v4853, 1.0
        %v4902 = vadd.f32 %v4855, 1.0
        %v4903 = vadd.f32 %v4857, 1.0
        %v4904 = vadd.f32 %v4859, 1.0
        %v4905 = vadd.f32 %v4861, 1.0
        %v4906 = vadd.f32 %v4863, 1.0
        %v4907 = vadd.f32 %v4865, 1.0
        %v4908 = vadd.f32 %v4867, 1.0
        %v4909 = vadd.f32 %v4869, 1.0
        %v4910 = vadd.f32 %v4871, 1.0
        %v4911 = vadd.f32 %v4873, 1.0
        %v4912 = vadd.f32 %v4875, 1.0
        %v4913 = vadd.f32 %v4877, 1.0
        %v4914 = vadd.f32 %v4879, 1.0
        %v4915 = vadd.f32 %v4881, 1.0
        %v4916 = vadd.f32 %v4883, 1.0
        %v4917 = vadd.f32 %v4885, 1.0
        %v4918 = vrcp.pop %v4886
        %v4919 = vrcp.pop %v4887
        %v4920 = vrcp.pop %v4888
        %v4921 = vrcp.pop %v4889
        %v4922 = vrcp.pop %v4890
        %v4923 = vrcp.pop %v4891
        %v4924 = vrcp.pop %v4892
        %v4925 = vrcp.pop %v4893
        %v4926 = vrcp.pop %v4894
        %v4927 = vrcp.pop %v4895
        %v4928 = vrcp.pop %v4896
        %v4929 = vrcp.pop %v4897
        %v4930 = vrcp.pop %v4898
        %v4931 = vrcp.pop %v4899
        %v4932 = vrcp.pop %v4900
        %v4933 = vrcp.pop %v4901
        %v4934 = vrcp.pop %v4902
        %v4935 = vrcp.pop %v4903
        %v4936 = vrcp.pop %v4904
        %v4937 = vrcp.pop %v4905
        %v4938 = vrcp.pop %v4906
        %v4939 = vrcp.pop %v4907
        %v4940 = vrcp.pop %v4908
        %v4941 = vrcp.pop %v4909
        %v4942 = vrcp.pop %v4910
        %v4943 = vrcp.pop %v4911
        %v4944 = vrcp.pop %v4912
        %v4945 = vrcp.pop %v4913
        %v4946 = vrcp.pop %v4914
        %v4947 = vrcp.pop %v4915
        %v4948 = vrcp.pop %v4916
        %v4949 = vrcp.pop %v4917
        %v4950 = vmul.f32 %v4918, %v4918
        %v4951 = vmul.f32 %v4919, %v4919
        %v4952 = vmul.f32 %v4920, %v4920
        %v4953 = vmul.f32 %v4921, %v4921
        %v4954 = vmul.f32 %v4922, %v4922
        %v4955 = vmul.f32 %v4923, %v4923
        %v4956 = vmul.f32 %v4924, %v4924
        %v4957 = vmul.f32 %v4925, %v4925
        %v4958 = vmul.f32 %v4926, %v4926
        %v4959 = vmul.f32 %v4927, %v4927
        %v4960 = vmul.f32 %v4928, %v4928
        %v4961 = vmul.f32 %v4929, %v4929
        %v4962 = vmul.f32 %v4930, %v4930
        %v4963 = vmul.f32 %v4931, %v4931
        %v4964 = vmul.f32 %v4932, %v4932
        %v4965 = vmul.f32 %v4933, %v4933
        %v4966 = vmul.f32 %v4934, %v4934
        %v4967 = vmul.f32 %v4935, %v4935
        %v4968 = vmul.f32 %v4936, %v4936
        %v4969 = vmul.f32 %v4937, %v4937
        %v4970 = vmul.f32 %v4938, %v4938
        %v4971 = vmul.f32 %v4939, %v4939
        %v4972 = vmul.f32 %v4940, %v4940
        %v4973 = vmul.f32 %v4941, %v4941
        %v4974 = vmul.f32 %v4942, %v4942
        %v4975 = vmul.f32 %v4943, %v4943
        %v4976 = vmul.f32 %v4944, %v4944
        %v4977 = vmul.f32 %v4945, %v4945
        %v4978 = vmul.f32 %v4946, %v4946
        %v4979 = vmul.f32 %v4947, %v4947
        %v4980 = vmul.f32 %v4948, %v4948
        %v4981 = vmul.f32 %v4949, %v4949
        %v4982 = vmul.f32 %v4950, %v4950
        %v4983 = vmul.f32 %v4951, %v4951
        %v4984 = vmul.f32 %v4952, %v4952
        %v4985 = vmul.f32 %v4953, %v4953
        %v4986 = vmul.f32 %v4954, %v4954
        %v4987 = vmul.f32 %v4955, %v4955
        %v4988 = vmul.f32 %v4956, %v4956
        %v4989 = vmul.f32 %v4957, %v4957
        %v4990 = vmul.f32 %v4958, %v4958
        %v4991 = vmul.f32 %v4959, %v4959
        %v4992 = vmul.f32 %v4960, %v4960
        %v4993 = vmul.f32 %v4961, %v4961
        %v4994 = vmul.f32 %v4962, %v4962
        %v4995 = vmul.f32 %v4963, %v4963
        %v4996 = vmul.f32 %v4964, %v4964
        %v4997 = vmul.f32 %v4965, %v4965
        %v4998 = vmul.f32 %v4966, %v4966
        %v4999 = vmul.f32 %v4967, %v4967
        %v5000 = vmul.f32 %v4968, %v4968
        %v5001 = vmul.f32 %v4969, %v4969
        %v5002 = vmul.f32 %v4970, %v4970
        %v5003 = vmul.f32 %v4971, %v4971
        %v5004 = vmul.f32 %v4972, %v4972
        %v5005 = vmul.f32 %v4973, %v4973
        %v5006 = vmul.f32 %v4974, %v4974
        %v5007 = vmul.f32 %v4975, %v4975
        %v5008 = vmul.f32 %v4976, %v4976
        %v5009 = vmul.f32 %v4977, %v4977
        %v5010 = vmul.f32 %v4978, %v4978
        %v5011 = vmul.f32 %v4979, %v4979
        %v5012 = vmul.f32 %v4980, %v4980
        %v5013 = vmul.f32 %v4981, %v4981
        %v5014 = vstv %s354
        %v5015 = vmul.f32 %v5014, %v4982
        %v5016 = vmul.f32 %v5014, %v4983
        %v5017 = vmul.f32 %v5014, %v4984
        %v5018 = vmul.f32 %v5014, %v4985
        %v5019 = vmul.f32 %v5014, %v4986
        %v5020 = vmul.f32 %v5014, %v4987
        %v5021 = vmul.f32 %v5014, %v4988
        %v5022 = vmul.f32 %v5014, %v4989
        %v5023 = vmul.f32 %v5014, %v4990
        %v5024 = vmul.f32 %v5014, %v4991
        %v5025 = vmul.f32 %v5014, %v4992
        %v5026 = vmul.f32 %v5014, %v4993
        %v5027 = vmul.f32 %v5014, %v4994
        %v5028 = vmul.f32 %v5014, %v4995
        %v5029 = vmul.f32 %v5014, %v4996
        %v5030 = vmul.f32 %v5014, %v4997
        %v5031 = vmul.f32 %v5014, %v4998
        %v5032 = vmul.f32 %v5014, %v4999
        %v5033 = vmul.f32 %v5014, %v5000
        %v5034 = vmul.f32 %v5014, %v5001
        %v5035 = vmul.f32 %v5014, %v5002
        %v5036 = vmul.f32 %v5014, %v5003
        %v5037 = vmul.f32 %v5014, %v5004
        %v5038 = vmul.f32 %v5014, %v5005
        %v5039 = vmul.f32 %v5014, %v5006
        %v5040 = vmul.f32 %v5014, %v5007
        %v5041 = vmul.f32 %v5014, %v5008
        %v5042 = vmul.f32 %v5014, %v5009
        %v5043 = vmul.f32 %v5014, %v5010
        %v5044 = vmul.f32 %v5014, %v5011
        %v5045 = vmul.f32 %v5014, %v5012
        %v5046 = vmul.f32 %v5014, %v5013
        %s5047 = ssub.f32 0.0, %s352
        %v5048 = vstv %s5047
        %v5049 = vmul.f32 %v5048, %v4756
        %v5050 = vmul.f32 %v5048, %v4757
        %v5051 = vmul.f32 %v5048, %v4758
        %v5052 = vmul.f32 %v5048, %v4759
        %v5053 = vmul.f32 %v5048, %v4760
        %v5054 = vmul.f32 %v5048, %v4761
        %v5055 = vmul.f32 %v5048, %v4762
        %v5056 = vmul.f32 %v5048, %v4763
        %v5057 = vmul.f32 %v5048, %v4764
        %v5058 = vmul.f32 %v5048, %v4765
        %v5059 = vmul.f32 %v5048, %v4766
        %v5060 = vmul.f32 %v5048, %v4767
        %v5061 = vmul.f32 %v5048, %v4768
        %v5062 = vmul.f32 %v5048, %v4769
        %v5063 = vmul.f32 %v5048, %v4770
        %v5064 = vmul.f32 %v5048, %v4771
        %v5065 = vmul.f32 %v5048, %v4772
        %v5066 = vmul.f32 %v5048, %v4773
        %v5067 = vmul.f32 %v5048, %v4774
        %v5068 = vmul.f32 %v5048, %v4775
        %v5069 = vmul.f32 %v5048, %v4776
        %v5070 = vmul.f32 %v5048, %v4777
        %v5071 = vmul.f32 %v5048, %v4778
        %v5072 = vmul.f32 %v5048, %v4779
        %v5073 = vmul.f32 %v5048, %v4780
        %v5074 = vmul.f32 %v5048, %v4781
        %v5075 = vmul.f32 %v5048, %v4782
        %v5076 = vmul.f32 %v5048, %v4783
        %v5077 = vmul.f32 %v5048, %v4784
        %v5078 = vmul.f32 %v5048, %v4785
        %v5079 = vmul.f32 %v5048, %v4786
        %v5080 = vmul.f32 %v5048, %v4787
        %v5081 = vmul.f32 %v5049, 1.442695
        %v5082 = vpow.pop %v5081
        %v5083 = vmul.f32 %v5050, 1.442695
        %v5084 = vpow.pop %v5083
        %v5085 = vmul.f32 %v5051, 1.442695
        %v5086 = vpow.pop %v5085
        %v5087 = vmul.f32 %v5052, 1.442695
        %v5088 = vpow.pop %v5087
        %v5089 = vmul.f32 %v5053, 1.442695
        %v5090 = vpow.pop %v5089
        %v5091 = vmul.f32 %v5054, 1.442695
        %v5092 = vpow.pop %v5091
        %v5093 = vmul.f32 %v5055, 1.442695
        %v5094 = vpow.pop %v5093
        %v5095 = vmul.f32 %v5056, 1.442695
        %v5096 = vpow.pop %v5095
        %v5097 = vmul.f32 %v5057, 1.442695
        %v5098 = vpow.pop %v5097
        %v5099 = vmul.f32 %v5058, 1.442695
        %v5100 = vpow.pop %v5099
        %v5101 = vmul.f32 %v5059, 1.442695
        %v5102 = vpow.pop %v5101
        %v5103 = vmul.f32 %v5060, 1.442695
        %v5104 = vpow.pop %v5103
        %v5105 = vmul.f32 %v5061, 1.442695
        %v5106 = vpow.pop %v5105
        %v5107 = vmul.f32 %v5062, 1.442695
        %v5108 = vpow.pop %v5107
        %v5109 = vmul.f32 %v5063, 1.442695
        %v5110 = vpow.pop %v5109
        %v5111 = vmul.f32 %v5064, 1.442695
        %v5112 = vpow.pop %v5111
        %v5113 = vmul.f32 %v5065, 1.442695
        %v5114 = vpow.pop %v5113
        %v5115 = vmul.f32 %v5066, 1.442695
        %v5116 = vpow.pop %v5115
        %v5117 = vmul.f32 %v5067, 1.442695
        %v5118 = vpow.pop %v5117
        %v5119 = vmul.f32 %v5068, 1.442695
        %v5120 = vpow.pop %v5119
        %v5121 = vmul.f32 %v5069, 1.442695
        %v5122 = vpow.pop %v5121
        %v5123 = vmul.f32 %v5070, 1.442695
        %v5124 = vpow.pop %v5123
        %v5125 = vmul.f32 %v5071, 1.442695
        %v5126 = vpow.pop %v5125
        %v5127 = vmul.f32 %v5072, 1.442695
        %v5128 = vpow.pop %v5127
        %v5129 = vmul.f32 %v5073, 1.442695
        %v5130 = vpow.pop %v5129
        %v5131 = vmul.f32 %v5074, 1.442695
        %v5132 = vpow.pop %v5131
        %v5133 = vmul.f32 %v5075, 1.442695
        %v5134 = vpow.pop %v5133
        %v5135 = vmul.f32 %v5076, 1.442695
        %v5136 = vpow.pop %v5135
        %v5137 = vmul.f32 %v5077, 1.442695
        %v5138 = vpow.pop %v5137
        %v5139 = vmul.f32 %v5078, 1.442695
        %v5140 = vpow.pop %v5139
        %v5141 = vmul.f32 %v5079, 1.442695
        %v5142 = vpow.pop %v5141
        %v5143 = vmul.f32 %v5080, 1.442695
        %v5144 = vpow.pop %v5143
        %v5145 = vadd.f32 %v5082, 1.0
        %v5146 = vadd.f32 %v5084, 1.0
        %v5147 = vadd.f32 %v5086, 1.0
        %v5148 = vadd.f32 %v5088, 1.0
        %v5149 = vadd.f32 %v5090, 1.0
        %v5150 = vadd.f32 %v5092, 1.0
        %v5151 = vadd.f32 %v5094, 1.0
        %v5152 = vadd.f32 %v5096, 1.0
        %v5153 = vadd.f32 %v5098, 1.0
        %v5154 = vadd.f32 %v5100, 1.0
        %v5155 = vadd.f32 %v5102, 1.0
        %v5156 = vadd.f32 %v5104, 1.0
        %v5157 = vadd.f32 %v5106, 1.0
        %v5158 = vadd.f32 %v5108, 1.0
        %v5159 = vadd.f32 %v5110, 1.0
        %v5160 = vadd.f32 %v5112, 1.0
        %v5161 = vadd.f32 %v5114, 1.0
        %v5162 = vadd.f32 %v5116, 1.0
        %v5163 = vadd.f32 %v5118, 1.0
        %v5164 = vadd.f32 %v5120, 1.0
        %v5165 = vadd.f32 %v5122, 1.0
        %v5166 = vadd.f32 %v5124, 1.0
        %v5167 = vadd.f32 %v5126, 1.0
        %v5168 = vadd.f32 %v5128, 1.0
        %v5169 = vadd.f32 %v5130, 1.0
        %v5170 = vadd.f32 %v5132, 1.0
        %v5171 = vadd.f32 %v5134, 1.0
        %v5172 = vadd.f32 %v5136, 1.0
        %v5173 = vadd.f32 %v5138, 1.0
        %v5174 = vadd.f32 %v5140, 1.0
        %v5175 = vadd.f32 %v5142, 1.0
        %v5176 = vadd.f32 %v5144, 1.0
        %v5177 = vrcp.pop %v5145
        %v5178 = vrcp.pop %v5146
        %v5179 = vrcp.pop %v5147
        %v5180 = vrcp.pop %v5148
        %v5181 = vrcp.pop %v5149
        %v5182 = vrcp.pop %v5150
        %v5183 = vrcp.pop %v5151
        %v5184 = vrcp.pop %v5152
        %v5185 = vrcp.pop %v5153
        %v5186 = vrcp.pop %v5154
        %v5187 = vrcp.pop %v5155
        %v5188 = vrcp.pop %v5156
        %v5189 = vrcp.pop %v5157
        %v5190 = vrcp.pop %v5158
        %v5191 = vrcp.pop %v5159
        %v5192 = vrcp.pop %v5160
        %v5193 = vrcp.pop %v5161
        %v5194 = vrcp.pop %v5162
        %v5195 = vrcp.pop %v5163
        %v5196 = vrcp.pop %v5164
        %v5197 = vrcp.pop %v5165
        %v5198 = vrcp.pop %v5166
        %v5199 = vrcp.pop %v5167
        %v5200 = vrcp.pop %v5168
        %v5201 = vrcp.pop %v5169
        %v5202 = vrcp.pop %v5170
        %v5203 = vrcp.pop %v5171
        %v5204 = vrcp.pop %v5172
        %v5205 = vrcp.pop %v5173
        %v5206 = vrcp.pop %v5174
        %v5207 = vrcp.pop %v5175
        %v5208 = vrcp.pop %v5176
        %v5209 = vstv %s353
        %v5210 = vmul.f32 %v5209, %v5177
        %v5211 = vmul.f32 %v5209, %v5178
        %v5212 = vmul.f32 %v5209, %v5179
        %v5213 = vmul.f32 %v5209, %v5180
        %v5214 = vmul.f32 %v5209, %v5181
        %v5215 = vmul.f32 %v5209, %v5182
        %v5216 = vmul.f32 %v5209, %v5183
        %v5217 = vmul.f32 %v5209, %v5184
        %v5218 = vmul.f32 %v5209, %v5185
        %v5219 = vmul.f32 %v5209, %v5186
        %v5220 = vmul.f32 %v5209, %v5187
        %v5221 = vmul.f32 %v5209, %v5188
        %v5222 = vmul.f32 %v5209, %v5189
        %v5223 = vmul.f32 %v5209, %v5190
        %v5224 = vmul.f32 %v5209, %v5191
        %v5225 = vmul.f32 %v5209, %v5192
        %v5226 = vmul.f32 %v5209, %v5193
        %v5227 = vmul.f32 %v5209, %v5194
        %v5228 = vmul.f32 %v5209, %v5195
        %v5229 = vmul.f32 %v5209, %v5196
        %v5230 = vmul.f32 %v5209, %v5197
        %v5231 = vmul.f32 %v5209, %v5198
        %v5232 = vmul.f32 %v5209, %v5199
        %v5233 = vmul.f32 %v5209, %v5200
        %v5234 = vmul.f32 %v5209, %v5201
        %v5235 = vmul.f32 %v5209, %v5202
        %v5236 = vmul.f32 %v5209, %v5203
        %v5237 = vmul.f32 %v5209, %v5204
        %v5238 = vmul.f32 %v5209, %v5205
        %v5239 = vmul.f32 %v5209, %v5206
        %v5240 = vmul.f32 %v5209, %v5207
        %v5241 = vmul.f32 %v5209, %v5208
        %v5242 = vlaneseq
        %v5243 = vand.u32 %v5242, 127
        %vm5244 = vcmp.eq.s32.totalorder %v5243, 0
        %v5245 = vsel %vm5244, 1, 0
        %v5246 = vcvt.s32.f32 %v5245
        %v5247 = vmul.f32 %v2694, %v5246
        %v5248 = vmul.f32 %v2695, %v5246
        %v5249 = vmul.f32 %v2696, %v5246
        %v5250 = vmul.f32 %v2697, %v5246
        %v5251 = vmul.f32 %v2698, %v5246
        %v5252 = vmul.f32 %v2699, %v5246
        %v5253 = vmul.f32 %v2700, %v5246
        %v5254 = vmul.f32 %v2701, %v5246
        %v5255 = vmul.f32 %v2702, %v5246
        %v5256 = vmul.f32 %v2703, %v5246
        %v5257 = vmul.f32 %v2704, %v5246
        %v5258 = vmul.f32 %v2705, %v5246
        %v5259 = vmul.f32 %v2706, %v5246
        %v5260 = vmul.f32 %v2707, %v5246
        %v5261 = vmul.f32 %v2708, %v5246
        %v5262 = vmul.f32 %v2709, %v5246
        %v5263 = vmul.f32 %v2710, %v5246
        %v5264 = vmul.f32 %v2711, %v5246
        %v5265 = vmul.f32 %v2712, %v5246
        %v5266 = vmul.f32 %v2713, %v5246
        %v5267 = vmul.f32 %v2714, %v5246
        %v5268 = vmul.f32 %v2715, %v5246
        %v5269 = vmul.f32 %v2716, %v5246
        %v5270 = vmul.f32 %v2717, %v5246
        %v5271 = vmul.f32 %v2718, %v5246
        %v5272 = vmul.f32 %v2719, %v5246
        %v5273 = vmul.f32 %v2720, %v5246
        %v5274 = vmul.f32 %v2721, %v5246
        %v5275 = vmul.f32 %v2722, %v5246
        %v5276 = vmul.f32 %v2723, %v5246
        %v5277 = vmul.f32 %v2724, %v5246
        %v5278 = vmul.f32 %v2725, %v5246
        %vm5279 = vcmp.eq.s32.totalorder %v5243, 1
        %v5280 = vsel %vm5279, 1, 0
        %v5281 = vcvt.s32.f32 %v5280
        %v5282 = vmul.f32 %v2598, %v5281
        %v5283 = vmul.f32 %v2599, %v5281
        %v5284 = vmul.f32 %v2600, %v5281
        %v5285 = vmul.f32 %v2601, %v5281
        %v5286 = vmul.f32 %v2602, %v5281
        %v5287 = vmul.f32 %v2603, %v5281
        %v5288 = vmul.f32 %v2604, %v5281
        %v5289 = vmul.f32 %v2605, %v5281
        %v5290 = vmul.f32 %v2606, %v5281
        %v5291 = vmul.f32 %v2607, %v5281
        %v5292 = vmul.f32 %v2608, %v5281
        %v5293 = vmul.f32 %v2609, %v5281
        %v5294 = vmul.f32 %v2610, %v5281
        %v5295 = vmul.f32 %v2611, %v5281
        %v5296 = vmul.f32 %v2612, %v5281
        %v5297 = vmul.f32 %v2613, %v5281
        %v5298 = vmul.f32 %v2614, %v5281
        %v5299 = vmul.f32 %v2615, %v5281
        %v5300 = vmul.f32 %v2616, %v5281
        %v5301 = vmul.f32 %v2617, %v5281
        %v5302 = vmul.f32 %v2618, %v5281
        %v5303 = vmul.f32 %v2619, %v5281
        %v5304 = vmul.f32 %v2620, %v5281
        %v5305 = vmul.f32 %v2621, %v5281
        %v5306 = vmul.f32 %v2622, %v5281
        %v5307 = vmul.f32 %v2623, %v5281
        %v5308 = vmul.f32 %v2624, %v5281
        %v5309 = vmul.f32 %v2625, %v5281
        %v5310 = vmul.f32 %v2626, %v5281
        %v5311 = vmul.f32 %v2627, %v5281
        %v5312 = vmul.f32 %v2628, %v5281
        %v5313 = vmul.f32 %v2629, %v5281
        %v5314 = vadd.f32 %v5247, %v5282
        %v5315 = vadd.f32 %v5248, %v5283
        %v5316 = vadd.f32 %v5249, %v5284
        %v5317 = vadd.f32 %v5250, %v5285
        %v5318 = vadd.f32 %v5251, %v5286
        %v5319 = vadd.f32 %v5252, %v5287
        %v5320 = vadd.f32 %v5253, %v5288
        %v5321 = vadd.f32 %v5254, %v5289
        %v5322 = vadd.f32 %v5255, %v5290
        %v5323 = vadd.f32 %v5256, %v5291
        %v5324 = vadd.f32 %v5257, %v5292
        %v5325 = vadd.f32 %v5258, %v5293
        %v5326 = vadd.f32 %v5259, %v5294
        %v5327 = vadd.f32 %v5260, %v5295
        %v5328 = vadd.f32 %v5261, %v5296
        %v5329 = vadd.f32 %v5262, %v5297
        %v5330 = vadd.f32 %v5263, %v5298
        %v5331 = vadd.f32 %v5264, %v5299
        %v5332 = vadd.f32 %v5265, %v5300
        %v5333 = vadd.f32 %v5266, %v5301
        %v5334 = vadd.f32 %v5267, %v5302
        %v5335 = vadd.f32 %v5268, %v5303
        %v5336 = vadd.f32 %v5269, %v5304
        %v5337 = vadd.f32 %v5270, %v5305
        %v5338 = vadd.f32 %v5271, %v5306
        %v5339 = vadd.f32 %v5272, %v5307
        %v5340 = vadd.f32 %v5273, %v5308
        %v5341 = vadd.f32 %v5274, %v5309
        %v5342 = vadd.f32 %v5275, %v5310
        %v5343 = vadd.f32 %v5276, %v5311
        %v5344 = vadd.f32 %v5277, %v5312
        %v5345 = vadd.f32 %v5278, %v5313
        %vm5346 = vcmp.eq.s32.totalorder %v5243, 2
        %v5347 = vsel %vm5346, 1, 0
        %v5348 = vcvt.s32.f32 %v5347
        %v5349 = vmul.f32 %v5210, %v5348
        %v5350 = vmul.f32 %v5211, %v5348
        %v5351 = vmul.f32 %v5212, %v5348
        %v5352 = vmul.f32 %v5213, %v5348
        %v5353 = vmul.f32 %v5214, %v5348
        %v5354 = vmul.f32 %v5215, %v5348
        %v5355 = vmul.f32 %v5216, %v5348
        %v5356 = vmul.f32 %v5217, %v5348
        %v5357 = vmul.f32 %v5218, %v5348
        %v5358 = vmul.f32 %v5219, %v5348
        %v5359 = vmul.f32 %v5220, %v5348
        %v5360 = vmul.f32 %v5221, %v5348
        %v5361 = vmul.f32 %v5222, %v5348
        %v5362 = vmul.f32 %v5223, %v5348
        %v5363 = vmul.f32 %v5224, %v5348
        %v5364 = vmul.f32 %v5225, %v5348
        %v5365 = vmul.f32 %v5226, %v5348
        %v5366 = vmul.f32 %v5227, %v5348
        %v5367 = vmul.f32 %v5228, %v5348
        %v5368 = vmul.f32 %v5229, %v5348
        %v5369 = vmul.f32 %v5230, %v5348
        %v5370 = vmul.f32 %v5231, %v5348
        %v5371 = vmul.f32 %v5232, %v5348
        %v5372 = vmul.f32 %v5233, %v5348
        %v5373 = vmul.f32 %v5234, %v5348
        %v5374 = vmul.f32 %v5235, %v5348
        %v5375 = vmul.f32 %v5236, %v5348
        %v5376 = vmul.f32 %v5237, %v5348
        %v5377 = vmul.f32 %v5238, %v5348
        %v5378 = vmul.f32 %v5239, %v5348
        %v5379 = vmul.f32 %v5240, %v5348
        %v5380 = vmul.f32 %v5241, %v5348
        %v5381 = vadd.f32 %v5314, %v5349
        %v5382 = vadd.f32 %v5315, %v5350
        %v5383 = vadd.f32 %v5316, %v5351
        %v5384 = vadd.f32 %v5317, %v5352
        %v5385 = vadd.f32 %v5318, %v5353
        %v5386 = vadd.f32 %v5319, %v5354
        %v5387 = vadd.f32 %v5320, %v5355
        %v5388 = vadd.f32 %v5321, %v5356
        %v5389 = vadd.f32 %v5322, %v5357
        %v5390 = vadd.f32 %v5323, %v5358
        %v5391 = vadd.f32 %v5324, %v5359
        %v5392 = vadd.f32 %v5325, %v5360
        %v5393 = vadd.f32 %v5326, %v5361
        %v5394 = vadd.f32 %v5327, %v5362
        %v5395 = vadd.f32 %v5328, %v5363
        %v5396 = vadd.f32 %v5329, %v5364
        %v5397 = vadd.f32 %v5330, %v5365
        %v5398 = vadd.f32 %v5331, %v5366
        %v5399 = vadd.f32 %v5332, %v5367
        %v5400 = vadd.f32 %v5333, %v5368
        %v5401 = vadd.f32 %v5334, %v5369
        %v5402 = vadd.f32 %v5335, %v5370
        %v5403 = vadd.f32 %v5336, %v5371
        %v5404 = vadd.f32 %v5337, %v5372
        %v5405 = vadd.f32 %v5338, %v5373
        %v5406 = vadd.f32 %v5339, %v5374
        %v5407 = vadd.f32 %v5340, %v5375
        %v5408 = vadd.f32 %v5341, %v5376
        %v5409 = vadd.f32 %v5342, %v5377
        %v5410 = vadd.f32 %v5343, %v5378
        %v5411 = vadd.f32 %v5344, %v5379
        %v5412 = vadd.f32 %v5345, %v5380
        %vm5413 = vcmp.eq.s32.totalorder %v5243, 3
        %v5414 = vsel %vm5413, 1, 0
        %v5415 = vcvt.s32.f32 %v5414
        %v5416 = vmul.f32 %v5015, %v5415
        %v5417 = vmul.f32 %v5016, %v5415
        %v5418 = vmul.f32 %v5017, %v5415
        %v5419 = vmul.f32 %v5018, %v5415
        %v5420 = vmul.f32 %v5019, %v5415
        %v5421 = vmul.f32 %v5020, %v5415
        %v5422 = vmul.f32 %v5021, %v5415
        %v5423 = vmul.f32 %v5022, %v5415
        %v5424 = vmul.f32 %v5023, %v5415
        %v5425 = vmul.f32 %v5024, %v5415
        %v5426 = vmul.f32 %v5025, %v5415
        %v5427 = vmul.f32 %v5026, %v5415
        %v5428 = vmul.f32 %v5027, %v5415
        %v5429 = vmul.f32 %v5028, %v5415
        %v5430 = vmul.f32 %v5029, %v5415
        %v5431 = vmul.f32 %v5030, %v5415
        %v5432 = vmul.f32 %v5031, %v5415
        %v5433 = vmul.f32 %v5032, %v5415
        %v5434 = vmul.f32 %v5033, %v5415
        %v5435 = vmul.f32 %v5034, %v5415
        %v5436 = vmul.f32 %v5035, %v5415
        %v5437 = vmul.f32 %v5036, %v5415
        %v5438 = vmul.f32 %v5037, %v5415
        %v5439 = vmul.f32 %v5038, %v5415
        %v5440 = vmul.f32 %v5039, %v5415
        %v5441 = vmul.f32 %v5040, %v5415
        %v5442 = vmul.f32 %v5041, %v5415
        %v5443 = vmul.f32 %v5042, %v5415
        %v5444 = vmul.f32 %v5043, %v5415
        %v5445 = vmul.f32 %v5044, %v5415
        %v5446 = vmul.f32 %v5045, %v5415
        %v5447 = vmul.f32 %v5046, %v5415
        %v5448 = vadd.f32 %v5381, %v5416
        %v5449 = vadd.f32 %v5382, %v5417
        %v5450 = vadd.f32 %v5383, %v5418
        %v5451 = vadd.f32 %v5384, %v5419
        %v5452 = vadd.f32 %v5385, %v5420
        %v5453 = vadd.f32 %v5386, %v5421
        %v5454 = vadd.f32 %v5387, %v5422
        %v5455 = vadd.f32 %v5388, %v5423
        %v5456 = vadd.f32 %v5389, %v5424
        %v5457 = vadd.f32 %v5390, %v5425
        %v5458 = vadd.f32 %v5391, %v5426
        %v5459 = vadd.f32 %v5392, %v5427
        %v5460 = vadd.f32 %v5393, %v5428
        %v5461 = vadd.f32 %v5394, %v5429
        %v5462 = vadd.f32 %v5395, %v5430
        %v5463 = vadd.f32 %v5396, %v5431
        %v5464 = vadd.f32 %v5397, %v5432
        %v5465 = vadd.f32 %v5398, %v5433
        %v5466 = vadd.f32 %v5399, %v5434
        %v5467 = vadd.f32 %v5400, %v5435
        %v5468 = vadd.f32 %v5401, %v5436
        %v5469 = vadd.f32 %v5402, %v5437
        %v5470 = vadd.f32 %v5403, %v5438
        %v5471 = vadd.f32 %v5404, %v5439
        %v5472 = vadd.f32 %v5405, %v5440
        %v5473 = vadd.f32 %v5406, %v5441
        %v5474 = vadd.f32 %v5407, %v5442
        %v5475 = vadd.f32 %v5408, %v5443
        %v5476 = vadd.f32 %v5409, %v5444
        %v5477 = vadd.f32 %v5410, %v5445
        %v5478 = vadd.f32 %v5411, %v5446
        %v5479 = vadd.f32 %v5412, %v5447
        %5480 = vst [vmem:[%s343] sm:$0xff] %v5448
        %5481 = vst [vmem:[%s343 + $0x8] sm:$0xff] %v5449
        %5482 = vst [vmem:[%s343 + $0x10] sm:$0xff] %v5450
        %5483 = vst [vmem:[%s343 + $0x18] sm:$0xff] %v5451
        %5484 = vst [vmem:[%s343 + $0x20] sm:$0xff] %v5452
        %5485 = vst [vmem:[%s343 + $0x28] sm:$0xff] %v5453
        %5486 = vst [vmem:[%s343 + $0x30] sm:$0xff] %v5454
        %5487 = vst [vmem:[%s343 + $0x38] sm:$0xff] %v5455
        %5488 = vst [vmem:[%s343 + $0x40] sm:$0xff] %v5456
        %5489 = vst [vmem:[%s343 + $0x48] sm:$0xff] %v5457
        %5490 = vst [vmem:[%s343 + $0x50] sm:$0xff] %v5458
        %5491 = vst [vmem:[%s343 + $0x58] sm:$0xff] %v5459
        %5492 = vst [vmem:[%s343 + $0x60] sm:$0xff] %v5460
        %5493 = vst [vmem:[%s343 + $0x68] sm:$0xff] %v5461
        %5494 = vst [vmem:[%s343 + $0x70] sm:$0xff] %v5462
        %5495 = vst [vmem:[%s343 + $0x78] sm:$0xff] %v5463
        %5496 = vst [vmem:[%s343 + $0x80] sm:$0xff] %v5464
        %5497 = vst [vmem:[%s343 + $0x88] sm:$0xff] %v5465
        %5498 = vst [vmem:[%s343 + $0x90] sm:$0xff] %v5466
        %5499 = vst [vmem:[%s343 + $0x98] sm:$0xff] %v5467
        %5500 = vst [vmem:[%s343 + $0xa0] sm:$0xff] %v5468
        %5501 = vst [vmem:[%s343 + $0xa8] sm:$0xff] %v5469
        %5502 = vst [vmem:[%s343 + $0xb0] sm:$0xff] %v5470
        %5503 = vst [vmem:[%s343 + $0xb8] sm:$0xff] %v5471
        %5504 = vst [vmem:[%s343 + $0xc0] sm:$0xff] %v5472
        %5505 = vst [vmem:[%s343 + $0xc8] sm:$0xff] %v5473
        %5506 = vst [vmem:[%s343 + $0xd0] sm:$0xff] %v5474
        %5507 = vst [vmem:[%s343 + $0xd8] sm:$0xff] %v5475
        %5508 = vst [vmem:[%s343 + $0xe0] sm:$0xff] %v5476
        %5509 = vst [vmem:[%s343 + $0xe8] sm:$0xff] %v5477
        %5510 = vst [vmem:[%s343 + $0xf0] sm:$0xff] %v5478
        %5511 = vst [vmem:[%s343 + $0xf8] sm:$0xff] %v5479
        %s5512 = sand.u32 %s206, 1
        %s5513 = scalar_lea.sflag [#allocation4], %s5512
        %s5514 = sand.u32 %s206, 1
        %s5515 = smul.addr %s5514, 256
        %s5516 = scalar_lea.vmem [#allocation9], %s5515
        // Predicated region
        $region65: #{tpu_custom_call.1} parent=51 // pred_check
          %p5517 = pneg %p216
        $region66: #{tpu_custom_call.1} parent=51 // pred_check_branch
          %5519 = sbr.rel (%p5517) target = $region68
        $region67: #{tpu_custom_call.1} parent=51 // pred_region
          %s5520 = smul.u32 32, %s25
          %5522 = vsyncadd %s5513, 0
          %s5523 = smul.addr %s5520, 8
          %s5524 = scalar_lea.hbm %s8, %s5523
          %s5525 = sshll.u32 %s5516, 4
          %s5526 = int_to_ptr.vmem [resolvable:$true] %s5525
          %s5527 = sshll.u32 %s5524, 4
          %s5528 = int_to_ptr.hbm [resolvable:$true] %s5527
          %5533 = dma.vmem_to_hbm [thread:$0]  %s5526, 4096, %s5528, %s5513, 128, 128, 8
        $region68: #{tpu_custom_call.1} parent=51 // pred_fallthru
          _
      $region52: #{tpu_custom_call.1} parent=5 // pred_fallthru
        _
      %p5534 = scmp.le.s32.totalorder 2, %s20
      // Predicated region
      $region69: #{tpu_custom_call.1} parent=5 // pred_check
        %p5535 = pneg %p5534
      $region70: #{tpu_custom_call.1} parent=5 // pred_check_branch
        %5537 = sbr.rel (%p5535) target = $region72
      $region71: #{tpu_custom_call.1} parent=5 // pred_region
        %s5538 = ssub.s32 %s20, 2
        // Predicated region
        $region73: #{tpu_custom_call.1} parent=71 // pred_check
          %p5539 = pneg %p222
        $region74: #{tpu_custom_call.1} parent=71 // pred_check_branch
          %5541 = sbr.rel (%p5539) target = $region76
        $region75: #{tpu_custom_call.1} parent=71 // pred_region
          %s5542 = sand.u32 %s207, 1
          %s5543 = scalar_lea.sflag [#allocation4], %s5542
          %s5544 = sand.u32 %s207, 1
          %s5545 = smul.addr %s5544, 256
          %s5546 = scalar_lea.vmem [#allocation9], %s5545
          %5548 = dma.done %s5543, 4096
        $region76: #{tpu_custom_call.1} parent=71 // pred_fallthru
          _
      $region72: #{tpu_custom_call.1} parent=5 // pred_fallthru
        _
    $region6: #{tpu_custom_call.1} parent=1 // loop_footer
      %s24 = sadd.s32 1, %s20
    $region7: #{tpu_custom_call.1} parent=1 // loop_footer_branch
      %19 = sbr.rel target = $region3
    $region8: #{tpu_custom_call.1} parent=1 // loop_exit
      _
    %5549 = vsyncpa [#allocation3], 1
    %s5550 = scalar_lea.sflag [#allocation3], 1
    %5551 = vsyncpa %s5550, 1
    %5552 = vsyncpa [#allocation4], 1
    %s5553 = scalar_lea.sflag [#allocation4], 1
    %5554 = vsyncpa %s5553, 1
    %5555 = vsyncpa [#allocation5], 1
    %s5556 = scalar_lea.sflag [#allocation5], 1
    %5557 = vsyncpa %s5556, 1
    %5558 = vsyncpa [#allocation7], 1

</llo_original>
